<compile_context>
chip_gen: v5e
topology: v5e:2x2
jax: 0.10.0
libtpu: 0.0.40
codegen_flags: <defaults>
</compile_context>

<pallas_src>
import functools
import math

import jax
import jax.numpy as jnp
from jax.experimental import pallas as pl
from jax.experimental.pallas import tpu as pltpu


def _mha_kernel(q_ref, k_ref, v_ref, mask_ref,
                wqkv_ref, bqkv_ref, wd_ref, bd_ref,
                out_ref, attn_ref,
                acc_ref,
                *, heads_per_group, head_dim):
    g = pl.program_id(2)
    n_groups = pl.num_programs(2)
    G, hd = heads_per_group, head_dim
    tq = out_ref.shape[1]
    D = out_ref.shape[2]

    # Fold the dense bias into the accumulator init at the first head group.
    @pl.when(g == 0)
    def _():
        acc_ref[...] = jnp.broadcast_to(bd_ref[...], (tq, D))

    xq = q_ref[0]                      # (tq, D) bf16
    xk = k_ref[0]                      # (S, D)  bf16
    xv = v_ref[0]

    # Group projections: (tq,D)@(D,G*hd) bf16 MXU matmuls with f32 accumulation.
    # 1/sqrt(hd) is already folded into Wq/bq by the wrapper.
    Qg = (jnp.dot(xq, wqkv_ref[0, 0], preferred_element_type=jnp.float32)
          + bqkv_ref[0, 0]).astype(jnp.bfloat16)            # (tq, G*hd)
    Kg = (jnp.dot(xk, wqkv_ref[0, 1], preferred_element_type=jnp.float32)
          + bqkv_ref[0, 1]).astype(jnp.bfloat16)            # (S,  G*hd)
    Vg = (jnp.dot(xv, wqkv_ref[0, 2], preferred_element_type=jnp.float32)
          + bqkv_ref[0, 2]).astype(jnp.bfloat16)            # (S,  G*hd)

    neg_mask = mask_ref[0, 0]          # (1, S) f32, already multiplied by -1e9

    ctx_parts = []
    for i in range(G):                 # static unroll; static lane slices of width hd
        Qh = Qg[:, i * hd:(i + 1) * hd]
        Kh = Kg[:, i * hd:(i + 1) * hd]
        Vh = Vg[:, i * hd:(i + 1) * hd]

        # (tq, S) logits, contraction over hd; bf16 in, f32 out; mask add in f32.
        scores = jax.lax.dot_general(
            Qh, Kh, dimension_numbers=(((1,), (1,)), ((), ())),
            preferred_element_type=jnp.float32)
        scores = scores + neg_mask

        # Numerically-stable, *exact* softmax in f32 (exact divide is only on the
        # (tq,1) denominator; the (tq,S) op is a multiply).
        m = jnp.max(scores, axis=-1, keepdims=True)
        e = jnp.exp(scores - m)
        inv = 1.0 / jnp.sum(e, axis=-1, keepdims=True)
        attn_b = (e * inv).astype(jnp.bfloat16)              # single cast, reused below

        attn_ref[0, i] = attn_b                              # bf16 writeback
        ctx_parts.append(jnp.dot(attn_b, Vh, preferred_element_type=jnp.float32))

    # One MXU-shaped dense contribution per group: (tq, G*hd) @ (G*hd, D).
    ctx_g = jnp.concatenate(ctx_parts, axis=1).astype(jnp.bfloat16)
    acc_ref[...] += jnp.dot(ctx_g, wd_ref[0], preferred_element_type=jnp.float32)

    # Write the output once, in the caller's dtype, at the last head group.
    @pl.when(g == n_groups - 1)
    def _():
        out_ref[0] = acc_ref[...].astype(out_ref.dtype)


def _choose_group(num_heads, head_dim):
    """Smallest divisor G of num_heads such that G*head_dim is a multiple of 128."""
    for G in range(1, num_heads + 1):
        if num_heads % G == 0 and (G * head_dim) % 128 == 0:
            return G
    return num_heads


def _choose_tq(S):
    if S <= 512:
        return S
    for t in (512, 256, 128):
        if S % t == 0:
            return t
    return S


def _vmem_limit_bytes(S, tq, D, G, hd, out_bytes):
    bf16, f32, dbl = 2, 4, 2
    b = 0
    b += tq * D * bf16 * dbl                 # q block
    b += 2 * S * D * bf16 * dbl              # k, v blocks
    b += S * f32 * dbl                       # mask block
    b += 3 * D * G * hd * bf16 * dbl         # fused per-group QKV weights
    b += 3 * G * hd * f32 * dbl              # fused per-group QKV biases
    b += G * hd * D * bf16 * dbl             # per-group dense weight slab
    b += D * f32 * dbl                       # dense bias
    b += tq * D * out_bytes * dbl            # output block
    b += G * tq * S * bf16 * dbl             # per-group attention-weights block
    b += tq * D * f32                        # f32 accumulator scratch
    # live intermediates: projected Q/K/V (f32 + bf16), a few (tq,S) f32 softmax temps, ctx
    b += 3 * S * G * hd * (f32 + bf16)
    b += 4 * tq * S * f32
    b += 2 * tq * G * hd * f32
    est = b + (8 << 20)                      # headroom
    return int(min(max(est, 16 << 20), 64 << 20))


def multi_head_attention(q, k, v, input_mask, params, num_heads, *, tq=None):
    """q, k, v: [B, S, D]; input_mask: [B, 1, 1, S] (1.0 = masked).

    Returns (output [B,S,D] in q.dtype, attention_weights [B,H,S,S] in bf16)."""
    B, S, D = q.shape
    assert D % num_heads == 0
    hd = D // num_heads
    G = _choose_group(num_heads, hd)
    n_groups = num_heads // G
    if tq is None:
        tq = _choose_tq(S)
    assert S % tq == 0 and (tq == S or tq % 8 == 0)
    n_qt = S // tq
    out_dtype = q.dtype

    if input_mask is None:
        input_mask = jnp.zeros((B, 1, 1, S), jnp.float32)

    # bf16 activations/weights for the MXU; biases, mask and softmax stay f32.
    qb = q.astype(jnp.bfloat16)
    kb = k.astype(jnp.bfloat16)
    vb = v.astype(jnp.bfloat16)
    mask_scaled = input_mask.astype(jnp.float32) * (-1e9)   # pre-scaled in the wrapper

    scale = 1.0 / math.sqrt(hd)                              # folded into Wq / bq

    def group_cols(w):  # torch Linear weight (D_out, D_in) -> (n_groups, D_in, G*hd)
        return jnp.transpose(w.T.reshape(D, n_groups, G * hd), (1, 0, 2))

    wqkv = jnp.stack([group_cols(params['Wq_w'] * scale),
                      group_cols(params['Wk_w']),
                      group_cols(params['Wv_w'])], axis=1).astype(jnp.bfloat16)
    # (n_groups, 3, D, G*hd) — lane dim is a multiple of 128 by construction of G.
    bqkv = jnp.stack([(params['Wq_b'] * scale).reshape(n_groups, 1, G * hd),
                      params['Wk_b'].reshape(n_groups, 1, G * hd),
                      params['Wv_b'].reshape(n_groups, 1, G * hd)],
                     axis=1).astype(jnp.float32)             # (n_groups, 3, 1, G*hd)
    wd = params['dense_w'].T.reshape(n_groups, G * hd, D).astype(jnp.bfloat16)
    bd = params['dense_b'].reshape(1, D).astype(jnp.float32)

    kernel = functools.partial(_mha_kernel, heads_per_group=G, head_dim=hd)

    out, attn = pl.pallas_call(
        kernel,
        out_shape=(
            jax.ShapeDtypeStruct((B, S, D), out_dtype),
            jax.ShapeDtypeStruct((B, num_heads, S, S), jnp.bfloat16),
        ),
        grid_spec=pltpu.PrefetchScalarGridSpec(
            num_scalar_prefetch=0,
            grid=(B, n_qt, n_groups),
            in_specs=[
                pl.BlockSpec((1, tq, D), lambda b, qt, g: (b, qt, 0)),
                pl.BlockSpec((1, S, D), lambda b, qt, g: (b, 0, 0)),
                pl.BlockSpec((1, S, D), lambda b, qt, g: (b, 0, 0)),
                pl.BlockSpec((1, 1, 1, S), lambda b, qt, g: (b, 0, 0, 0)),
                pl.BlockSpec((1, 3, D, G * hd), lambda b, qt, g: (g, 0, 0, 0)),
                pl.BlockSpec((1, 3, 1, G * hd), lambda b, qt, g: (g, 0, 0, 0)),
                pl.BlockSpec((1, G * hd, D), lambda b, qt, g: (g, 0, 0)),
                pl.BlockSpec((1, D), lambda b, qt, g: (0, 0)),
            ],
            out_specs=[
                pl.BlockSpec((1, tq, D), lambda b, qt, g: (b, qt, 0)),      # acc over g
                pl.BlockSpec((1, G, tq, S), lambda b, qt, g: (b, g, qt, 0)),
            ],
            scratch_shapes=[pltpu.VMEM((tq, D), jnp.float32)],
        ),
        compiler_params=pltpu.CompilerParams(
            dimension_semantics=("parallel", "parallel", "arbitrary"),
            vmem_limit_bytes=_vmem_limit_bytes(S, tq, D, G, hd,
                                               jnp.dtype(out_dtype).itemsize),
        ),
    )(qb, kb, vb, mask_scaled, wqkv, bqkv, wd, bd)
    return out, attn


def _reference_mha(q, k, v, input_mask, params, num_heads):
    """Pure-JAX f32 reference mirroring the PyTorch forward."""
    B, S, D = q.shape
    hd = D // num_heads

    def lin(x, w, b):
        return jnp.einsum('bsd,od->bso', x, w) + b

    def split(x):
        return jnp.transpose(x.reshape(B, S, num_heads, hd), (0, 2, 1, 3))

    Q = split(lin(q, params['Wq_w'], params['Wq_b']))
    K = split(lin(k, params['Wk_w'], params['Wk_b']))
    V = split(lin(v, params['Wv_w'], params['Wv_b']))
    logits = jnp.einsum('bhqd,bhkd->bhqk', Q, K) / (hd ** 0.5)
    logits = logits + input_mask * (-1e9)
    attn = jax.nn.softmax(logits, axis=-1)
    ctx = jnp.einsum('bhqk,bhkd->bhqd', attn, V)
    ctx = jnp.transpose(ctx, (0, 2, 1, 3)).reshape(B, S, D)
    out = jnp.einsum('bsd,od->bso', ctx, params['dense_w']) + params['dense_b']
    return out, attn


def _make_params(key, D):
    keys = jax.random.split(key, 8)
    bound = 1.0 / math.sqrt(D)
    u = lambda kk, shape: jax.random.uniform(kk, shape, jnp.float32, -bound, bound)
    return {
        'Wq_w': u(keys[0], (D, D)), 'Wq_b': u(keys[1], (D,)),
        'Wk_w': u(keys[2], (D, D)), 'Wk_b': u(keys[3], (D,)),
        'Wv_w': u(keys[4], (D, D)), 'Wv_b': u(keys[5], (D,)),
        'dense_w': u(keys[6], (D, D)), 'dense_b': u(keys[7], (D,)),
    }


def _run_case(key, B, S, D, H, tq):
    kp, kq, kk, kv = jax.random.split(key, 4)
    params = _make_params(kp, D)
    q = jax.random.normal(kq, (B, S, D), jnp.float32)
    k = jax.random.normal(kk, (B, S, D), jnp.float32)
    v = jax.random.normal(kv, (B, S, D), jnp.float32)
    # Padding-style mask: 1.0 -> masked, 0.0 -> attend. Mask the last 2 key positions.
    mask = jnp.zeros((B, 1, 1, S), jnp.float32).at[:, :, :, -2:].set(1.0)

    out, attn = multi_head_attention(q, k, v, mask, params, H, tq=tq)
    out = jax.block_until_ready(out)
    attn = jax.block_until_ready(attn)

    ref_out, ref_attn = _reference_mha(q, k, v, mask, params, H)
    assert out.shape == (B, S, D)
    assert attn.shape == (B, H, S, S)
    attn_f32 = attn.astype(jnp.float32)
    # Tolerances account for bf16 MXU matmuls and bf16 attention-weight storage.
    assert jnp.allclose(attn_f32, ref_attn, atol=8e-3, rtol=5e-2), \
        f"attn max err {jnp.max(jnp.abs(attn_f32 - ref_attn))}"
    assert jnp.allclose(out, ref_out, atol=2e-2, rtol=2e-2), \
        f"out max err {jnp.max(jnp.abs(out - ref_out))}"


if __name__ == "__main__":
    key = jax.random.PRNGKey(0)
    k1, k2 = jax.random.split(key, 2)
    # Case 1: single head group, single query tile (grid reduction degenerate).
    _run_case(k1, B=2, S=128, D=128, H=4, tq=None)
    # Case 2: exercises head-group accumulation (n_groups=2) and query tiling (n_qt=2).
    _run_case(k2, B=2, S=256, D=256, H=8, tq=128)
    print("KERNEL_OK")
</pallas_src>

<mosaic_0001>
module attributes {stable_mosaic.version = 11 : i64} {
  func.func @_mha_kernel(%arg0: i32, %arg1: i32, %arg2: i32, %arg3: memref<1x128x128xbf16, #tpu.memory_space<vmem>>, %arg4: memref<1x128x128xbf16, #tpu.memory_space<vmem>>, %arg5: memref<1x128x128xbf16, #tpu.memory_space<vmem>>, %arg6: memref<1x1x1x128xf32, #tpu.memory_space<vmem>>, %arg7: memref<1x3x128x128xbf16, #tpu.memory_space<vmem>>, %arg8: memref<1x3x1x128xf32, #tpu.memory_space<vmem>>, %arg9: memref<1x128x128xbf16, #tpu.memory_space<vmem>>, %arg10: memref<1x128xf32, #tpu.memory_space<vmem>>, %arg11: memref<1x128x128xf32, #tpu.memory_space<vmem>>, %arg12: memref<1x4x128x128xbf16, #tpu.memory_space<vmem>>, %arg13: memref<128x128xf32, #tpu.memory_space<vmem>>) attributes {dimension_semantics = [#tpu.dimension_semantics<parallel>, #tpu.dimension_semantics<parallel>, #tpu.dimension_semantics<arbitrary>], iteration_bounds = array<i64: 2, 1, 1>, scalar_prefetch = 0 : i64, scratch_operands = 1 : i64, tpu.core_type = #tpu.core_type<tc>, window_params = [{transform_indices = @transform_0, window_bounds = array<i64: 1, 128, 128>}, {transform_indices = @transform_1, window_bounds = array<i64: 1, 128, 128>}, {transform_indices = @transform_2, window_bounds = array<i64: 1, 128, 128>}, {transform_indices = @transform_3, window_bounds = array<i64: 1, 1, 1, 128>}, {transform_indices = @transform_4, window_bounds = array<i64: 1, 3, 128, 128>}, {transform_indices = @transform_5, window_bounds = array<i64: 1, 3, 1, 128>}, {transform_indices = @transform_6, window_bounds = array<i64: 1, 128, 128>}, {pipeline_mode = #tpu.pipeline_mode<synchronous>, transform_indices = @transform_7, window_bounds = array<i64: 1, 128>}, {transform_indices = @transform_8, window_bounds = array<i64: 1, 128, 128>}, {transform_indices = @transform_9, window_bounds = array<i64: 1, 4, 128, 128>}]} {
    %c0_i32 = arith.constant 0 : i32
    %0 = arith.cmpi eq, %arg2, %c0_i32 : i32
    %1 = arith.extui %0 : i1 to i32
    %c0_i32_0 = arith.constant 0 : i32
    %2 = arith.cmpi ne, %1, %c0_i32_0 : i32
    scf.if %2 {
      %c0_82 = arith.constant 0 : index
      %c0_83 = arith.constant 0 : index
      %134 = vector.load %arg10[%c0_82, %c0_83] : memref<1x128xf32, #tpu.memory_space<vmem>>, vector<1x128xf32>
      %135 = vector.shape_cast %134 : vector<1x128xf32> to vector<1x128xf32>
      %136 = vector.broadcast %135 : vector<1x128xf32> to vector<128x128xf32>
      %c0_84 = arith.constant 0 : index
      %c0_85 = arith.constant 0 : index
      %137 = vector.load %arg13[%c0_84, %c0_85] : memref<128x128xf32, #tpu.memory_space<vmem>>, vector<128x128xf32>
      tpu.vector_store %arg13[%c0_84, %c0_85], %136 {strides = array<i32>} : memref<128x128xf32, #tpu.memory_space<vmem>>, vector<128x128xf32>,
    } else {
    }
    %c0 = arith.constant 0 : index
    %c0_1 = arith.constant 0 : index
    %c0_2 = arith.constant 0 : index
    %3 = vector.load %arg3[%c0, %c0_1, %c0_2] : memref<1x128x128xbf16, #tpu.memory_space<vmem>>, vector<1x128x128xbf16>
    %4 = vector.shape_cast %3 : vector<1x128x128xbf16> to vector<128x128xbf16>
    %c0_3 = arith.constant 0 : index
    %c0_4 = arith.constant 0 : index
    %c0_5 = arith.constant 0 : index
    %5 = vector.load %arg4[%c0_3, %c0_4, %c0_5] : memref<1x128x128xbf16, #tpu.memory_space<vmem>>, vector<1x128x128xbf16>
    %6 = vector.shape_cast %5 : vector<1x128x128xbf16> to vector<128x128xbf16>
    %c0_6 = arith.constant 0 : index
    %c0_7 = arith.constant 0 : index
    %c0_8 = arith.constant 0 : index
    %7 = vector.load %arg5[%c0_6, %c0_7, %c0_8] : memref<1x128x128xbf16, #tpu.memory_space<vmem>>, vector<1x128x128xbf16>
    %8 = vector.shape_cast %7 : vector<1x128x128xbf16> to vector<128x128xbf16>
    %c0_9 = arith.constant 0 : index
    %c0_10 = arith.constant 0 : index
    %c0_11 = arith.constant 0 : index
    %c0_12 = arith.constant 0 : index
    %9 = vector.load %arg7[%c0_9, %c0_10, %c0_11, %c0_12] : memref<1x3x128x128xbf16, #tpu.memory_space<vmem>>, vector<1x1x128x128xbf16>
    %10 = vector.shape_cast %9 : vector<1x1x128x128xbf16> to vector<128x128xbf16>
    %cst = arith.constant dense<0.000000e+00> : vector<128x128xf32>
    %11 = tpu.matmul %4, %10, %cst {dimension_numbers = #tpu.dot_dimension_numbers<[1], [0], [0], [1], [0, 0, 1, 1], [], []>} : vector<128x128xbf16>, vector<128x128xbf16>, vector<128x128xf32> -> vector<128x128xf32>
    %c0_13 = arith.constant 0 : index
    %c0_14 = arith.constant 0 : index
    %c0_15 = arith.constant 0 : index
    %c0_16 = arith.constant 0 : index
    %12 = vector.load %arg8[%c0_13, %c0_14, %c0_15, %c0_16] : memref<1x3x1x128xf32, #tpu.memory_space<vmem>>, vector<1x1x1x128xf32>
    %13 = vector.shape_cast %12 : vector<1x1x1x128xf32> to vector<1x128xf32>
    %14 = vector.broadcast %13 : vector<1x128xf32> to vector<128x128xf32>
    %15 = arith.addf %11, %14 : vector<128x128xf32>
    %16 = arith.truncf %15 : vector<128x128xf32> to vector<128x128xbf16>
    %c0_17 = arith.constant 0 : index
    %c1 = arith.constant 1 : index
    %c0_18 = arith.constant 0 : index
    %c0_19 = arith.constant 0 : index
    %17 = vector.load %arg7[%c0_17, %c1, %c0_18, %c0_19] : memref<1x3x128x128xbf16, #tpu.memory_space<vmem>>, vector<1x1x128x128xbf16>
    %18 = vector.shape_cast %17 : vector<1x1x128x128xbf16> to vector<128x128xbf16>
    %cst_20 = arith.constant dense<0.000000e+00> : vector<128x128xf32>
    %19 = tpu.matmul %6, %18, %cst_20 {dimension_numbers = #tpu.dot_dimension_numbers<[1], [0], [0], [1], [0, 0, 1, 1], [], []>} : vector<128x128xbf16>, vector<128x128xbf16>, vector<128x128xf32> -> vector<128x128xf32>
    %c0_21 = arith.constant 0 : index
    %c1_22 = arith.constant 1 : index
    %c0_23 = arith.constant 0 : index
    %c0_24 = arith.constant 0 : index
    %20 = vector.load %arg8[%c0_21, %c1_22, %c0_23, %c0_24] : memref<1x3x1x128xf32, #tpu.memory_space<vmem>>, vector<1x1x1x128xf32>
    %21 = vector.shape_cast %20 : vector<1x1x1x128xf32> to vector<1x128xf32>
    %22 = vector.broadcast %21 : vector<1x128xf32> to vector<128x128xf32>
    %23 = arith.addf %19, %22 : vector<128x128xf32>
    %24 = arith.truncf %23 : vector<128x128xf32> to vector<128x128xbf16>
    %c0_25 = arith.constant 0 : index
    %c2 = arith.constant 2 : index
    %c0_26 = arith.constant 0 : index
    %c0_27 = arith.constant 0 : index
    %25 = vector.load %arg7[%c0_25, %c2, %c0_26, %c0_27] : memref<1x3x128x128xbf16, #tpu.memory_space<vmem>>, vector<1x1x128x128xbf16>
    %26 = vector.shape_cast %25 : vector<1x1x128x128xbf16> to vector<128x128xbf16>
    %cst_28 = arith.constant dense<0.000000e+00> : vector<128x128xf32>
    %27 = tpu.matmul %8, %26, %cst_28 {dimension_numbers = #tpu.dot_dimension_numbers<[1], [0], [0], [1], [0, 0, 1, 1], [], []>} : vector<128x128xbf16>, vector<128x128xbf16>, vector<128x128xf32> -> vector<128x128xf32>
    %c0_29 = arith.constant 0 : index
    %c2_30 = arith.constant 2 : index
    %c0_31 = arith.constant 0 : index
    %c0_32 = arith.constant 0 : index
    %28 = vector.load %arg8[%c0_29, %c2_30, %c0_31, %c0_32] : memref<1x3x1x128xf32, #tpu.memory_space<vmem>>, vector<1x1x1x128xf32>
    %29 = vector.shape_cast %28 : vector<1x1x1x128xf32> to vector<1x128xf32>
    %30 = vector.broadcast %29 : vector<1x128xf32> to vector<128x128xf32>
    %31 = arith.addf %27, %30 : vector<128x128xf32>
    %32 = arith.truncf %31 : vector<128x128xf32> to vector<128x128xbf16>
    %c0_33 = arith.constant 0 : index
    %c0_34 = arith.constant 0 : index
    %c0_35 = arith.constant 0 : index
    %c0_36 = arith.constant 0 : index
    %33 = vector.load %arg6[%c0_33, %c0_34, %c0_35, %c0_36] : memref<1x1x1x128xf32, #tpu.memory_space<vmem>>, vector<1x1x1x128xf32>
    %34 = vector.shape_cast %33 : vector<1x1x1x128xf32> to vector<1x128xf32>
    %35 = vector.extract_strided_slice %16 {offsets = [0, 0], sizes = [128, 32], strides = [1, 1]} : vector<128x128xbf16> to vector<128x32xbf16>
    %36 = vector.extract_strided_slice %24 {offsets = [0, 0], sizes = [128, 32], strides = [1, 1]} : vector<128x128xbf16> to vector<128x32xbf16>
    %37 = vector.extract_strided_slice %32 {offsets = [0, 0], sizes = [128, 32], strides = [1, 1]} : vector<128x128xbf16> to vector<128x32xbf16>
    %cst_37 = arith.constant dense<0.000000e+00> : vector<128x128xf32>
    %38 = tpu.matmul %35, %36, %cst_37 {dimension_numbers = #tpu.dot_dimension_numbers<[1], [1], [0], [0], [0, 0, 1, 0], [], []>} : vector<128x32xbf16>, vector<128x32xbf16>, vector<128x128xf32> -> vector<128x128xf32>
    %39 = vector.broadcast %34 : vector<1x128xf32> to vector<128x128xf32>
    %40 = arith.addf %38, %39 : vector<128x128xf32>
    %cst_38 = arith.constant dense<0xFF800000> : vector<128xf32>
    %41 = vector.multi_reduction <maximumf>, %40, %cst_38 [1] : vector<128x128xf32> to vector<128xf32>
    %42 = vector.shape_cast %41 : vector<128xf32> to vector<128x1xf32>
    %43 = vector.broadcast %42 : vector<128x1xf32> to vector<128x128xf32>
    %44 = arith.subf %40, %43 : vector<128x128xf32>
    %45 = math.exp %44 : vector<128x128xf32>
    %cst_39 = arith.constant dense<0.000000e+00> : vector<128xf32>
    %46 = vector.multi_reduction <add>, %45, %cst_39 [1] : vector<128x128xf32> to vector<128xf32>
    %47 = vector.shape_cast %46 : vector<128xf32> to vector<128x1xf32>
    %cst_40 = arith.constant 1.000000e+00 : f32
    %48 = vector.broadcast %cst_40 : f32 to vector<128x1xf32>
    %49 = arith.divf %48, %47 : vector<128x1xf32>
    %50 = vector.broadcast %49 : vector<128x1xf32> to vector<128x128xf32>
    %51 = arith.mulf %45, %50 : vector<128x128xf32>
    %52 = arith.truncf %51 : vector<128x128xf32> to vector<128x128xbf16>
    %c0_41 = arith.constant 0 : index
    %c0_42 = arith.constant 0 : index
    %c0_43 = arith.constant 0 : index
    %c0_44 = arith.constant 0 : index
    %53 = vector.load %arg12[%c0_41, %c0_42, %c0_43, %c0_44] : memref<1x4x128x128xbf16, #tpu.memory_space<vmem>>, vector<1x1x128x128xbf16>
    %54 = vector.shape_cast %53 : vector<1x1x128x128xbf16> to vector<128x128xbf16>
    %55 = vector.shape_cast %52 : vector<128x128xbf16> to vector<1x1x128x128xbf16>
    tpu.vector_store %arg12[%c0_41, %c0_42, %c0_43, %c0_44], %55 {strides = array<i32>} : memref<1x4x128x128xbf16, #tpu.memory_space<vmem>>, vector<1x1x128x128xbf16>,
    %cst_45 = arith.constant dense<0.000000e+00> : vector<128x32xf32>
    %56 = tpu.matmul %52, %37, %cst_45 {dimension_numbers = #tpu.dot_dimension_numbers<[1], [0], [0], [1], [0, 0, 1, 1], [], []>} : vector<128x128xbf16>, vector<128x32xbf16>, vector<128x32xf32> -> vector<128x32xf32>
    %57 = vector.extract_strided_slice %16 {offsets = [0, 32], sizes = [128, 32], strides = [1, 1]} : vector<128x128xbf16> to vector<128x32xbf16>
    %58 = vector.extract_strided_slice %24 {offsets = [0, 32], sizes = [128, 32], strides = [1, 1]} : vector<128x128xbf16> to vector<128x32xbf16>
    %59 = vector.extract_strided_slice %32 {offsets = [0, 32], sizes = [128, 32], strides = [1, 1]} : vector<128x128xbf16> to vector<128x32xbf16>
    %cst_46 = arith.constant dense<0.000000e+00> : vector<128x128xf32>
    %60 = tpu.matmul %57, %58, %cst_46 {dimension_numbers = #tpu.dot_dimension_numbers<[1], [1], [0], [0], [0, 0, 1, 0], [], []>} : vector<128x32xbf16>, vector<128x32xbf16>, vector<128x128xf32> -> vector<128x128xf32>
    %61 = vector.broadcast %34 : vector<1x128xf32> to vector<128x128xf32>
    %62 = arith.addf %60, %61 : vector<128x128xf32>
    %cst_47 = arith.constant dense<0xFF800000> : vector<128xf32>
    %63 = vector.multi_reduction <maximumf>, %62, %cst_47 [1] : vector<128x128xf32> to vector<128xf32>
    %64 = vector.shape_cast %63 : vector<128xf32> to vector<128x1xf32>
    %65 = vector.broadcast %64 : vector<128x1xf32> to vector<128x128xf32>
    %66 = arith.subf %62, %65 : vector<128x128xf32>
    %67 = math.exp %66 : vector<128x128xf32>
    %cst_48 = arith.constant dense<0.000000e+00> : vector<128xf32>
    %68 = vector.multi_reduction <add>, %67, %cst_48 [1] : vector<128x128xf32> to vector<128xf32>
    %69 = vector.shape_cast %68 : vector<128xf32> to vector<128x1xf32>
    %cst_49 = arith.constant 1.000000e+00 : f32
    %70 = vector.broadcast %cst_49 : f32 to vector<128x1xf32>
    %71 = arith.divf %70, %69 : vector<128x1xf32>
    %72 = vector.broadcast %71 : vector<128x1xf32> to vector<128x128xf32>
    %73 = arith.mulf %67, %72 : vector<128x128xf32>
    %74 = arith.truncf %73 : vector<128x128xf32> to vector<128x128xbf16>
    %c0_50 = arith.constant 0 : index
    %c1_51 = arith.constant 1 : index
    %c0_52 = arith.constant 0 : index
    %c0_53 = arith.constant 0 : index
    %75 = vector.load %arg12[%c0_50, %c1_51, %c0_52, %c0_53] : memref<1x4x128x128xbf16, #tpu.memory_space<vmem>>, vector<1x1x128x128xbf16>
    %76 = vector.shape_cast %75 : vector<1x1x128x128xbf16> to vector<128x128xbf16>
    %77 = vector.shape_cast %74 : vector<128x128xbf16> to vector<1x1x128x128xbf16>
    tpu.vector_store %arg12[%c0_50, %c1_51, %c0_52, %c0_53], %77 {strides = array<i32>} : memref<1x4x128x128xbf16, #tpu.memory_space<vmem>>, vector<1x1x128x128xbf16>,
    %cst_54 = arith.constant dense<0.000000e+00> : vector<128x32xf32>
    %78 = tpu.matmul %74, %59, %cst_54 {dimension_numbers = #tpu.dot_dimension_numbers<[1], [0], [0], [1], [0, 0, 1, 1], [], []>} : vector<128x128xbf16>, vector<128x32xbf16>, vector<128x32xf32> -> vector<128x32xf32>
    %79 = vector.extract_strided_slice %16 {offsets = [0, 64], sizes = [128, 32], strides = [1, 1]} : vector<128x128xbf16> to vector<128x32xbf16>
    %80 = vector.extract_strided_slice %24 {offsets = [0, 64], sizes = [128, 32], strides = [1, 1]} : vector<128x128xbf16> to vector<128x32xbf16>
    %81 = vector.extract_strided_slice %32 {offsets = [0, 64], sizes = [128, 32], strides = [1, 1]} : vector<128x128xbf16> to vector<128x32xbf16>
    %cst_55 = arith.constant dense<0.000000e+00> : vector<128x128xf32>
    %82 = tpu.matmul %79, %80, %cst_55 {dimension_numbers = #tpu.dot_dimension_numbers<[1], [1], [0], [0], [0, 0, 1, 0], [], []>} : vector<128x32xbf16>, vector<128x32xbf16>, vector<128x128xf32> -> vector<128x128xf32>
    %83 = vector.broadcast %34 : vector<1x128xf32> to vector<128x128xf32>
    %84 = arith.addf %82, %83 : vector<128x128xf32>
    %cst_56 = arith.constant dense<0xFF800000> : vector<128xf32>
    %85 = vector.multi_reduction <maximumf>, %84, %cst_56 [1] : vector<128x128xf32> to vector<128xf32>
    %86 = vector.shape_cast %85 : vector<128xf32> to vector<128x1xf32>
    %87 = vector.broadcast %86 : vector<128x1xf32> to vector<128x128xf32>
    %88 = arith.subf %84, %87 : vector<128x128xf32>
    %89 = math.exp %88 : vector<128x128xf32>
    %cst_57 = arith.constant dense<0.000000e+00> : vector<128xf32>
    %90 = vector.multi_reduction <add>, %89, %cst_57 [1] : vector<128x128xf32> to vector<128xf32>
    %91 = vector.shape_cast %90 : vector<128xf32> to vector<128x1xf32>
    %cst_58 = arith.constant 1.000000e+00 : f32
    %92 = vector.broadcast %cst_58 : f32 to vector<128x1xf32>
    %93 = arith.divf %92, %91 : vector<128x1xf32>
    %94 = vector.broadcast %93 : vector<128x1xf32> to vector<128x128xf32>
    %95 = arith.mulf %89, %94 : vector<128x128xf32>
    %96 = arith.truncf %95 : vector<128x128xf32> to vector<128x128xbf16>
    %c0_59 = arith.constant 0 : index
    %c2_60 = arith.constant 2 : index
    %c0_61 = arith.constant 0 : index
    %c0_62 = arith.constant 0 : index
    %97 = vector.load %arg12[%c0_59, %c2_60, %c0_61, %c0_62] : memref<1x4x128x128xbf16, #tpu.memory_space<vmem>>, vector<1x1x128x128xbf16>
    %98 = vector.shape_cast %97 : vector<1x1x128x128xbf16> to vector<128x128xbf16>
    %99 = vector.shape_cast %96 : vector<128x128xbf16> to vector<1x1x128x128xbf16>
    tpu.vector_store %arg12[%c0_59, %c2_60, %c0_61, %c0_62], %99 {strides = array<i32>} : memref<1x4x128x128xbf16, #tpu.memory_space<vmem>>, vector<1x1x128x128xbf16>,
    %cst_63 = arith.constant dense<0.000000e+00> : vector<128x32xf32>
    %100 = tpu.matmul %96, %81, %cst_63 {dimension_numbers = #tpu.dot_dimension_numbers<[1], [0], [0], [1], [0, 0, 1, 1], [], []>} : vector<128x128xbf16>, vector<128x32xbf16>, vector<128x32xf32> -> vector<128x32xf32>
    %101 = vector.extract_strided_slice %16 {offsets = [0, 96], sizes = [128, 32], strides = [1, 1]} : vector<128x128xbf16> to vector<128x32xbf16>
    %102 = vector.extract_strided_slice %24 {offsets = [0, 96], sizes = [128, 32], strides = [1, 1]} : vector<128x128xbf16> to vector<128x32xbf16>
    %103 = vector.extract_strided_slice %32 {offsets = [0, 96], sizes = [128, 32], strides = [1, 1]} : vector<128x128xbf16> to vector<128x32xbf16>
    %cst_64 = arith.constant dense<0.000000e+00> : vector<128x128xf32>
    %104 = tpu.matmul %101, %102, %cst_64 {dimension_numbers = #tpu.dot_dimension_numbers<[1], [1], [0], [0], [0, 0, 1, 0], [], []>} : vector<128x32xbf16>, vector<128x32xbf16>, vector<128x128xf32> -> vector<128x128xf32>
    %105 = vector.broadcast %34 : vector<1x128xf32> to vector<128x128xf32>
    %106 = arith.addf %104, %105 : vector<128x128xf32>
    %cst_65 = arith.constant dense<0xFF800000> : vector<128xf32>
    %107 = vector.multi_reduction <maximumf>, %106, %cst_65 [1] : vector<128x128xf32> to vector<128xf32>
    %108 = vector.shape_cast %107 : vector<128xf32> to vector<128x1xf32>
    %109 = vector.broadcast %108 : vector<128x1xf32> to vector<128x128xf32>
    %110 = arith.subf %106, %109 : vector<128x128xf32>
    %111 = math.exp %110 : vector<128x128xf32>
    %cst_66 = arith.constant dense<0.000000e+00> : vector<128xf32>
    %112 = vector.multi_reduction <add>, %111, %cst_66 [1] : vector<128x128xf32> to vector<128xf32>
    %113 = vector.shape_cast %112 : vector<128xf32> to vector<128x1xf32>
    %cst_67 = arith.constant 1.000000e+00 : f32
    %114 = vector.broadcast %cst_67 : f32 to vector<128x1xf32>
    %115 = arith.divf %114, %113 : vector<128x1xf32>
    %116 = vector.broadcast %115 : vector<128x1xf32> to vector<128x128xf32>
    %117 = arith.mulf %111, %116 : vector<128x128xf32>
    %118 = arith.truncf %117 : vector<128x128xf32> to vector<128x128xbf16>
    %c0_68 = arith.constant 0 : index
    %c3 = arith.constant 3 : index
    %c0_69 = arith.constant 0 : index
    %c0_70 = arith.constant 0 : index
    %119 = vector.load %arg12[%c0_68, %c3, %c0_69, %c0_70] : memref<1x4x128x128xbf16, #tpu.memory_space<vmem>>, vector<1x1x128x128xbf16>
    %120 = vector.shape_cast %119 : vector<1x1x128x128xbf16> to vector<128x128xbf16>
    %121 = vector.shape_cast %118 : vector<128x128xbf16> to vector<1x1x128x128xbf16>
    tpu.vector_store %arg12[%c0_68, %c3, %c0_69, %c0_70], %121 {strides = array<i32>} : memref<1x4x128x128xbf16, #tpu.memory_space<vmem>>, vector<1x1x128x128xbf16>,
    %cst_71 = arith.constant dense<0.000000e+00> : vector<128x32xf32>
    %122 = tpu.matmul %118, %103, %cst_71 {dimension_numbers = #tpu.dot_dimension_numbers<[1], [0], [0], [1], [0, 0, 1, 1], [], []>} : vector<128x128xbf16>, vector<128x32xbf16>, vector<128x32xf32> -> vector<128x32xf32>
    %123 = tpu.concatenate %56, %78, %100, %122 in 1 : vector<128x32xf32>, vector<128x32xf32>, vector<128x32xf32>, vector<128x32xf32> -> vector<128x128xf32>
    %124 = arith.truncf %123 : vector<128x128xf32> to vector<128x128xbf16>
    %c0_72 = arith.constant 0 : index
    %c0_73 = arith.constant 0 : index
    %125 = vector.load %arg13[%c0_72, %c0_73] : memref<128x128xf32, #tpu.memory_space<vmem>>, vector<128x128xf32>
    %c0_74 = arith.constant 0 : index
    %c0_75 = arith.constant 0 : index
    %c0_76 = arith.constant 0 : index
    %126 = vector.load %arg9[%c0_74, %c0_75, %c0_76] : memref<1x128x128xbf16, #tpu.memory_space<vmem>>, vector<1x128x128xbf16>
    %127 = vector.shape_cast %126 : vector<1x128x128xbf16> to vector<128x128xbf16>
    %cst_77 = arith.constant dense<0.000000e+00> : vector<128x128xf32>
    %128 = tpu.matmul %124, %127, %cst_77 {dimension_numbers = #tpu.dot_dimension_numbers<[1], [0], [0], [1], [0, 0, 1, 1], [], []>} : vector<128x128xbf16>, vector<128x128xbf16>, vector<128x128xf32> -> vector<128x128xf32>
    %129 = arith.addf %125, %128 : vector<128x128xf32>
    %c0_78 = arith.constant 0 : index
    %c0_79 = arith.constant 0 : index
    %130 = vector.load %arg13[%c0_78, %c0_79] : memref<128x128xf32, #tpu.memory_space<vmem>>, vector<128x128xf32>
    tpu.vector_store %arg13[%c0_78, %c0_79], %129 {strides = array<i32>} : memref<128x128xf32, #tpu.memory_space<vmem>>, vector<128x128xf32>,
    %c0_i32_80 = arith.constant 0 : i32
    %131 = arith.cmpi eq, %arg2, %c0_i32_80 : i32
    %132 = arith.extui %131 : i1 to i32
    %c0_i32_81 = arith.constant 0 : i32
    %133 = arith.cmpi ne, %132, %c0_i32_81 : i32
    scf.if %133 {
      %c0_82 = arith.constant 0 : index
      %c0_83 = arith.constant 0 : index
      %134 = vector.load %arg13[%c0_82, %c0_83] : memref<128x128xf32, #tpu.memory_space<vmem>>, vector<128x128xf32>
      %c0_84 = arith.constant 0 : index
      %c0_85 = arith.constant 0 : index
      %c0_86 = arith.constant 0 : index
      %135 = vector.load %arg11[%c0_84, %c0_85, %c0_86] : memref<1x128x128xf32, #tpu.memory_space<vmem>>, vector<1x128x128xf32>
      %136 = vector.shape_cast %135 : vector<1x128x128xf32> to vector<128x128xf32>
      %137 = vector.shape_cast %134 : vector<128x128xf32> to vector<1x128x128xf32>
      tpu.vector_store %arg11[%c0_84, %c0_85, %c0_86], %137 {strides = array<i32>} : memref<1x128x128xf32, #tpu.memory_space<vmem>>, vector<1x128x128xf32>,
    } else {
    }
    return
  }
  func.func @transform_0(%arg0: i32, %arg1: i32, %arg2: i32) -> (i32, i32, i32) {
    %c0_i32 = arith.constant 0 : i32
    %c0_i32_0 = arith.constant 0 : i32
    return %arg0, %arg1, %c0_i32 : i32, i32, i32
  }
  func.func @transform_1(%arg0: i32, %arg1: i32, %arg2: i32) -> (i32, i32, i32) {
    %c0_i32 = arith.constant 0 : i32
    %c0_i32_0 = arith.constant 0 : i32
    %c0_i32_1 = arith.constant 0 : i32
    return %arg0, %c0_i32, %c0_i32_0 : i32, i32, i32
  }
  func.func @transform_2(%arg0: i32, %arg1: i32, %arg2: i32) -> (i32, i32, i32) {
    %c0_i32 = arith.constant 0 : i32
    %c0_i32_0 = arith.constant 0 : i32
    %c0_i32_1 = arith.constant 0 : i32
    return %arg0, %c0_i32, %c0_i32_0 : i32, i32, i32
  }
  func.func @transform_3(%arg0: i32, %arg1: i32, %arg2: i32) -> (i32, i32, i32, i32) {
    %c0_i32 = arith.constant 0 : i32
    %c0_i32_0 = arith.constant 0 : i32
    %c0_i32_1 = arith.constant 0 : i32
    %c0_i32_2 = arith.constant 0 : i32
    return %arg0, %c0_i32, %c0_i32_0, %c0_i32_1 : i32, i32, i32, i32
  }
  func.func @transform_4(%arg0: i32, %arg1: i32, %arg2: i32) -> (i32, i32, i32, i32) {
    %c0_i32 = arith.constant 0 : i32
    %c0_i32_0 = arith.constant 0 : i32
    %c0_i32_1 = arith.constant 0 : i32
    %c0_i32_2 = arith.constant 0 : i32
    return %arg2, %c0_i32, %c0_i32_0, %c0_i32_1 : i32, i32, i32, i32
  }
  func.func @transform_5(%arg0: i32, %arg1: i32, %arg2: i32) -> (i32, i32, i32, i32) {
    %c0_i32 = arith.constant 0 : i32
    %c0_i32_0 = arith.constant 0 : i32
    %c0_i32_1 = arith.constant 0 : i32
    %c0_i32_2 = arith.constant 0 : i32
    return %arg2, %c0_i32, %c0_i32_0, %c0_i32_1 : i32, i32, i32, i32
  }
  func.func @transform_6(%arg0: i32, %arg1: i32, %arg2: i32) -> (i32, i32, i32) {
    %c0_i32 = arith.constant 0 : i32
    %c0_i32_0 = arith.constant 0 : i32
    %c0_i32_1 = arith.constant 0 : i32
    return %arg2, %c0_i32, %c0_i32_0 : i32, i32, i32
  }
  func.func @transform_7(%arg0: i32, %arg1: i32, %arg2: i32) -> (i32, i32) {
    %c0_i32 = arith.constant 0 : i32
    %c0_i32_0 = arith.constant 0 : i32
    %c0_i32_1 = arith.constant 0 : i32
    return %c0_i32, %c0_i32_0 : i32, i32
  }
  func.func @transform_8(%arg0: i32, %arg1: i32, %arg2: i32) -> (i32, i32, i32) {
    %c0_i32 = arith.constant 0 : i32
    %c0_i32_0 = arith.constant 0 : i32
    return %arg0, %arg1, %c0_i32 : i32, i32, i32
  }
  func.func @transform_9(%arg0: i32, %arg1: i32, %arg2: i32) -> (i32, i32, i32, i32) {
    %c0_i32 = arith.constant 0 : i32
    %c0_i32_0 = arith.constant 0 : i32
    return %arg0, %arg2, %arg1, %c0_i32 : i32, i32, i32, i32
  }
}

</mosaic_0001>

<llo_original>
// kernel: tpu_custom_call.1
$region0: #{tpu_custom_call.1}
  #allocation0 [shape = 'u32[]', space=smem, size = 0x4, offset = 0x4, fixed_abs, tag = 'smem constant byte address 0x4 - core index']
  #allocation1 [shape = 'u32[72,128]{1,0:T(1,128)}', space=vmem, size = 0x9000, scoped, tag = 'internal scratch']
  #allocation2 [shape = 'f32[128,128]{1,0:T(8,128)}', space=vmem, size = 0x10000, scoped, tag = 'scratch operand']
  %s0 = inlined_call_operand.hbm [shape: bf16[2,128,128], index: 0, kind: input, shape index: {}]
  %s1 = inlined_call_operand.hbm [shape: bf16[2,128,128], index: 1, kind: input, shape index: {}]
  %s2 = inlined_call_operand.hbm [shape: bf16[2,128,128], index: 2, kind: input, shape index: {}]
  %s3 = inlined_call_operand.hbm [shape: f32[2,1,1,128], index: 3, kind: input, shape index: {}]
  %s4 = inlined_call_operand.hbm [shape: bf16[1,3,128,128], index: 4, kind: input, shape index: {}]
  %s5 = inlined_call_operand.vmem [shape: f32[1,3,1,128], index: 5, kind: input, shape index: {}]
  %s6 = inlined_call_operand.hbm [shape: bf16[1,128,128], index: 6, kind: input, shape index: {}]
  %s7 = inlined_call_operand.vmem [shape: f32[1,128], index: 7, kind: input, shape index: {}]
  %s8 = inlined_call_operand.hbm [shape: f32[2,128,128], index: 8, kind: output, shape index: {0}]
  %s9 = inlined_call_operand.hbm [shape: bf16[2,4,128,128], index: 9, kind: output, shape index: {1}]
  %10 = xla_tuple %s8, %s9
  %s11 = sld [smem:[#allocation0]]
  $region105: #{tpu_custom_call.1} parent=0
    _
  %s13 = ssub.s32 1, %s11
  %s14 = scalar_select 0, %s13, %s11
  $region1: #{tpu_custom_call.1} parent=0
    #allocation3 [shape = 'u8[65536]{0}', space=vmem, size = 0x10000, scoped, tag = 'input window, operand 0']
    #allocation4 [shape = 's32[2]{0}', space=sflag, size = 0x8, scoped, tag = 'scoped memory for tpu_custom_call.1']
    #allocation5 [shape = 's32[2]{0}', space=sflag, size = 0x8, scoped, tag = 'scoped memory for tpu_custom_call.1']
    #allocation6 [shape = 'u8[65536]{0}', space=vmem, size = 0x10000, scoped, tag = 'input window, operand 1']
    #allocation7 [shape = 's32[2]{0}', space=sflag, size = 0x8, scoped, tag = 'scoped memory for tpu_custom_call.1']
    #allocation8 [shape = 'u8[65536]{0}', space=vmem, size = 0x10000, scoped, tag = 'input window, operand 2']
    #allocation9 [shape = 'u8[1024]{0}', space=vmem, size = 0x400, scoped, tag = 'input window, operand 3']
    #allocation10 [shape = 's32[2]{0}', space=sflag, size = 0x8, scoped, tag = 'scoped memory for tpu_custom_call.1']
    #allocation11 [shape = 'u8[98304]{0}', space=vmem, size = 0x18000, scoped, tag = 'input window, operand 4, single buffered']
    #allocation12 [shape = 'u8[32768]{0}', space=vmem, size = 0x8000, scoped, tag = 'input window, operand 6, single buffered']
    #allocation13 [shape = 's32[1]{0}', space=sflag, size = 0x4, scoped, tag = 'scoped memory for tpu_custom_call.1']
    #allocation14 [shape = 'u8[131072]{0}', space=vmem, size = 0x20000, scoped, tag = 'output window, operand 0']
    #allocation15 [shape = 'u8[262144]{0}', space=vmem, size = 0x40000, scoped, tag = 'output window, operand 1']
    #allocation16 [shape = 's32[2]{0}', space=sflag, size = 0x8, scoped, tag = 'scoped memory for tpu_custom_call.1']
    %15 = vsyncpa [#allocation4], 0
    %s16 = scalar_lea.sflag [#allocation4], 1
    %17 = vsyncpa %s16, 0
    %18 = vsyncpa [#allocation7], 0
    %s19 = scalar_lea.sflag [#allocation7], 1
    %20 = vsyncpa %s19, 0
    %21 = vsyncpa [#allocation10], 0
    %s22 = scalar_lea.sflag [#allocation10], 1
    %23 = vsyncpa %s22, 0
    %24 = vsyncpa [#allocation13], 0
    %25 = vsyncpa [#allocation5], 0
    %s26 = scalar_lea.sflag [#allocation5], 1
    %27 = vsyncpa %s26, 0
    %28 = vsyncpa [#allocation16], 0
    %s29 = scalar_lea.sflag [#allocation16], 1
    %30 = vsyncpa %s29, 0
    loop: start=0, step=1, limit=4
    $region2: #{tpu_custom_call.1} parent=1 // loop_pre_header
      _
    $region3: #{tpu_custom_call.1} parent=1 // loop_header
      %s32 = sphi 0, %s36
      %p33 = scmp.ge.s32.totalorder %s32, 4
      %s39 = sphi 0, %s58
      %s40 = sphi 0, %s54
      %s41 = sphi 0, %s50
      %s42 = sphi 0, %s39
      %s43 = sphi 0, %s40
      %s44 = sphi 0, %s41
      %s45 = sphi 0, %s42
      %s46 = sphi 0, %s43
      %s47 = sphi 0, %s44
      %s63 = sphi 0, %s65
      %s66 = sphi 0, %s63
      %s67 = sphi 0, %s66
      %s83 = sphi 0, %s67
      %s89 = sphi 0, %s91
      %s92 = sphi 0, %s89
      %s93 = sphi 0, %s92
      %s109 = sphi 0, %s93
      %s115 = sphi 0, %s117
      %s118 = sphi 0, %s115
      %s119 = sphi 0, %s118
      %s135 = sphi 0, %s119
      %s141 = sphi 0, %s143
      %s144 = sphi 0, %s141
      %s145 = sphi 0, %s144
      %s161 = sphi 0, %s145
      %s167 = sphi 0, %s169
      %s170 = sphi 0, %s167
      %s171 = sphi 0, %s170
      %s187 = sphi 0, %s171
      %s193 = sphi 0, %s195
      %s196 = sphi 0, %s193
      %s197 = sphi 0, %s196
      %s213 = sphi 0, %s197
      %s219 = sphi 0, %s221
      %s222 = sphi 0, %s219
      %s223 = sphi 0, %s222
      %s239 = sphi 0, %s223
      %s243 = sphi 0, %s243
      %s245 = sphi 0, %s243
      %s246 = sphi 0, %s245
      %s260 = sphi 0, %s246
      %s268 = sphi 0, %s270
      %s271 = sphi 0, %s268
      %s272 = sphi 0, %s271
      %s288 = sphi 0, %s272
      %s298 = sphi 0, %s300
      %s301 = sphi 0, %s298
      %s302 = sphi 0, %s301
      %s318 = sphi 0, %s302
    $region4: #{tpu_custom_call.1} parent=1 // loop_header_branch
      %35 = sbr.rel (%p33) target = $region8
    $region5: #{tpu_custom_call.1} parent=1 // loop_body
      %s37 = ssub.s32 %s32, 1
      %s38 = ssub.s32 %s32, 2
      %s48 = sadd.s32 1, %s41
      %p49 = scmp.ge.s32.totalorder %s48, 1
      %s50 = scalar_select %p49, 0, %s48
      %s51 = sadd.s32 1, %s40
      %s52 = scalar_select %p49, %s51, %s40
      %p53 = scmp.ge.s32.totalorder %s52, 1
      %s54 = scalar_select %p53, 0, %s52
      %s55 = sadd.s32 1, %s39
      %s56 = scalar_select %p53, %s55, %s39
      %p57 = scmp.ge.s32.totalorder %s56, 2
      %s58 = scalar_select %p57, 0, %s56
      %s59 = ssub.s32 %s39, %s58
      %s60 = ssub.s32 %s40, %s54
      %s61 = sor.u32 %s59, %s60
      %p62 = scmp.eq.s32.totalorder %s61, 0
      %s64 = sadd.s32 %s63, 1
      %s65 = scalar_select %p62, %s63, %s64
      %p68 = pneg %p62
      %p69 = scmp.eq.s32.totalorder %s32, 1
      %p70 = por %p68, %p69
      %p71 = scmp.ne.s32.totalorder %s63, %s66
      %p72 = scmp.eq.s32.totalorder %s32, 0
      %p73 = por %p71, %p72
      %p74 = scmp.ne.s32.totalorder %s63, %s66
      %p75 = scmp.eq.s32.totalorder %s37, 1
      %p76 = por %p74, %p75
      %p77 = scmp.ne.s32.totalorder %s66, %s67
      %p78 = scmp.eq.s32.totalorder %s37, 0
      %p79 = por %p77, %p78
      %p80 = scmp.ne.s32.totalorder %s66, %s67
      %p81 = scmp.eq.s32.totalorder %s38, 1
      %p82 = por %p80, %p81
      %p84 = scmp.ne.s32.totalorder %s67, %s83
      %p85 = scmp.eq.s32.totalorder %s38, 0
      %p86 = por %p84, %p85
      %s87 = ssub.s32 %s39, %s58
      %p88 = scmp.eq.s32.totalorder %s87, 0
      %s90 = sadd.s32 %s89, 1
      %s91 = scalar_select %p88, %s89, %s90
      %p94 = pneg %p88
      %p95 = scmp.eq.s32.totalorder %s32, 1
      %p96 = por %p94, %p95
      %p97 = scmp.ne.s32.totalorder %s89, %s92
      %p98 = scmp.eq.s32.totalorder %s32, 0
      %p99 = por %p97, %p98
      %p100 = scmp.ne.s32.totalorder %s89, %s92
      %p101 = scmp.eq.s32.totalorder %s37, 1
      %p102 = por %p100, %p101
      %p103 = scmp.ne.s32.totalorder %s92, %s93
      %p104 = scmp.eq.s32.totalorder %s37, 0
      %p105 = por %p103, %p104
      %p106 = scmp.ne.s32.totalorder %s92, %s93
      %p107 = scmp.eq.s32.totalorder %s38, 1
      %p108 = por %p106, %p107
      %p110 = scmp.ne.s32.totalorder %s93, %s109
      %p111 = scmp.eq.s32.totalorder %s38, 0
      %p112 = por %p110, %p111
      %s113 = ssub.s32 %s39, %s58
      %p114 = scmp.eq.s32.totalorder %s113, 0
      %s116 = sadd.s32 %s115, 1
      %s117 = scalar_select %p114, %s115, %s116
      %p120 = pneg %p114
      %p121 = scmp.eq.s32.totalorder %s32, 1
      %p122 = por %p120, %p121
      %p123 = scmp.ne.s32.totalorder %s115, %s118
      %p124 = scmp.eq.s32.totalorder %s32, 0
      %p125 = por %p123, %p124
      %p126 = scmp.ne.s32.totalorder %s115, %s118
      %p127 = scmp.eq.s32.totalorder %s37, 1
      %p128 = por %p126, %p127
      %p129 = scmp.ne.s32.totalorder %s118, %s119
      %p130 = scmp.eq.s32.totalorder %s37, 0
      %p131 = por %p129, %p130
      %p132 = scmp.ne.s32.totalorder %s118, %s119
      %p133 = scmp.eq.s32.totalorder %s38, 1
      %p134 = por %p132, %p133
      %p136 = scmp.ne.s32.totalorder %s119, %s135
      %p137 = scmp.eq.s32.totalorder %s38, 0
      %p138 = por %p136, %p137
      %s139 = ssub.s32 %s39, %s58
      %p140 = scmp.eq.s32.totalorder %s139, 0
      %s142 = sadd.s32 %s141, 1
      %s143 = scalar_select %p140, %s141, %s142
      %p146 = pneg %p140
      %p147 = scmp.eq.s32.totalorder %s32, 1
      %p148 = por %p146, %p147
      %p149 = scmp.ne.s32.totalorder %s141, %s144
      %p150 = scmp.eq.s32.totalorder %s32, 0
      %p151 = por %p149, %p150
      %p152 = scmp.ne.s32.totalorder %s141, %s144
      %p153 = scmp.eq.s32.totalorder %s37, 1
      %p154 = por %p152, %p153
      %p155 = scmp.ne.s32.totalorder %s144, %s145
      %p156 = scmp.eq.s32.totalorder %s37, 0
      %p157 = por %p155, %p156
      %p158 = scmp.ne.s32.totalorder %s144, %s145
      %p159 = scmp.eq.s32.totalorder %s38, 1
      %p160 = por %p158, %p159
      %p162 = scmp.ne.s32.totalorder %s145, %s161
      %p163 = scmp.eq.s32.totalorder %s38, 0
      %p164 = por %p162, %p163
      %s165 = ssub.s32 %s41, %s50
      %p166 = scmp.eq.s32.totalorder %s165, 0
      %s168 = sadd.s32 %s167, 1
      %s169 = scalar_select %p166, %s167, %s168
      %p172 = pneg %p166
      %p173 = scmp.eq.s32.totalorder %s32, 1
      %p174 = por %p172, %p173
      %p175 = scmp.ne.s32.totalorder %s167, %s170
      %p176 = scmp.eq.s32.totalorder %s32, 0
      %p177 = por %p175, %p176
      %p178 = scmp.ne.s32.totalorder %s167, %s170
      %p179 = scmp.eq.s32.totalorder %s37, 1
      %p180 = por %p178, %p179
      %p181 = scmp.ne.s32.totalorder %s170, %s171
      %p182 = scmp.eq.s32.totalorder %s37, 0
      %p183 = por %p181, %p182
      %p184 = scmp.ne.s32.totalorder %s170, %s171
      %p185 = scmp.eq.s32.totalorder %s38, 1
      %p186 = por %p184, %p185
      %p188 = scmp.ne.s32.totalorder %s171, %s187
      %p189 = scmp.eq.s32.totalorder %s38, 0
      %p190 = por %p188, %p189
      %s191 = ssub.s32 %s41, %s50
      %p192 = scmp.eq.s32.totalorder %s191, 0
      %s194 = sadd.s32 %s193, 1
      %s195 = scalar_select %p192, %s193, %s194
      %p198 = pneg %p192
      %p199 = scmp.eq.s32.totalorder %s32, 1
      %p200 = por %p198, %p199
      %p201 = scmp.ne.s32.totalorder %s193, %s196
      %p202 = scmp.eq.s32.totalorder %s32, 0
      %p203 = por %p201, %p202
      %p204 = scmp.ne.s32.totalorder %s193, %s196
      %p205 = scmp.eq.s32.totalorder %s37, 1
      %p206 = por %p204, %p205
      %p207 = scmp.ne.s32.totalorder %s196, %s197
      %p208 = scmp.eq.s32.totalorder %s37, 0
      %p209 = por %p207, %p208
      %p210 = scmp.ne.s32.totalorder %s196, %s197
      %p211 = scmp.eq.s32.totalorder %s38, 1
      %p212 = por %p210, %p211
      %p214 = scmp.ne.s32.totalorder %s197, %s213
      %p215 = scmp.eq.s32.totalorder %s38, 0
      %p216 = por %p214, %p215
      %s217 = ssub.s32 %s41, %s50
      %p218 = scmp.eq.s32.totalorder %s217, 0
      %s220 = sadd.s32 %s219, 1
      %s221 = scalar_select %p218, %s219, %s220
      %p224 = pneg %p218
      %p225 = scmp.eq.s32.totalorder %s32, 1
      %p226 = por %p224, %p225
      %p227 = scmp.ne.s32.totalorder %s219, %s222
      %p228 = scmp.eq.s32.totalorder %s32, 0
      %p229 = por %p227, %p228
      %p230 = scmp.ne.s32.totalorder %s219, %s222
      %p231 = scmp.eq.s32.totalorder %s37, 1
      %p232 = por %p230, %p231
      %p233 = scmp.ne.s32.totalorder %s222, %s223
      %p234 = scmp.eq.s32.totalorder %s37, 0
      %p235 = por %p233, %p234
      %p236 = scmp.ne.s32.totalorder %s222, %s223
      %p237 = scmp.eq.s32.totalorder %s38, 1
      %p238 = por %p236, %p237
      %p240 = scmp.ne.s32.totalorder %s223, %s239
      %p241 = scmp.eq.s32.totalorder %s38, 0
      %p242 = por %p240, %p241
      %s244 = sadd.s32 %s243, 1
      %p247 = scmp.eq.s32.totalorder %s32, 1
      %p248 = scmp.ne.s32.totalorder %s243, %s245
      %p249 = scmp.eq.s32.totalorder %s32, 0
      %p250 = por %p248, %p249
      %p251 = scmp.ne.s32.totalorder %s243, %s245
      %p252 = scmp.eq.s32.totalorder %s37, 1
      %p253 = por %p251, %p252
      %p254 = scmp.ne.s32.totalorder %s245, %s246
      %p255 = scmp.eq.s32.totalorder %s37, 0
      %p256 = por %p254, %p255
      %p257 = scmp.ne.s32.totalorder %s245, %s246
      %p258 = scmp.eq.s32.totalorder %s38, 1
      %p259 = por %p257, %p258
      %p261 = scmp.ne.s32.totalorder %s246, %s260
      %p262 = scmp.eq.s32.totalorder %s38, 0
      %p263 = por %p261, %p262
      %s264 = ssub.s32 %s39, %s58
      %s265 = ssub.s32 %s40, %s54
      %s266 = sor.u32 %s264, %s265
      %p267 = scmp.eq.s32.totalorder %s266, 0
      %s269 = sadd.s32 %s268, 1
      %s270 = scalar_select %p267, %s268, %s269
      %p273 = pneg %p267
      %p274 = scmp.eq.s32.totalorder %s32, 1
      %p275 = por %p273, %p274
      %p276 = scmp.ne.s32.totalorder %s268, %s271
      %p277 = scmp.eq.s32.totalorder %s32, 0
      %p278 = por %p276, %p277
      %p279 = scmp.ne.s32.totalorder %s268, %s271
      %p280 = scmp.eq.s32.totalorder %s37, 1
      %p281 = por %p279, %p280
      %p282 = scmp.ne.s32.totalorder %s271, %s272
      %p283 = scmp.eq.s32.totalorder %s37, 0
      %p284 = por %p282, %p283
      %p285 = scmp.ne.s32.totalorder %s271, %s272
      %p286 = scmp.eq.s32.totalorder %s38, 1
      %p287 = por %p285, %p286
      %p289 = scmp.ne.s32.totalorder %s272, %s288
      %p290 = scmp.eq.s32.totalorder %s38, 0
      %p291 = por %p289, %p290
      %s292 = ssub.s32 %s39, %s58
      %s293 = ssub.s32 %s41, %s50
      %s294 = sor.u32 %s292, %s293
      %s295 = ssub.s32 %s40, %s54
      %s296 = sor.u32 %s294, %s295
      %p297 = scmp.eq.s32.totalorder %s296, 0
      %s299 = sadd.s32 %s298, 1
      %s300 = scalar_select %p297, %s298, %s299
      %p303 = pneg %p297
      %p304 = scmp.eq.s32.totalorder %s32, 1
      %p305 = por %p303, %p304
      %p306 = scmp.ne.s32.totalorder %s298, %s301
      %p307 = scmp.eq.s32.totalorder %s32, 0
      %p308 = por %p306, %p307
      %p309 = scmp.ne.s32.totalorder %s298, %s301
      %p310 = scmp.eq.s32.totalorder %s37, 1
      %p311 = por %p309, %p310
      %p312 = scmp.ne.s32.totalorder %s301, %s302
      %p313 = scmp.eq.s32.totalorder %s37, 0
      %p314 = por %p312, %p313
      %p315 = scmp.ne.s32.totalorder %s301, %s302
      %p316 = scmp.eq.s32.totalorder %s38, 1
      %p317 = por %p315, %p316
      %p319 = scmp.ne.s32.totalorder %s302, %s318
      %p320 = scmp.eq.s32.totalorder %s38, 0
      %p321 = por %p319, %p320
      %p322 = scmp.le.s32.totalorder 1, %s32
      %p323 = scmp.lt.s32.totalorder %s32, 3
      %p324 = pnand %p322, %p323
      %p325 = pneg %p324
      // Predicated region
      $region9: #{tpu_custom_call.1} parent=5 // pred_check
        _
      $region10: #{tpu_custom_call.1} parent=5 // pred_check_branch
        %327 = sbr.rel (%p324) target = $region12
      $region11: #{tpu_custom_call.1} parent=5 // pred_region
        %s328 = ssub.s32 %s32, 1
        // Predicated region
        $region13: #{tpu_custom_call.1} parent=11 // pred_check
          %p329 = pneg %p183
        $region14: #{tpu_custom_call.1} parent=11 // pred_check_branch
          %331 = sbr.rel (%p329) target = $region16
        $region15: #{tpu_custom_call.1} parent=11 // pred_region
          %333 = vsyncadd [#allocation10], 0
          %s334 = smul.addr %s44, 48
          %s335 = smul.addr %s334, 4
          %s336 = scalar_lea.hbm %s4, %s335
          %s337 = sshll.u32 %s336, 4
          %s338 = int_to_ptr.hbm [resolvable:$true] %s337
          %s339 = sshll.u32 [#allocation11], 4
          %s340 = int_to_ptr.vmem [resolvable:$true] %s339
          %345 = dma.hbm_to_vmem [thread:$0]  %s338, 3072, %s340, [#allocation10], 64, 64, 4
        $region16: #{tpu_custom_call.1} parent=11 // pred_fallthru
          _
        // Predicated region
        $region17: #{tpu_custom_call.1} parent=11 // pred_check
          %p346 = pneg %p209
        $region18: #{tpu_custom_call.1} parent=11 // pred_check_branch
          %348 = sbr.rel (%p346) target = $region20
        $region19: #{tpu_custom_call.1} parent=11 // pred_region
          %p349 = scmp.lt.s32.totalorder %s44, 0
          %s350 = scalar_select %p349, %s44, 0
          %s351 = smul.addr %s350, 3
          %s352 = scalar_lea.vmem %s5, %s351
        $region20: #{tpu_custom_call.1} parent=11 // pred_fallthru
          _
        // Predicated region
        $region21: #{tpu_custom_call.1} parent=11 // pred_check
          %p353 = pneg %p235
        $region22: #{tpu_custom_call.1} parent=11 // pred_check_branch
          %355 = sbr.rel (%p353) target = $region24
        $region23: #{tpu_custom_call.1} parent=11 // pred_region
          %357 = vsyncadd [#allocation13], 0
          %s358 = smul.addr %s44, 16
          %s359 = smul.addr %s358, 4
          %s360 = scalar_lea.hbm %s6, %s359
          %s361 = sshll.u32 %s360, 4
          %s362 = int_to_ptr.hbm [resolvable:$true] %s361
          %s363 = sshll.u32 [#allocation12], 4
          %s364 = int_to_ptr.vmem [resolvable:$true] %s363
          %369 = dma.hbm_to_vmem [thread:$0]  %s362, 1024, %s364, [#allocation13], 64, 64, 4
        $region24: #{tpu_custom_call.1} parent=11 // pred_fallthru
          _
        // Predicated region
        $region25: #{tpu_custom_call.1} parent=11 // pred_check
          %p370 = pneg %p256
        $region26: #{tpu_custom_call.1} parent=11 // pred_check_branch
          %372 = sbr.rel (%p370) target = $region28
        $region27: #{tpu_custom_call.1} parent=11 // pred_region
          _
        $region28: #{tpu_custom_call.1} parent=11 // pred_fallthru
          _
      $region12: #{tpu_custom_call.1} parent=5 // pred_fallthru
        _
      %p373 = scmp.lt.s32.totalorder %s32, 2
      // Predicated region
      $region29: #{tpu_custom_call.1} parent=5 // pred_check
        %p374 = pneg %p373
      $region30: #{tpu_custom_call.1} parent=5 // pred_check_branch
        %376 = sbr.rel (%p374) target = $region32
      $region31: #{tpu_custom_call.1} parent=5 // pred_region
        // Predicated region
        $region33: #{tpu_custom_call.1} parent=31 // pred_check
          %p377 = pneg %p73
        $region34: #{tpu_custom_call.1} parent=31 // pred_check_branch
          %379 = sbr.rel (%p377) target = $region36
        $region35: #{tpu_custom_call.1} parent=31 // pred_region
          %s380 = sand.u32 %s63, 1
          %s381 = scalar_lea.sflag [#allocation4], %s380
          %s382 = sand.u32 %s63, 1
          %s383 = smul.addr %s382, 64
          %s384 = scalar_lea.vmem [#allocation3], %s383
          %s385 = smul.u32 16, %s40
          %387 = vsyncadd %s381, 0
          %s388 = smul.addr %s39, 16
          %s389 = sadd.s32 %s385, %s388
          %s390 = smul.addr %s389, 4
          %s391 = scalar_lea.hbm %s0, %s390
          %s392 = sshll.u32 %s391, 4
          %s393 = int_to_ptr.hbm [resolvable:$true] %s392
          %s394 = sshll.u32 %s384, 4
          %s395 = int_to_ptr.vmem [resolvable:$true] %s394
          %400 = dma.hbm_to_vmem [thread:$0]  %s393, 1024, %s395, %s381, 64, 64, 4
        $region36: #{tpu_custom_call.1} parent=31 // pred_fallthru
          _
        // Predicated region
        $region37: #{tpu_custom_call.1} parent=31 // pred_check
          %p401 = pneg %p99
        $region38: #{tpu_custom_call.1} parent=31 // pred_check_branch
          %403 = sbr.rel (%p401) target = $region40
        $region39: #{tpu_custom_call.1} parent=31 // pred_region
          %s404 = sand.u32 %s32, 1
          %s405 = scalar_lea.sflag [#allocation7], %s404
          %s406 = sand.u32 %s89, 1
          %s407 = smul.addr %s406, 64
          %s408 = scalar_lea.vmem [#allocation6], %s407
          %410 = vsyncadd %s405, 0
          %s411 = smul.addr %s39, 16
          %s412 = smul.addr %s411, 4
          %s413 = scalar_lea.hbm %s1, %s412
          %s414 = sshll.u32 %s413, 4
          %s415 = int_to_ptr.hbm [resolvable:$true] %s414
          %s416 = sshll.u32 %s408, 4
          %s417 = int_to_ptr.vmem [resolvable:$true] %s416
          %422 = dma.hbm_to_vmem [thread:$0]  %s415, 1024, %s417, %s405, 64, 64, 4
        $region40: #{tpu_custom_call.1} parent=31 // pred_fallthru
          _
        // Predicated region
        $region41: #{tpu_custom_call.1} parent=31 // pred_check
          %p423 = pneg %p125
        $region42: #{tpu_custom_call.1} parent=31 // pred_check_branch
          %425 = sbr.rel (%p423) target = $region44
        $region43: #{tpu_custom_call.1} parent=31 // pred_region
          %s426 = sand.u32 %s32, 1
          %s427 = scalar_lea.sflag [#allocation7], %s426
          %s428 = sand.u32 %s115, 1
          %s429 = smul.addr %s428, 64
          %s430 = scalar_lea.vmem [#allocation8], %s429
          %432 = vsyncadd %s427, 0
          %s433 = smul.addr %s39, 16
          %s434 = smul.addr %s433, 4
          %s435 = scalar_lea.hbm %s2, %s434
          %s436 = sshll.u32 %s435, 4
          %s437 = int_to_ptr.hbm [resolvable:$true] %s436
          %s438 = sshll.u32 %s430, 4
          %s439 = int_to_ptr.vmem [resolvable:$true] %s438
          %444 = dma.hbm_to_vmem [thread:$0]  %s437, 1024, %s439, %s427, 64, 64, 4
        $region44: #{tpu_custom_call.1} parent=31 // pred_fallthru
          _
        // Predicated region
        $region45: #{tpu_custom_call.1} parent=31 // pred_check
          %p445 = pneg %p151
        $region46: #{tpu_custom_call.1} parent=31 // pred_check_branch
          %447 = sbr.rel (%p445) target = $region48
        $region47: #{tpu_custom_call.1} parent=31 // pred_region
          %s448 = sand.u32 %s32, 1
          %s449 = scalar_lea.sflag [#allocation10], %s448
          %s450 = sand.u32 %s141, 1
          %s451 = scalar_lea.vmem [#allocation9], %s450
          %453 = vsyncadd %s449, 0
          %s454 = scalar_lea.hbm %s3, %s39
          %s456 = sshll.u32 %s454, 4
          %s457 = int_to_ptr.hbm [resolvable:$true] %s456
          %s458 = sshll.u32 %s451, 4
          %s459 = int_to_ptr.vmem [resolvable:$true] %s458
          %461 = dma.hbm_to_vmem [thread:$0]  %s457, 16, %s459, %s449
        $region48: #{tpu_custom_call.1} parent=31 // pred_fallthru
          _
      $region32: #{tpu_custom_call.1} parent=5 // pred_fallthru
        _
      %p462 = scmp.le.s32.totalorder 1, %s32
      %p463 = scmp.lt.s32.totalorder %s32, 3
      %p464 = pnand %p462, %p463
      %p465 = pneg %p464
      // Predicated region
      $region49: #{tpu_custom_call.1} parent=5 // pred_check
        _
      $region50: #{tpu_custom_call.1} parent=5 // pred_check_branch
        %467 = sbr.rel (%p464) target = $region52
      $region51: #{tpu_custom_call.1} parent=5 // pred_region
        %s468 = ssub.s32 %s32, 1
        %s469 = sand.u32 %s66, 1
        %s470 = scalar_lea.sflag [#allocation4], %s469
        %s471 = sand.u32 %s66, 1
        %s472 = smul.addr %s471, 64
        %s473 = scalar_lea.vmem [#allocation3], %s472
        // Predicated region
        $region53: #{tpu_custom_call.1} parent=51 // pred_check
          %p474 = pneg %p79
        $region54: #{tpu_custom_call.1} parent=51 // pred_check_branch
          %476 = sbr.rel (%p474) target = $region56
        $region55: #{tpu_custom_call.1} parent=51 // pred_region
          %478 = dma.done %s470, 1024
        $region56: #{tpu_custom_call.1} parent=51 // pred_fallthru
          _
        %s479 = sand.u32 %s37, 1
        %s480 = scalar_lea.sflag [#allocation7], %s479
        %s481 = sand.u32 %s92, 1
        %s482 = smul.addr %s481, 64
        %s483 = scalar_lea.vmem [#allocation6], %s482
        // Predicated region
        $region57: #{tpu_custom_call.1} parent=51 // pred_check
          %p484 = pneg %p105
        $region58: #{tpu_custom_call.1} parent=51 // pred_check_branch
          %486 = sbr.rel (%p484) target = $region60
        $region59: #{tpu_custom_call.1} parent=51 // pred_region
          %488 = dma.done %s480, 1024
        $region60: #{tpu_custom_call.1} parent=51 // pred_fallthru
          _
        %s489 = sand.u32 %s37, 1
        %s490 = scalar_lea.sflag [#allocation7], %s489
        %s491 = sand.u32 %s118, 1
        %s492 = smul.addr %s491, 64
        %s493 = scalar_lea.vmem [#allocation8], %s492
        // Predicated region
        $region61: #{tpu_custom_call.1} parent=51 // pred_check
          %p494 = pneg %p131
        $region62: #{tpu_custom_call.1} parent=51 // pred_check_branch
          %496 = sbr.rel (%p494) target = $region64
        $region63: #{tpu_custom_call.1} parent=51 // pred_region
          %498 = dma.done %s490, 1024
        $region64: #{tpu_custom_call.1} parent=51 // pred_fallthru
          _
        %s499 = sand.u32 %s37, 1
        %s500 = scalar_lea.sflag [#allocation10], %s499
        %s501 = sand.u32 %s144, 1
        %s502 = scalar_lea.vmem [#allocation9], %s501
        // Predicated region
        $region65: #{tpu_custom_call.1} parent=51 // pred_check
          %p503 = pneg %p157
        $region66: #{tpu_custom_call.1} parent=51 // pred_check_branch
          %505 = sbr.rel (%p503) target = $region68
        $region67: #{tpu_custom_call.1} parent=51 // pred_region
          %507 = dma.done %s500, 16
        $region68: #{tpu_custom_call.1} parent=51 // pred_fallthru
          _
        // Predicated region
        $region69: #{tpu_custom_call.1} parent=51 // pred_check
          %p508 = pneg %p183
        $region70: #{tpu_custom_call.1} parent=51 // pred_check_branch
          %510 = sbr.rel (%p508) target = $region72
        $region71: #{tpu_custom_call.1} parent=51 // pred_region
          %512 = dma.done [#allocation10], 3072
        $region72: #{tpu_custom_call.1} parent=51 // pred_fallthru
          _
        // Predicated region
        $region73: #{tpu_custom_call.1} parent=51 // pred_check
          %p513 = pneg %p235
        $region74: #{tpu_custom_call.1} parent=51 // pred_check_branch
          %515 = sbr.rel (%p513) target = $region76
        $region75: #{tpu_custom_call.1} parent=51 // pred_region
          %517 = dma.done [#allocation13], 1024
        $region76: #{tpu_custom_call.1} parent=51 // pred_fallthru
          _
        %s518 = sand.u32 %s66, 1
        %s519 = scalar_lea.sflag [#allocation4], %s518
        %s520 = sand.u32 %s66, 1
        %s521 = smul.addr %s520, 64
        %s522 = scalar_lea.vmem [#allocation3], %s521
        %p523 = pneg %p79
        %p524 = pneg %p76
        %s525 = sand.u32 %s37, 1
        %s526 = scalar_lea.sflag [#allocation7], %s525
        %s527 = sand.u32 %s92, 1
        %s528 = smul.addr %s527, 64
        %s529 = scalar_lea.vmem [#allocation6], %s528
        %p530 = pneg %p105
        %p531 = pneg %p102
        %s532 = sand.u32 %s37, 1
        %s533 = scalar_lea.sflag [#allocation7], %s532
        %s534 = sand.u32 %s118, 1
        %s535 = smul.addr %s534, 64
        %s536 = scalar_lea.vmem [#allocation8], %s535
        %p537 = pneg %p131
        %p538 = pneg %p128
        %s539 = sand.u32 %s37, 1
        %s540 = scalar_lea.sflag [#allocation10], %s539
        %s541 = sand.u32 %s144, 1
        %s542 = scalar_lea.vmem [#allocation9], %s541
        %p543 = pneg %p157
        %p544 = pneg %p154
        %p545 = pneg %p183
        %p546 = pneg %p180
        %p547 = scmp.lt.s32.totalorder %s44, 0
        %s548 = scalar_select %p547, %s44, 0
        %s549 = smul.addr %s548, 3
        %s550 = scalar_lea.vmem %s5, %s549
        %p551 = pneg %p209
        %p552 = pneg %p206
        %p553 = pneg %p235
        %p554 = pneg %p232
        %p555 = pneg %p256
        %p556 = pneg %p253
        %p557 = pneg %p284
        %p558 = pneg %p281
        %s559 = sand.u32 %s271, 1
        %s560 = scalar_lea.sflag [#allocation5], %s559
        %s561 = sand.u32 %s271, 1
        %s562 = smul.addr %s561, 128
        %s563 = scalar_lea.vmem [#allocation14], %s562
        %p564 = pneg %p314
        %p565 = pneg %p311
        %s566 = sand.u32 %s301, 1
        %s567 = scalar_lea.sflag [#allocation16], %s566
        %s568 = sand.u32 %s301, 1
        %s569 = smul.addr %s568, 256
        %s570 = scalar_lea.vmem [#allocation15], %s569
        %s571 = smul.u32 16, %s43
        %p572 = scmp.lt.s32.totalorder %s44, 0
        %s573 = scalar_select %p572, %s44, 0
        %s574 = smul.addr %s573, 3
        %s575 = scalar_lea.vmem %s5, %s574
        %s576 = smul.u32 16, %s43
        %s577 = smul.u32 4, %s44
        %s578 = smul.u32 16, %s43
        %p579 = scmp.eq.s32.totalorder %s44, 0
        // Predicated region
        $region77: #{tpu_custom_call.1} parent=51 // pred_check
          %p580 = pneg %p579
        $region78: #{tpu_custom_call.1} parent=51 // pred_check_branch
          %582 = sbr.rel (%p580) target = $region80
        $region79: #{tpu_custom_call.1} parent=51 // pred_region
          %v583 = vld [vmem:[%s7] sm:$0x1]
          %v585 = vperm.slane %v583, 0
          %587 = vst [vmem:[#allocation2] sm:$0xff] %v585
          %588 = vst [vmem:[#allocation2 + $0x8] sm:$0xff] %v585
          %589 = vst [vmem:[#allocation2 + $0x10] sm:$0xff] %v585
          %590 = vst [vmem:[#allocation2 + $0x18] sm:$0xff] %v585
          %591 = vst [vmem:[#allocation2 + $0x20] sm:$0xff] %v585
          %592 = vst [vmem:[#allocation2 + $0x28] sm:$0xff] %v585
          %593 = vst [vmem:[#allocation2 + $0x30] sm:$0xff] %v585
          %594 = vst [vmem:[#allocation2 + $0x38] sm:$0xff] %v585
          %595 = vst [vmem:[#allocation2 + $0x40] sm:$0xff] %v585
          %596 = vst [vmem:[#allocation2 + $0x48] sm:$0xff] %v585
          %597 = vst [vmem:[#allocation2 + $0x50] sm:$0xff] %v585
          %598 = vst [vmem:[#allocation2 + $0x58] sm:$0xff] %v585
          %599 = vst [vmem:[#allocation2 + $0x60] sm:$0xff] %v585
          %600 = vst [vmem:[#allocation2 + $0x68] sm:$0xff] %v585
          %601 = vst [vmem:[#allocation2 + $0x70] sm:$0xff] %v585
          %602 = vst [vmem:[#allocation2 + $0x78] sm:$0xff] %v585
        $region80: #{tpu_custom_call.1} parent=51 // pred_fallthru
          _
        %v603 = vld [vmem:[%s473] sm:$0xf]
        %v604 = vld [vmem:[%s473 + $0x4] sm:$0xf]
        %v605 = vld [vmem:[%s473 + $0x8] sm:$0xf]
        %v606 = vld [vmem:[%s473 + $0xc] sm:$0xf]
        %v607 = vld [vmem:[%s473 + $0x10] sm:$0xf]
        %v608 = vld [vmem:[%s473 + $0x14] sm:$0xf]
        %v609 = vld [vmem:[%s473 + $0x18] sm:$0xf]
        %v610 = vld [vmem:[%s473 + $0x1c] sm:$0xf]
        %v611 = vld [vmem:[%s473 + $0x20] sm:$0xf]
        %v612 = vld [vmem:[%s473 + $0x24] sm:$0xf]
        %v613 = vld [vmem:[%s473 + $0x28] sm:$0xf]
        %v614 = vld [vmem:[%s473 + $0x2c] sm:$0xf]
        %v615 = vld [vmem:[%s473 + $0x30] sm:$0xf]
        %v616 = vld [vmem:[%s473 + $0x34] sm:$0xf]
        %v617 = vld [vmem:[%s473 + $0x38] sm:$0xf]
        %v618 = vld [vmem:[%s473 + $0x3c] sm:$0xf]
        %v619 = vld [vmem:[%s483] sm:$0xf]
        %v620 = vld [vmem:[%s483 + $0x4] sm:$0xf]
        %v621 = vld [vmem:[%s483 + $0x8] sm:$0xf]
        %v622 = vld [vmem:[%s483 + $0xc] sm:$0xf]
        %v623 = vld [vmem:[%s483 + $0x10] sm:$0xf]
        %v624 = vld [vmem:[%s483 + $0x14] sm:$0xf]
        %v625 = vld [vmem:[%s483 + $0x18] sm:$0xf]
        %v626 = vld [vmem:[%s483 + $0x1c] sm:$0xf]
        %v627 = vld [vmem:[%s483 + $0x20] sm:$0xf]
        %v628 = vld [vmem:[%s483 + $0x24] sm:$0xf]
        %v629 = vld [vmem:[%s483 + $0x28] sm:$0xf]
        %v630 = vld [vmem:[%s483 + $0x2c] sm:$0xf]
        %v631 = vld [vmem:[%s483 + $0x30] sm:$0xf]
        %v632 = vld [vmem:[%s483 + $0x34] sm:$0xf]
        %v633 = vld [vmem:[%s483 + $0x38] sm:$0xf]
        %v634 = vld [vmem:[%s483 + $0x3c] sm:$0xf]
        %v635 = vld [vmem:[%s493] sm:$0xf]
        %v636 = vld [vmem:[%s493 + $0x4] sm:$0xf]
        %v637 = vld [vmem:[%s493 + $0x8] sm:$0xf]
        %v638 = vld [vmem:[%s493 + $0xc] sm:$0xf]
        %v639 = vld [vmem:[%s493 + $0x10] sm:$0xf]
        %v640 = vld [vmem:[%s493 + $0x14] sm:$0xf]
        %v641 = vld [vmem:[%s493 + $0x18] sm:$0xf]
        %v642 = vld [vmem:[%s493 + $0x1c] sm:$0xf]
        %v643 = vld [vmem:[%s493 + $0x20] sm:$0xf]
        %v644 = vld [vmem:[%s493 + $0x24] sm:$0xf]
        %v645 = vld [vmem:[%s493 + $0x28] sm:$0xf]
        %v646 = vld [vmem:[%s493 + $0x2c] sm:$0xf]
        %v647 = vld [vmem:[%s493 + $0x30] sm:$0xf]
        %v648 = vld [vmem:[%s493 + $0x34] sm:$0xf]
        %v649 = vld [vmem:[%s493 + $0x38] sm:$0xf]
        %v650 = vld [vmem:[%s493 + $0x3c] sm:$0xf]
        %v651 = vld [vmem:[#allocation11] sm:$0xf]
        %v652 = vld [vmem:[#allocation11 + $0x4] sm:$0xf]
        %v653 = vld [vmem:[#allocation11 + $0x8] sm:$0xf]
        %v654 = vld [vmem:[#allocation11 + $0xc] sm:$0xf]
        %v655 = vld [vmem:[#allocation11 + $0x10] sm:$0xf]
        %v656 = vld [vmem:[#allocation11 + $0x14] sm:$0xf]
        %v657 = vld [vmem:[#allocation11 + $0x18] sm:$0xf]
        %v658 = vld [vmem:[#allocation11 + $0x1c] sm:$0xf]
        %v659 = vld [vmem:[#allocation11 + $0x20] sm:$0xf]
        %v660 = vld [vmem:[#allocation11 + $0x24] sm:$0xf]
        %v661 = vld [vmem:[#allocation11 + $0x28] sm:$0xf]
        %v662 = vld [vmem:[#allocation11 + $0x2c] sm:$0xf]
        %v663 = vld [vmem:[#allocation11 + $0x30] sm:$0xf]
        %v664 = vld [vmem:[#allocation11 + $0x34] sm:$0xf]
        %v665 = vld [vmem:[#allocation11 + $0x38] sm:$0xf]
        %v666 = vld [vmem:[#allocation11 + $0x3c] sm:$0xf]
        %v667 = vld [vmem:[%s575] sm:$0x1]
        %v669 = vperm.slane %v667, 0
        %v687 = vunpack.c.l.b16 %v603
        %v688 = vunpack.c.l.b16 %v604
        %v689 = vunpack.c.l.b16 %v605
        %v690 = vunpack.c.l.b16 %v606
        %v691 = vunpack.c.l.b16 %v607
        %v692 = vunpack.c.l.b16 %v608
        %v693 = vunpack.c.l.b16 %v609
        %v694 = vunpack.c.l.b16 %v610
        %v695 = vunpack.c.l.b16 %v611
        %v696 = vunpack.c.l.b16 %v612
        %v697 = vunpack.c.l.b16 %v613
        %v698 = vunpack.c.l.b16 %v614
        %v699 = vunpack.c.l.b16 %v615
        %v700 = vunpack.c.l.b16 %v616
        %v701 = vunpack.c.l.b16 %v617
        %v702 = vunpack.c.l.b16 %v618
        %v703 = vpack.c.b16 %v688, %v687
        %v704 = vpack.c.b16 %v690, %v689
        %v705 = vpack.c.b16 %v692, %v691
        %v706 = vpack.c.b16 %v694, %v693
        %v707 = vpack.c.b16 %v696, %v695
        %v708 = vpack.c.b16 %v698, %v697
        %v709 = vpack.c.b16 %v700, %v699
        %v710 = vpack.c.b16 %v702, %v701
        %v735 = vunpack.c.l.b16 %v651
        %v736 = vunpack.c.l.b16 %v652
        %v737 = vunpack.c.l.b16 %v653
        %v738 = vunpack.c.l.b16 %v654
        %v739 = vunpack.c.l.b16 %v655
        %v740 = vunpack.c.l.b16 %v656
        %v741 = vunpack.c.l.b16 %v657
        %v742 = vunpack.c.l.b16 %v658
        %v743 = vunpack.c.l.b16 %v659
        %v744 = vunpack.c.l.b16 %v660
        %v745 = vunpack.c.l.b16 %v661
        %v746 = vunpack.c.l.b16 %v662
        %v747 = vunpack.c.l.b16 %v663
        %v748 = vunpack.c.l.b16 %v664
        %v749 = vunpack.c.l.b16 %v665
        %v750 = vunpack.c.l.b16 %v666
        %v751 = vpack.c.b16 %v736, %v735
        %v752 = vpack.c.b16 %v738, %v737
        %v753 = vpack.c.b16 %v740, %v739
        %v754 = vpack.c.b16 %v742, %v741
        %v755 = vpack.c.b16 %v744, %v743
        %v756 = vpack.c.b16 %v746, %v745
        %v757 = vpack.c.b16 %v748, %v747
        %v758 = vpack.c.b16 %v750, %v749
        %767 = vmatpush.bf16.msra.mxu0 %v758
        %768 = vmatpush.bf16.msra.mxu0 %v757
        %769 = vmatpush.bf16.msra.mxu0 %v756
        %770 = vmatpush.bf16.msra.mxu0 %v755
        %771 = vmatpush.bf16.msra.mxu0 %v754
        %772 = vmatpush.bf16.msra.mxu0 %v753
        %773 = vmatpush.bf16.msra.mxu0 %v752
        %774 = vmatpush.bf16.msra.mxu0 %v751
        %775 = vmatmul.bf16.gmra.mxu0 %v703
        %v776 = vpop.f32.mrf.mxu0
        %v777 = vadd.f32 %v669, %v776
        %v778 = vpop.f32.mrf.mxu0
        %v779 = vadd.f32 %v669, %v778
        %780 = vmatmul.bf16.gmra.mxu0 %v704
        %v781 = vpop.f32.mrf.mxu0
        %v782 = vadd.f32 %v669, %v781
        %v783 = vpop.f32.mrf.mxu0
        %v784 = vadd.f32 %v669, %v783
        %785 = vmatmul.bf16.gmra.mxu0 %v705
        %v786 = vpop.f32.mrf.mxu0
        %v787 = vadd.f32 %v669, %v786
        %v788 = vpop.f32.mrf.mxu0
        %v789 = vadd.f32 %v669, %v788
        %790 = vmatmul.bf16.gmra.mxu0 %v706
        %v791 = vpop.f32.mrf.mxu0
        %v792 = vadd.f32 %v669, %v791
        %v793 = vpop.f32.mrf.mxu0
        %v794 = vadd.f32 %v669, %v793
        %795 = vmatmul.bf16.gmra.mxu0 %v707
        %v796 = vpop.f32.mrf.mxu0
        %v797 = vadd.f32 %v669, %v796
        %v798 = vpop.f32.mrf.mxu0
        %v799 = vadd.f32 %v669, %v798
        %800 = vmatmul.bf16.gmra.mxu0 %v708
        %v801 = vpop.f32.mrf.mxu0
        %v802 = vadd.f32 %v669, %v801
        %v803 = vpop.f32.mrf.mxu0
        %v804 = vadd.f32 %v669, %v803
        %805 = vmatmul.bf16.gmra.mxu0 %v709
        %v806 = vpop.f32.mrf.mxu0
        %v807 = vadd.f32 %v669, %v806
        %v808 = vpop.f32.mrf.mxu0
        %v809 = vadd.f32 %v669, %v808
        %810 = vmatmul.bf16.gmra.mxu0 %v710
        %v811 = vpop.f32.mrf.mxu0
        %v812 = vadd.f32 %v669, %v811
        %v813 = vpop.f32.mrf.mxu0
        %v814 = vadd.f32 %v669, %v813
        %815 = vdwg.mxu0
        %v816 = vpack.c.bf16 %v777, %v777
        %v817 = vpack.c.bf16 %v779, %v779
        %v818 = vpack.c.bf16 %v782, %v782
        %v819 = vpack.c.bf16 %v784, %v784
        %v820 = vpack.c.bf16 %v787, %v787
        %v821 = vpack.c.bf16 %v789, %v789
        %v822 = vpack.c.bf16 %v792, %v792
        %v823 = vpack.c.bf16 %v794, %v794
        %v824 = vpack.c.bf16 %v797, %v797
        %v825 = vpack.c.bf16 %v799, %v799
        %v826 = vpack.c.bf16 %v802, %v802
        %v827 = vpack.c.bf16 %v804, %v804
        %v828 = vpack.c.bf16 %v807, %v807
        %v829 = vpack.c.bf16 %v809, %v809
        %v830 = vpack.c.bf16 %v812, %v812
        %v831 = vpack.c.bf16 %v814, %v814
        %s832 = scalar_lea.vmem [#allocation11], 64
        %v833 = vld [vmem:[%s832] sm:$0xf]
        %v834 = vld [vmem:[%s832 + $0x4] sm:$0xf]
        %v835 = vld [vmem:[%s832 + $0x8] sm:$0xf]
        %v836 = vld [vmem:[%s832 + $0xc] sm:$0xf]
        %v837 = vld [vmem:[%s832 + $0x10] sm:$0xf]
        %v838 = vld [vmem:[%s832 + $0x14] sm:$0xf]
        %v839 = vld [vmem:[%s832 + $0x18] sm:$0xf]
        %v840 = vld [vmem:[%s832 + $0x1c] sm:$0xf]
        %v841 = vld [vmem:[%s832 + $0x20] sm:$0xf]
        %v842 = vld [vmem:[%s832 + $0x24] sm:$0xf]
        %v843 = vld [vmem:[%s832 + $0x28] sm:$0xf]
        %v844 = vld [vmem:[%s832 + $0x2c] sm:$0xf]
        %v845 = vld [vmem:[%s832 + $0x30] sm:$0xf]
        %v846 = vld [vmem:[%s832 + $0x34] sm:$0xf]
        %v847 = vld [vmem:[%s832 + $0x38] sm:$0xf]
        %v848 = vld [vmem:[%s832 + $0x3c] sm:$0xf]
        %s849 = scalar_lea.vmem %s575, 1
        %v850 = vld [vmem:[%s849] sm:$0x1]
        %v852 = vperm.slane %v850, 0
        %v870 = vunpack.c.l.b16 %v619
        %v871 = vunpack.c.l.b16 %v620
        %v872 = vunpack.c.l.b16 %v621
        %v873 = vunpack.c.l.b16 %v622
        %v874 = vunpack.c.l.b16 %v623
        %v875 = vunpack.c.l.b16 %v624
        %v876 = vunpack.c.l.b16 %v625
        %v877 = vunpack.c.l.b16 %v626
        %v878 = vunpack.c.l.b16 %v627
        %v879 = vunpack.c.l.b16 %v628
        %v880 = vunpack.c.l.b16 %v629
        %v881 = vunpack.c.l.b16 %v630
        %v882 = vunpack.c.l.b16 %v631
        %v883 = vunpack.c.l.b16 %v632
        %v884 = vunpack.c.l.b16 %v633
        %v885 = vunpack.c.l.b16 %v634
        %v886 = vpack.c.b16 %v871, %v870
        %v887 = vpack.c.b16 %v873, %v872
        %v888 = vpack.c.b16 %v875, %v874
        %v889 = vpack.c.b16 %v877, %v876
        %v890 = vpack.c.b16 %v879, %v878
        %v891 = vpack.c.b16 %v881, %v880
        %v892 = vpack.c.b16 %v883, %v882
        %v893 = vpack.c.b16 %v885, %v884
        %v918 = vunpack.c.l.b16 %v833
        %v919 = vunpack.c.l.b16 %v834
        %v920 = vunpack.c.l.b16 %v835
        %v921 = vunpack.c.l.b16 %v836
        %v922 = vunpack.c.l.b16 %v837
        %v923 = vunpack.c.l.b16 %v838
        %v924 = vunpack.c.l.b16 %v839
        %v925 = vunpack.c.l.b16 %v840
        %v926 = vunpack.c.l.b16 %v841
        %v927 = vunpack.c.l.b16 %v842
        %v928 = vunpack.c.l.b16 %v843
        %v929 = vunpack.c.l.b16 %v844
        %v930 = vunpack.c.l.b16 %v845
        %v931 = vunpack.c.l.b16 %v846
        %v932 = vunpack.c.l.b16 %v847
        %v933 = vunpack.c.l.b16 %v848
        %v934 = vpack.c.b16 %v919, %v918
        %v935 = vpack.c.b16 %v921, %v920
        %v936 = vpack.c.b16 %v923, %v922
        %v937 = vpack.c.b16 %v925, %v924
        %v938 = vpack.c.b16 %v927, %v926
        %v939 = vpack.c.b16 %v929, %v928
        %v940 = vpack.c.b16 %v931, %v930
        %v941 = vpack.c.b16 %v933, %v932
        %950 = vmatpush.bf16.msra.mxu0 %v941
        %951 = vmatpush.bf16.msra.mxu0 %v940
        %952 = vmatpush.bf16.msra.mxu0 %v939
        %953 = vmatpush.bf16.msra.mxu0 %v938
        %954 = vmatpush.bf16.msra.mxu0 %v937
        %955 = vmatpush.bf16.msra.mxu0 %v936
        %956 = vmatpush.bf16.msra.mxu0 %v935
        %957 = vmatpush.bf16.msra.mxu0 %v934
        %958 = vmatmul.bf16.gmra.mxu0 %v886
        %v959 = vpop.f32.mrf.mxu0
        %v960 = vadd.f32 %v852, %v959
        %v961 = vpop.f32.mrf.mxu0
        %v962 = vadd.f32 %v852, %v961
        %963 = vmatmul.bf16.gmra.mxu0 %v887
        %v964 = vpop.f32.mrf.mxu0
        %v965 = vadd.f32 %v852, %v964
        %v966 = vpop.f32.mrf.mxu0
        %v967 = vadd.f32 %v852, %v966
        %968 = vmatmul.bf16.gmra.mxu0 %v888
        %v969 = vpop.f32.mrf.mxu0
        %v970 = vadd.f32 %v852, %v969
        %v971 = vpop.f32.mrf.mxu0
        %v972 = vadd.f32 %v852, %v971
        %973 = vmatmul.bf16.gmra.mxu0 %v889
        %v974 = vpop.f32.mrf.mxu0
        %v975 = vadd.f32 %v852, %v974
        %v976 = vpop.f32.mrf.mxu0
        %v977 = vadd.f32 %v852, %v976
        %978 = vmatmul.bf16.gmra.mxu0 %v890
        %v979 = vpop.f32.mrf.mxu0
        %v980 = vadd.f32 %v852, %v979
        %v981 = vpop.f32.mrf.mxu0
        %v982 = vadd.f32 %v852, %v981
        %983 = vmatmul.bf16.gmra.mxu0 %v891
        %v984 = vpop.f32.mrf.mxu0
        %v985 = vadd.f32 %v852, %v984
        %v986 = vpop.f32.mrf.mxu0
        %v987 = vadd.f32 %v852, %v986
        %988 = vmatmul.bf16.gmra.mxu0 %v892
        %v989 = vpop.f32.mrf.mxu0
        %v990 = vadd.f32 %v852, %v989
        %v991 = vpop.f32.mrf.mxu0
        %v992 = vadd.f32 %v852, %v991
        %993 = vmatmul.bf16.gmra.mxu0 %v893
        %v994 = vpop.f32.mrf.mxu0
        %v995 = vadd.f32 %v852, %v994
        %v996 = vpop.f32.mrf.mxu0
        %v997 = vadd.f32 %v852, %v996
        %998 = vdwg.mxu0
        %v999 = vpack.c.bf16 %v960, %v960
        %v1000 = vpack.c.bf16 %v962, %v962
        %v1001 = vpack.c.bf16 %v965, %v965
        %v1002 = vpack.c.bf16 %v967, %v967
        %v1003 = vpack.c.bf16 %v970, %v970
        %v1004 = vpack.c.bf16 %v972, %v972
        %v1005 = vpack.c.bf16 %v975, %v975
        %v1006 = vpack.c.bf16 %v977, %v977
        %v1007 = vpack.c.bf16 %v980, %v980
        %v1008 = vpack.c.bf16 %v982, %v982
        %v1009 = vpack.c.bf16 %v985, %v985
        %v1010 = vpack.c.bf16 %v987, %v987
        %v1011 = vpack.c.bf16 %v990, %v990
        %v1012 = vpack.c.bf16 %v992, %v992
        %v1013 = vpack.c.bf16 %v995, %v995
        %v1014 = vpack.c.bf16 %v997, %v997
        %s1015 = scalar_lea.vmem [#allocation11], 128
        %v1016 = vld [vmem:[%s1015] sm:$0xf]
        %v1017 = vld [vmem:[%s1015 + $0x4] sm:$0xf]
        %v1018 = vld [vmem:[%s1015 + $0x8] sm:$0xf]
        %v1019 = vld [vmem:[%s1015 + $0xc] sm:$0xf]
        %v1020 = vld [vmem:[%s1015 + $0x10] sm:$0xf]
        %v1021 = vld [vmem:[%s1015 + $0x14] sm:$0xf]
        %v1022 = vld [vmem:[%s1015 + $0x18] sm:$0xf]
        %v1023 = vld [vmem:[%s1015 + $0x1c] sm:$0xf]
        %v1024 = vld [vmem:[%s1015 + $0x20] sm:$0xf]
        %v1025 = vld [vmem:[%s1015 + $0x24] sm:$0xf]
        %v1026 = vld [vmem:[%s1015 + $0x28] sm:$0xf]
        %v1027 = vld [vmem:[%s1015 + $0x2c] sm:$0xf]
        %v1028 = vld [vmem:[%s1015 + $0x30] sm:$0xf]
        %v1029 = vld [vmem:[%s1015 + $0x34] sm:$0xf]
        %v1030 = vld [vmem:[%s1015 + $0x38] sm:$0xf]
        %v1031 = vld [vmem:[%s1015 + $0x3c] sm:$0xf]
        %s1032 = scalar_lea.vmem %s575, 2
        %v1033 = vld [vmem:[%s1032] sm:$0x1]
        %v1035 = vperm.slane %v1033, 0
        %v1053 = vunpack.c.l.b16 %v635
        %v1054 = vunpack.c.l.b16 %v636
        %v1055 = vunpack.c.l.b16 %v637
        %v1056 = vunpack.c.l.b16 %v638
        %v1057 = vunpack.c.l.b16 %v639
        %v1058 = vunpack.c.l.b16 %v640
        %v1059 = vunpack.c.l.b16 %v641
        %v1060 = vunpack.c.l.b16 %v642
        %v1061 = vunpack.c.l.b16 %v643
        %v1062 = vunpack.c.l.b16 %v644
        %v1063 = vunpack.c.l.b16 %v645
        %v1064 = vunpack.c.l.b16 %v646
        %v1065 = vunpack.c.l.b16 %v647
        %v1066 = vunpack.c.l.b16 %v648
        %v1067 = vunpack.c.l.b16 %v649
        %v1068 = vunpack.c.l.b16 %v650
        %v1069 = vpack.c.b16 %v1054, %v1053
        %v1070 = vpack.c.b16 %v1056, %v1055
        %v1071 = vpack.c.b16 %v1058, %v1057
        %v1072 = vpack.c.b16 %v1060, %v1059
        %v1073 = vpack.c.b16 %v1062, %v1061
        %v1074 = vpack.c.b16 %v1064, %v1063
        %v1075 = vpack.c.b16 %v1066, %v1065
        %v1076 = vpack.c.b16 %v1068, %v1067
        %v1101 = vunpack.c.l.b16 %v1016
        %v1102 = vunpack.c.l.b16 %v1017
        %v1103 = vunpack.c.l.b16 %v1018
        %v1104 = vunpack.c.l.b16 %v1019
        %v1105 = vunpack.c.l.b16 %v1020
        %v1106 = vunpack.c.l.b16 %v1021
        %v1107 = vunpack.c.l.b16 %v1022
        %v1108 = vunpack.c.l.b16 %v1023
        %v1109 = vunpack.c.l.b16 %v1024
        %v1110 = vunpack.c.l.b16 %v1025
        %v1111 = vunpack.c.l.b16 %v1026
        %v1112 = vunpack.c.l.b16 %v1027
        %v1113 = vunpack.c.l.b16 %v1028
        %v1114 = vunpack.c.l.b16 %v1029
        %v1115 = vunpack.c.l.b16 %v1030
        %v1116 = vunpack.c.l.b16 %v1031
        %v1117 = vpack.c.b16 %v1102, %v1101
        %v1118 = vpack.c.b16 %v1104, %v1103
        %v1119 = vpack.c.b16 %v1106, %v1105
        %v1120 = vpack.c.b16 %v1108, %v1107
        %v1121 = vpack.c.b16 %v1110, %v1109
        %v1122 = vpack.c.b16 %v1112, %v1111
        %v1123 = vpack.c.b16 %v1114, %v1113
        %v1124 = vpack.c.b16 %v1116, %v1115
        %1133 = vmatpush.bf16.msra.mxu0 %v1124
        %1134 = vmatpush.bf16.msra.mxu0 %v1123
        %1135 = vmatpush.bf16.msra.mxu0 %v1122
        %1136 = vmatpush.bf16.msra.mxu0 %v1121
        %1137 = vmatpush.bf16.msra.mxu0 %v1120
        %1138 = vmatpush.bf16.msra.mxu0 %v1119
        %1139 = vmatpush.bf16.msra.mxu0 %v1118
        %1140 = vmatpush.bf16.msra.mxu0 %v1117
        %1141 = vmatmul.bf16.gmra.mxu0 %v1069
        %v1142 = vpop.f32.mrf.mxu0
        %v1143 = vadd.f32 %v1035, %v1142
        %v1144 = vpop.f32.mrf.mxu0
        %v1145 = vadd.f32 %v1035, %v1144
        %1146 = vmatmul.bf16.gmra.mxu0 %v1070
        %v1147 = vpop.f32.mrf.mxu0
        %v1148 = vadd.f32 %v1035, %v1147
        %v1149 = vpop.f32.mrf.mxu0
        %v1150 = vadd.f32 %v1035, %v1149
        %1151 = vmatmul.bf16.gmra.mxu0 %v1071
        %v1152 = vpop.f32.mrf.mxu0
        %v1153 = vadd.f32 %v1035, %v1152
        %v1154 = vpop.f32.mrf.mxu0
        %v1155 = vadd.f32 %v1035, %v1154
        %1156 = vmatmul.bf16.gmra.mxu0 %v1072
        %v1157 = vpop.f32.mrf.mxu0
        %v1158 = vadd.f32 %v1035, %v1157
        %v1159 = vpop.f32.mrf.mxu0
        %v1160 = vadd.f32 %v1035, %v1159
        %1161 = vmatmul.bf16.gmra.mxu0 %v1073
        %v1162 = vpop.f32.mrf.mxu0
        %v1163 = vadd.f32 %v1035, %v1162
        %v1164 = vpop.f32.mrf.mxu0
        %v1165 = vadd.f32 %v1035, %v1164
        %1166 = vmatmul.bf16.gmra.mxu0 %v1074
        %v1167 = vpop.f32.mrf.mxu0
        %v1168 = vadd.f32 %v1035, %v1167
        %v1169 = vpop.f32.mrf.mxu0
        %v1170 = vadd.f32 %v1035, %v1169
        %1171 = vmatmul.bf16.gmra.mxu0 %v1075
        %v1172 = vpop.f32.mrf.mxu0
        %v1173 = vadd.f32 %v1035, %v1172
        %v1174 = vpop.f32.mrf.mxu0
        %v1175 = vadd.f32 %v1035, %v1174
        %1176 = vmatmul.bf16.gmra.mxu0 %v1076
        %v1177 = vpop.f32.mrf.mxu0
        %v1178 = vadd.f32 %v1035, %v1177
        %v1179 = vpop.f32.mrf.mxu0
        %v1180 = vadd.f32 %v1035, %v1179
        %1181 = vdwg.mxu0
        %v1182 = vpack.c.bf16 %v1143, %v1143
        %v1183 = vpack.c.bf16 %v1145, %v1145
        %v1184 = vpack.c.bf16 %v1148, %v1148
        %v1185 = vpack.c.bf16 %v1150, %v1150
        %v1186 = vpack.c.bf16 %v1153, %v1153
        %v1187 = vpack.c.bf16 %v1155, %v1155
        %v1188 = vpack.c.bf16 %v1158, %v1158
        %v1189 = vpack.c.bf16 %v1160, %v1160
        %v1190 = vpack.c.bf16 %v1163, %v1163
        %v1191 = vpack.c.bf16 %v1165, %v1165
        %v1192 = vpack.c.bf16 %v1168, %v1168
        %v1193 = vpack.c.bf16 %v1170, %v1170
        %v1194 = vpack.c.bf16 %v1173, %v1173
        %v1195 = vpack.c.bf16 %v1175, %v1175
        %v1196 = vpack.c.bf16 %v1178, %v1178
        %v1197 = vpack.c.bf16 %v1180, %v1180
        %v1198 = vld [vmem:[%s502] sm:$0x1]
        %v1200 = vperm.slane %v1198, 0
        %v1218 = vunpack.c.l.b16 %v816
        %v1219 = vunpack.c.l.b16 %v817
        %v1220 = vunpack.c.l.b16 %v818
        %v1221 = vunpack.c.l.b16 %v819
        %v1222 = vunpack.c.l.b16 %v820
        %v1223 = vunpack.c.l.b16 %v821
        %v1224 = vunpack.c.l.b16 %v822
        %v1225 = vunpack.c.l.b16 %v823
        %v1226 = vunpack.c.l.b16 %v824
        %v1227 = vunpack.c.l.b16 %v825
        %v1228 = vunpack.c.l.b16 %v826
        %v1229 = vunpack.c.l.b16 %v827
        %v1230 = vunpack.c.l.b16 %v828
        %v1231 = vunpack.c.l.b16 %v829
        %v1232 = vunpack.c.l.b16 %v830
        %v1233 = vunpack.c.l.b16 %v831
        %v1234 = vpack.c.b16 %v1219, %v1218
        %v1235 = vpack.c.b16 %v1221, %v1220
        %v1236 = vpack.c.b16 %v1223, %v1222
        %v1237 = vpack.c.b16 %v1225, %v1224
        %v1238 = vpack.c.b16 %v1227, %v1226
        %v1239 = vpack.c.b16 %v1229, %v1228
        %v1240 = vpack.c.b16 %v1231, %v1230
        %v1241 = vpack.c.b16 %v1233, %v1232
        %v1258 = vunpack.c.l.b16 %v999
        %v1259 = vunpack.c.l.b16 %v1000
        %v1260 = vunpack.c.l.b16 %v1001
        %v1261 = vunpack.c.l.b16 %v1002
        %v1262 = vunpack.c.l.b16 %v1003
        %v1263 = vunpack.c.l.b16 %v1004
        %v1264 = vunpack.c.l.b16 %v1005
        %v1265 = vunpack.c.l.b16 %v1006
        %v1266 = vunpack.c.l.b16 %v1007
        %v1267 = vunpack.c.l.b16 %v1008
        %v1268 = vunpack.c.l.b16 %v1009
        %v1269 = vunpack.c.l.b16 %v1010
        %v1270 = vunpack.c.l.b16 %v1011
        %v1271 = vunpack.c.l.b16 %v1012
        %v1272 = vunpack.c.l.b16 %v1013
        %v1273 = vunpack.c.l.b16 %v1014
        %v1274 = vpack.c.b16 %v1259, %v1258
        %v1275 = vpack.c.b16 %v1261, %v1260
        %v1276 = vpack.c.b16 %v1263, %v1262
        %v1277 = vpack.c.b16 %v1265, %v1264
        %v1278 = vpack.c.b16 %v1267, %v1266
        %v1279 = vpack.c.b16 %v1269, %v1268
        %v1280 = vpack.c.b16 %v1271, %v1270
        %v1281 = vpack.c.b16 %v1273, %v1272
        %vm1282 = vcmask 261120
        %v1284 = vsel %vm1282, %v1234, 0
        %v1287 = vsel %vm1282, %v1235, 0
        %v1290 = vsel %vm1282, %v1236, 0
        %v1293 = vsel %vm1282, %v1237, 0
        %v1296 = vsel %vm1282, %v1238, 0
        %v1299 = vsel %vm1282, %v1239, 0
        %v1302 = vsel %vm1282, %v1240, 0
        %v1305 = vsel %vm1282, %v1241, 0
        %v1308 = vsel %vm1282, %v1274, 0
        %v1311 = vsel %vm1282, %v1275, 0
        %v1314 = vsel %vm1282, %v1276, 0
        %v1317 = vsel %vm1282, %v1277, 0
        %v1320 = vsel %vm1282, %v1278, 0
        %v1323 = vsel %vm1282, %v1279, 0
        %v1326 = vsel %vm1282, %v1280, 0
        %v1329 = vsel %vm1282, %v1281, 0
        %1331 = vmatpush.bf16.xpose.msra.mxu0 %v1329
        %1332 = vmatpush.bf16.xpose.msra.mxu0 %v1326
        %1333 = vmatpush.bf16.xpose.msra.mxu0 %v1323
        %1334 = vmatpush.bf16.xpose.msra.mxu0 %v1320
        %1335 = vmatpush.bf16.xpose.msra.mxu0 %v1317
        %1336 = vmatpush.bf16.xpose.msra.mxu0 %v1314
        %1337 = vmatpush.bf16.xpose.msra.mxu0 %v1311
        %1338 = vmatpush.bf16.xpose.msra.mxu0 %v1308
        %1339 = vmatmul.bf16.gmra.mxu0 %v1284
        %v1340 = vpop.f32.mrf.mxu0
        %v1341 = vadd.f32 %v1200, %v1340
        %v1342 = vpop.f32.mrf.mxu0
        %v1343 = vadd.f32 %v1200, %v1342
        %1344 = vmatmul.bf16.gmra.mxu0 %v1287
        %v1345 = vpop.f32.mrf.mxu0
        %v1346 = vadd.f32 %v1200, %v1345
        %v1347 = vpop.f32.mrf.mxu0
        %v1348 = vadd.f32 %v1200, %v1347
        %1349 = vmatmul.bf16.gmra.mxu0 %v1290
        %v1350 = vpop.f32.mrf.mxu0
        %v1351 = vadd.f32 %v1200, %v1350
        %v1352 = vpop.f32.mrf.mxu0
        %v1353 = vadd.f32 %v1200, %v1352
        %1354 = vmatmul.bf16.gmra.mxu0 %v1293
        %v1355 = vpop.f32.mrf.mxu0
        %v1356 = vadd.f32 %v1200, %v1355
        %v1357 = vpop.f32.mrf.mxu0
        %v1358 = vadd.f32 %v1200, %v1357
        %1359 = vmatmul.bf16.gmra.mxu0 %v1296
        %v1360 = vpop.f32.mrf.mxu0
        %v1361 = vadd.f32 %v1200, %v1360
        %v1362 = vpop.f32.mrf.mxu0
        %v1363 = vadd.f32 %v1200, %v1362
        %1364 = vmatmul.bf16.gmra.mxu0 %v1299
        %v1365 = vpop.f32.mrf.mxu0
        %v1366 = vadd.f32 %v1200, %v1365
        %v1367 = vpop.f32.mrf.mxu0
        %v1368 = vadd.f32 %v1200, %v1367
        %1369 = vmatmul.bf16.gmra.mxu0 %v1302
        %v1370 = vpop.f32.mrf.mxu0
        %v1371 = vadd.f32 %v1200, %v1370
        %v1372 = vpop.f32.mrf.mxu0
        %v1373 = vadd.f32 %v1200, %v1372
        %1374 = vmatmul.bf16.gmra.mxu0 %v1305
        %v1375 = vpop.f32.mrf.mxu0
        %v1376 = vadd.f32 %v1200, %v1375
        %v1377 = vpop.f32.mrf.mxu0
        %v1378 = vadd.f32 %v1200, %v1377
        %1379 = vdwg.mxu0
        %1380 = vmax.xlane.f32.xlu0 %v1341
        %v1381 = vpop.xlane.xlu0 %1380
        %1382 = vmax.xlane.f32.xlu0 %v1343
        %v1383 = vpop.xlane.xlu0 %1382
        %1384 = vmax.xlane.f32.xlu0 %v1346
        %v1385 = vpop.xlane.xlu0 %1384
        %1386 = vmax.xlane.f32.xlu0 %v1348
        %v1387 = vpop.xlane.xlu0 %1386
        %1388 = vmax.xlane.f32.xlu0 %v1351
        %v1389 = vpop.xlane.xlu0 %1388
        %1390 = vmax.xlane.f32.xlu0 %v1353
        %v1391 = vpop.xlane.xlu0 %1390
        %1392 = vmax.xlane.f32.xlu0 %v1356
        %v1393 = vpop.xlane.xlu0 %1392
        %1394 = vmax.xlane.f32.xlu0 %v1358
        %v1395 = vpop.xlane.xlu0 %1394
        %1396 = vmax.xlane.f32.xlu0 %v1361
        %v1397 = vpop.xlane.xlu0 %1396
        %1398 = vmax.xlane.f32.xlu0 %v1363
        %v1399 = vpop.xlane.xlu0 %1398
        %1400 = vmax.xlane.f32.xlu0 %v1366
        %v1401 = vpop.xlane.xlu0 %1400
        %1402 = vmax.xlane.f32.xlu0 %v1368
        %v1403 = vpop.xlane.xlu0 %1402
        %1404 = vmax.xlane.f32.xlu0 %v1371
        %v1405 = vpop.xlane.xlu0 %1404
        %1406 = vmax.xlane.f32.xlu0 %v1373
        %v1407 = vpop.xlane.xlu0 %1406
        %1408 = vmax.xlane.f32.xlu0 %v1376
        %v1409 = vpop.xlane.xlu0 %1408
        %1410 = vmax.xlane.f32.xlu0 %v1378
        %v1411 = vpop.xlane.xlu0 %1410
        %v1412 = vsub.f32 %v1341, %v1381
        %v1413 = vsub.f32 %v1343, %v1383
        %v1414 = vsub.f32 %v1346, %v1385
        %v1415 = vsub.f32 %v1348, %v1387
        %v1416 = vsub.f32 %v1351, %v1389
        %v1417 = vsub.f32 %v1353, %v1391
        %v1418 = vsub.f32 %v1356, %v1393
        %v1419 = vsub.f32 %v1358, %v1395
        %v1420 = vsub.f32 %v1361, %v1397
        %v1421 = vsub.f32 %v1363, %v1399
        %v1422 = vsub.f32 %v1366, %v1401
        %v1423 = vsub.f32 %v1368, %v1403
        %v1424 = vsub.f32 %v1371, %v1405
        %v1425 = vsub.f32 %v1373, %v1407
        %v1426 = vsub.f32 %v1376, %v1409
        %v1427 = vsub.f32 %v1378, %v1411
        %v1428 = vmul.f32 %v1412, 1.442695
        %v1429 = vpow.pop %v1428
        %v1430 = vmul.f32 %v1413, 1.442695
        %v1431 = vpow.pop %v1430
        %v1432 = vmul.f32 %v1414, 1.442695
        %v1433 = vpow.pop %v1432
        %v1434 = vmul.f32 %v1415, 1.442695
        %v1435 = vpow.pop %v1434
        %v1436 = vmul.f32 %v1416, 1.442695
        %v1437 = vpow.pop %v1436
        %v1438 = vmul.f32 %v1417, 1.442695
        %v1439 = vpow.pop %v1438
        %v1440 = vmul.f32 %v1418, 1.442695
        %v1441 = vpow.pop %v1440
        %v1442 = vmul.f32 %v1419, 1.442695
        %v1443 = vpow.pop %v1442
        %v1444 = vmul.f32 %v1420, 1.442695
        %v1445 = vpow.pop %v1444
        %v1446 = vmul.f32 %v1421, 1.442695
        %v1447 = vpow.pop %v1446
        %v1448 = vmul.f32 %v1422, 1.442695
        %v1449 = vpow.pop %v1448
        %v1450 = vmul.f32 %v1423, 1.442695
        %v1451 = vpow.pop %v1450
        %v1452 = vmul.f32 %v1424, 1.442695
        %v1453 = vpow.pop %v1452
        %v1454 = vmul.f32 %v1425, 1.442695
        %v1455 = vpow.pop %v1454
        %v1456 = vmul.f32 %v1426, 1.442695
        %v1457 = vpow.pop %v1456
        %v1458 = vmul.f32 %v1427, 1.442695
        %v1459 = vpow.pop %v1458
        %1460 = vadd.xlane.f32.xlu0 %v1429
        %v1461 = vpop.xlane.xlu0 %1460
        %1462 = vadd.xlane.f32.xlu0 %v1431
        %v1463 = vpop.xlane.xlu0 %1462
        %1464 = vadd.xlane.f32.xlu0 %v1433
        %v1465 = vpop.xlane.xlu0 %1464
        %1466 = vadd.xlane.f32.xlu0 %v1435
        %v1467 = vpop.xlane.xlu0 %1466
        %1468 = vadd.xlane.f32.xlu0 %v1437
        %v1469 = vpop.xlane.xlu0 %1468
        %1470 = vadd.xlane.f32.xlu0 %v1439
        %v1471 = vpop.xlane.xlu0 %1470
        %1472 = vadd.xlane.f32.xlu0 %v1441
        %v1473 = vpop.xlane.xlu0 %1472
        %1474 = vadd.xlane.f32.xlu0 %v1443
        %v1475 = vpop.xlane.xlu0 %1474
        %1476 = vadd.xlane.f32.xlu0 %v1445
        %v1477 = vpop.xlane.xlu0 %1476
        %1478 = vadd.xlane.f32.xlu0 %v1447
        %v1479 = vpop.xlane.xlu0 %1478
        %1480 = vadd.xlane.f32.xlu0 %v1449
        %v1481 = vpop.xlane.xlu0 %1480
        %1482 = vadd.xlane.f32.xlu0 %v1451
        %v1483 = vpop.xlane.xlu0 %1482
        %1484 = vadd.xlane.f32.xlu0 %v1453
        %v1485 = vpop.xlane.xlu0 %1484
        %1486 = vadd.xlane.f32.xlu0 %v1455
        %v1487 = vpop.xlane.xlu0 %1486
        %1488 = vadd.xlane.f32.xlu0 %v1457
        %v1489 = vpop.xlane.xlu0 %1488
        %1490 = vadd.xlane.f32.xlu0 %v1459
        %v1491 = vpop.xlane.xlu0 %1490
        %v1492 = vrcp.pop %v1461
        %v1493 = vmul.f32 %v1461, %v1492
        %v1494 = vsub.f32 1.0, %v1493
        %v1495 = vmul.f32 %v1492, %v1494
        %v1496 = vadd.f32 %v1492, %v1495
        %vm1497 = vweird.f32 %v1461
        %vm1498 = vweird.f32 %v1492
        %vm1499 = vmor %vm1497, %vm1498
        %v1500 = vsel %vm1499, %v1492, %v1496
        %v1501 = vand.u32 2147483647, %v1461
        %vm1502 = vcmp.eq.f32.partialorder %v1501, 8.507059e+37
        %v1503 = vand.u32 %v1461, 2147483648
        %v1504 = vor.u32 1.1754944e-38, %v1503
        %v1505 = vsel %vm1502, %v1504, %v1500
        %v1506 = vmul.f32 1.0, %v1505
        %v1507 = vrcp.pop %v1463
        %v1508 = vmul.f32 %v1463, %v1507
        %v1509 = vsub.f32 1.0, %v1508
        %v1510 = vmul.f32 %v1507, %v1509
        %v1511 = vadd.f32 %v1507, %v1510
        %vm1512 = vweird.f32 %v1463
        %vm1513 = vweird.f32 %v1507
        %vm1514 = vmor %vm1512, %vm1513
        %v1515 = vsel %vm1514, %v1507, %v1511
        %v1516 = vand.u32 2147483647, %v1463
        %vm1517 = vcmp.eq.f32.partialorder %v1516, 8.507059e+37
        %v1518 = vand.u32 %v1463, 2147483648
        %v1519 = vor.u32 1.1754944e-38, %v1518
        %v1520 = vsel %vm1517, %v1519, %v1515
        %v1521 = vmul.f32 1.0, %v1520
        %v1522 = vrcp.pop %v1465
        %v1523 = vmul.f32 %v1465, %v1522
        %v1524 = vsub.f32 1.0, %v1523
        %v1525 = vmul.f32 %v1522, %v1524
        %v1526 = vadd.f32 %v1522, %v1525
        %vm1527 = vweird.f32 %v1465
        %vm1528 = vweird.f32 %v1522
        %vm1529 = vmor %vm1527, %vm1528
        %v1530 = vsel %vm1529, %v1522, %v1526
        %v1531 = vand.u32 2147483647, %v1465
        %vm1532 = vcmp.eq.f32.partialorder %v1531, 8.507059e+37
        %v1533 = vand.u32 %v1465, 2147483648
        %v1534 = vor.u32 1.1754944e-38, %v1533
        %v1535 = vsel %vm1532, %v1534, %v1530
        %v1536 = vmul.f32 1.0, %v1535
        %v1537 = vrcp.pop %v1467
        %v1538 = vmul.f32 %v1467, %v1537
        %v1539 = vsub.f32 1.0, %v1538
        %v1540 = vmul.f32 %v1537, %v1539
        %v1541 = vadd.f32 %v1537, %v1540
        %vm1542 = vweird.f32 %v1467
        %vm1543 = vweird.f32 %v1537
        %vm1544 = vmor %vm1542, %vm1543
        %v1545 = vsel %vm1544, %v1537, %v1541
        %v1546 = vand.u32 2147483647, %v1467
        %vm1547 = vcmp.eq.f32.partialorder %v1546, 8.507059e+37
        %v1548 = vand.u32 %v1467, 2147483648
        %v1549 = vor.u32 1.1754944e-38, %v1548
        %v1550 = vsel %vm1547, %v1549, %v1545
        %v1551 = vmul.f32 1.0, %v1550
        %v1552 = vrcp.pop %v1469
        %v1553 = vmul.f32 %v1469, %v1552
        %v1554 = vsub.f32 1.0, %v1553
        %v1555 = vmul.f32 %v1552, %v1554
        %v1556 = vadd.f32 %v1552, %v1555
        %vm1557 = vweird.f32 %v1469
        %vm1558 = vweird.f32 %v1552
        %vm1559 = vmor %vm1557, %vm1558
        %v1560 = vsel %vm1559, %v1552, %v1556
        %v1561 = vand.u32 2147483647, %v1469
        %vm1562 = vcmp.eq.f32.partialorder %v1561, 8.507059e+37
        %v1563 = vand.u32 %v1469, 2147483648
        %v1564 = vor.u32 1.1754944e-38, %v1563
        %v1565 = vsel %vm1562, %v1564, %v1560
        %v1566 = vmul.f32 1.0, %v1565
        %v1567 = vrcp.pop %v1471
        %v1568 = vmul.f32 %v1471, %v1567
        %v1569 = vsub.f32 1.0, %v1568
        %v1570 = vmul.f32 %v1567, %v1569
        %v1571 = vadd.f32 %v1567, %v1570
        %vm1572 = vweird.f32 %v1471
        %vm1573 = vweird.f32 %v1567
        %vm1574 = vmor %vm1572, %vm1573
        %v1575 = vsel %vm1574, %v1567, %v1571
        %v1576 = vand.u32 2147483647, %v1471
        %vm1577 = vcmp.eq.f32.partialorder %v1576, 8.507059e+37
        %v1578 = vand.u32 %v1471, 2147483648
        %v1579 = vor.u32 1.1754944e-38, %v1578
        %v1580 = vsel %vm1577, %v1579, %v1575
        %v1581 = vmul.f32 1.0, %v1580
        %v1582 = vrcp.pop %v1473
        %v1583 = vmul.f32 %v1473, %v1582
        %v1584 = vsub.f32 1.0, %v1583
        %v1585 = vmul.f32 %v1582, %v1584
        %v1586 = vadd.f32 %v1582, %v1585
        %vm1587 = vweird.f32 %v1473
        %vm1588 = vweird.f32 %v1582
        %vm1589 = vmor %vm1587, %vm1588
        %v1590 = vsel %vm1589, %v1582, %v1586
        %v1591 = vand.u32 2147483647, %v1473
        %vm1592 = vcmp.eq.f32.partialorder %v1591, 8.507059e+37
        %v1593 = vand.u32 %v1473, 2147483648
        %v1594 = vor.u32 1.1754944e-38, %v1593
        %v1595 = vsel %vm1592, %v1594, %v1590
        %v1596 = vmul.f32 1.0, %v1595
        %v1597 = vrcp.pop %v1475
        %v1598 = vmul.f32 %v1475, %v1597
        %v1599 = vsub.f32 1.0, %v1598
        %v1600 = vmul.f32 %v1597, %v1599
        %v1601 = vadd.f32 %v1597, %v1600
        %vm1602 = vweird.f32 %v1475
        %vm1603 = vweird.f32 %v1597
        %vm1604 = vmor %vm1602, %vm1603
        %v1605 = vsel %vm1604, %v1597, %v1601
        %v1606 = vand.u32 2147483647, %v1475
        %vm1607 = vcmp.eq.f32.partialorder %v1606, 8.507059e+37
        %v1608 = vand.u32 %v1475, 2147483648
        %v1609 = vor.u32 1.1754944e-38, %v1608
        %v1610 = vsel %vm1607, %v1609, %v1605
        %v1611 = vmul.f32 1.0, %v1610
        %v1612 = vrcp.pop %v1477
        %v1613 = vmul.f32 %v1477, %v1612
        %v1614 = vsub.f32 1.0, %v1613
        %v1615 = vmul.f32 %v1612, %v1614
        %v1616 = vadd.f32 %v1612, %v1615
        %vm1617 = vweird.f32 %v1477
        %vm1618 = vweird.f32 %v1612
        %vm1619 = vmor %vm1617, %vm1618
        %v1620 = vsel %vm1619, %v1612, %v1616
        %v1621 = vand.u32 2147483647, %v1477
        %vm1622 = vcmp.eq.f32.partialorder %v1621, 8.507059e+37
        %v1623 = vand.u32 %v1477, 2147483648
        %v1624 = vor.u32 1.1754944e-38, %v1623
        %v1625 = vsel %vm1622, %v1624, %v1620
        %v1626 = vmul.f32 1.0, %v1625
        %v1627 = vrcp.pop %v1479
        %v1628 = vmul.f32 %v1479, %v1627
        %v1629 = vsub.f32 1.0, %v1628
        %v1630 = vmul.f32 %v1627, %v1629
        %v1631 = vadd.f32 %v1627, %v1630
        %vm1632 = vweird.f32 %v1479
        %vm1633 = vweird.f32 %v1627
        %vm1634 = vmor %vm1632, %vm1633
        %v1635 = vsel %vm1634, %v1627, %v1631
        %v1636 = vand.u32 2147483647, %v1479
        %vm1637 = vcmp.eq.f32.partialorder %v1636, 8.507059e+37
        %v1638 = vand.u32 %v1479, 2147483648
        %v1639 = vor.u32 1.1754944e-38, %v1638
        %v1640 = vsel %vm1637, %v1639, %v1635
        %v1641 = vmul.f32 1.0, %v1640
        %v1642 = vrcp.pop %v1481
        %v1643 = vmul.f32 %v1481, %v1642
        %v1644 = vsub.f32 1.0, %v1643
        %v1645 = vmul.f32 %v1642, %v1644
        %v1646 = vadd.f32 %v1642, %v1645
        %vm1647 = vweird.f32 %v1481
        %vm1648 = vweird.f32 %v1642
        %vm1649 = vmor %vm1647, %vm1648
        %v1650 = vsel %vm1649, %v1642, %v1646
        %v1651 = vand.u32 2147483647, %v1481
        %vm1652 = vcmp.eq.f32.partialorder %v1651, 8.507059e+37
        %v1653 = vand.u32 %v1481, 2147483648
        %v1654 = vor.u32 1.1754944e-38, %v1653
        %v1655 = vsel %vm1652, %v1654, %v1650
        %v1656 = vmul.f32 1.0, %v1655
        %v1657 = vrcp.pop %v1483
        %v1658 = vmul.f32 %v1483, %v1657
        %v1659 = vsub.f32 1.0, %v1658
        %v1660 = vmul.f32 %v1657, %v1659
        %v1661 = vadd.f32 %v1657, %v1660
        %vm1662 = vweird.f32 %v1483
        %vm1663 = vweird.f32 %v1657
        %vm1664 = vmor %vm1662, %vm1663
        %v1665 = vsel %vm1664, %v1657, %v1661
        %v1666 = vand.u32 2147483647, %v1483
        %vm1667 = vcmp.eq.f32.partialorder %v1666, 8.507059e+37
        %v1668 = vand.u32 %v1483, 2147483648
        %v1669 = vor.u32 1.1754944e-38, %v1668
        %v1670 = vsel %vm1667, %v1669, %v1665
        %v1671 = vmul.f32 1.0, %v1670
        %v1672 = vrcp.pop %v1485
        %v1673 = vmul.f32 %v1485, %v1672
        %v1674 = vsub.f32 1.0, %v1673
        %v1675 = vmul.f32 %v1672, %v1674
        %v1676 = vadd.f32 %v1672, %v1675
        %vm1677 = vweird.f32 %v1485
        %vm1678 = vweird.f32 %v1672
        %vm1679 = vmor %vm1677, %vm1678
        %v1680 = vsel %vm1679, %v1672, %v1676
        %v1681 = vand.u32 2147483647, %v1485
        %vm1682 = vcmp.eq.f32.partialorder %v1681, 8.507059e+37
        %v1683 = vand.u32 %v1485, 2147483648
        %v1684 = vor.u32 1.1754944e-38, %v1683
        %v1685 = vsel %vm1682, %v1684, %v1680
        %v1686 = vmul.f32 1.0, %v1685
        %v1687 = vrcp.pop %v1487
        %v1688 = vmul.f32 %v1487, %v1687
        %v1689 = vsub.f32 1.0, %v1688
        %v1690 = vmul.f32 %v1687, %v1689
        %v1691 = vadd.f32 %v1687, %v1690
        %vm1692 = vweird.f32 %v1487
        %vm1693 = vweird.f32 %v1687
        %vm1694 = vmor %vm1692, %vm1693
        %v1695 = vsel %vm1694, %v1687, %v1691
        %v1696 = vand.u32 2147483647, %v1487
        %vm1697 = vcmp.eq.f32.partialorder %v1696, 8.507059e+37
        %v1698 = vand.u32 %v1487, 2147483648
        %v1699 = vor.u32 1.1754944e-38, %v1698
        %v1700 = vsel %vm1697, %v1699, %v1695
        %v1701 = vmul.f32 1.0, %v1700
        %v1702 = vrcp.pop %v1489
        %v1703 = vmul.f32 %v1489, %v1702
        %v1704 = vsub.f32 1.0, %v1703
        %v1705 = vmul.f32 %v1702, %v1704
        %v1706 = vadd.f32 %v1702, %v1705
        %vm1707 = vweird.f32 %v1489
        %vm1708 = vweird.f32 %v1702
        %vm1709 = vmor %vm1707, %vm1708
        %v1710 = vsel %vm1709, %v1702, %v1706
        %v1711 = vand.u32 2147483647, %v1489
        %vm1712 = vcmp.eq.f32.partialorder %v1711, 8.507059e+37
        %v1713 = vand.u32 %v1489, 2147483648
        %v1714 = vor.u32 1.1754944e-38, %v1713
        %v1715 = vsel %vm1712, %v1714, %v1710
        %v1716 = vmul.f32 1.0, %v1715
        %v1717 = vrcp.pop %v1491
        %v1718 = vmul.f32 %v1491, %v1717
        %v1719 = vsub.f32 1.0, %v1718
        %v1720 = vmul.f32 %v1717, %v1719
        %v1721 = vadd.f32 %v1717, %v1720
        %vm1722 = vweird.f32 %v1491
        %vm1723 = vweird.f32 %v1717
        %vm1724 = vmor %vm1722, %vm1723
        %v1725 = vsel %vm1724, %v1717, %v1721
        %v1726 = vand.u32 2147483647, %v1491
        %vm1727 = vcmp.eq.f32.partialorder %v1726, 8.507059e+37
        %v1728 = vand.u32 %v1491, 2147483648
        %v1729 = vor.u32 1.1754944e-38, %v1728
        %v1730 = vsel %vm1727, %v1729, %v1725
        %v1731 = vmul.f32 1.0, %v1730
        %v1732 = vmul.f32 %v1429, %v1506
        %v1733 = vmul.f32 %v1431, %v1521
        %v1734 = vmul.f32 %v1433, %v1536
        %v1735 = vmul.f32 %v1435, %v1551
        %v1736 = vmul.f32 %v1437, %v1566
        %v1737 = vmul.f32 %v1439, %v1581
        %v1738 = vmul.f32 %v1441, %v1596
        %v1739 = vmul.f32 %v1443, %v1611
        %v1740 = vmul.f32 %v1445, %v1626
        %v1741 = vmul.f32 %v1447, %v1641
        %v1742 = vmul.f32 %v1449, %v1656
        %v1743 = vmul.f32 %v1451, %v1671
        %v1744 = vmul.f32 %v1453, %v1686
        %v1745 = vmul.f32 %v1455, %v1701
        %v1746 = vmul.f32 %v1457, %v1716
        %v1747 = vmul.f32 %v1459, %v1731
        %v1748 = vpack.c.bf16 %v1732, %v1732
        %v1749 = vpack.c.bf16 %v1733, %v1733
        %v1750 = vpack.c.bf16 %v1734, %v1734
        %v1751 = vpack.c.bf16 %v1735, %v1735
        %v1752 = vpack.c.bf16 %v1736, %v1736
        %v1753 = vpack.c.bf16 %v1737, %v1737
        %v1754 = vpack.c.bf16 %v1738, %v1738
        %v1755 = vpack.c.bf16 %v1739, %v1739
        %v1756 = vpack.c.bf16 %v1740, %v1740
        %v1757 = vpack.c.bf16 %v1741, %v1741
        %v1758 = vpack.c.bf16 %v1742, %v1742
        %v1759 = vpack.c.bf16 %v1743, %v1743
        %v1760 = vpack.c.bf16 %v1744, %v1744
        %v1761 = vpack.c.bf16 %v1745, %v1745
        %v1762 = vpack.c.bf16 %v1746, %v1746
        %v1763 = vpack.c.bf16 %v1747, %v1747
        %1764 = vst [vmem:[%s570] sm:$0xf] %v1748
        %1765 = vst [vmem:[%s570 + $0x4] sm:$0xf] %v1749
        %1766 = vst [vmem:[%s570 + $0x8] sm:$0xf] %v1750
        %1767 = vst [vmem:[%s570 + $0xc] sm:$0xf] %v1751
        %1768 = vst [vmem:[%s570 + $0x10] sm:$0xf] %v1752
        %1769 = vst [vmem:[%s570 + $0x14] sm:$0xf] %v1753
        %1770 = vst [vmem:[%s570 + $0x18] sm:$0xf] %v1754
        %1771 = vst [vmem:[%s570 + $0x1c] sm:$0xf] %v1755
        %1772 = vst [vmem:[%s570 + $0x20] sm:$0xf] %v1756
        %1773 = vst [vmem:[%s570 + $0x24] sm:$0xf] %v1757
        %1774 = vst [vmem:[%s570 + $0x28] sm:$0xf] %v1758
        %1775 = vst [vmem:[%s570 + $0x2c] sm:$0xf] %v1759
        %1776 = vst [vmem:[%s570 + $0x30] sm:$0xf] %v1760
        %1777 = vst [vmem:[%s570 + $0x34] sm:$0xf] %v1761
        %1778 = vst [vmem:[%s570 + $0x38] sm:$0xf] %v1762
        %1779 = vst [vmem:[%s570 + $0x3c] sm:$0xf] %v1763
        %v1796 = vunpack.c.l.b16 %v1748
        %v1797 = vunpack.c.l.b16 %v1749
        %v1798 = vunpack.c.l.b16 %v1750
        %v1799 = vunpack.c.l.b16 %v1751
        %v1800 = vunpack.c.l.b16 %v1752
        %v1801 = vunpack.c.l.b16 %v1753
        %v1802 = vunpack.c.l.b16 %v1754
        %v1803 = vunpack.c.l.b16 %v1755
        %v1804 = vunpack.c.l.b16 %v1756
        %v1805 = vunpack.c.l.b16 %v1757
        %v1806 = vunpack.c.l.b16 %v1758
        %v1807 = vunpack.c.l.b16 %v1759
        %v1808 = vunpack.c.l.b16 %v1760
        %v1809 = vunpack.c.l.b16 %v1761
        %v1810 = vunpack.c.l.b16 %v1762
        %v1811 = vunpack.c.l.b16 %v1763
        %v1812 = vpack.c.b16 %v1797, %v1796
        %v1813 = vpack.c.b16 %v1799, %v1798
        %v1814 = vpack.c.b16 %v1801, %v1800
        %v1815 = vpack.c.b16 %v1803, %v1802
        %v1816 = vpack.c.b16 %v1805, %v1804
        %v1817 = vpack.c.b16 %v1807, %v1806
        %v1818 = vpack.c.b16 %v1809, %v1808
        %v1819 = vpack.c.b16 %v1811, %v1810
        %v1844 = vunpack.c.l.b16 %v1182
        %v1845 = vunpack.c.l.b16 %v1183
        %v1846 = vunpack.c.l.b16 %v1184
        %v1847 = vunpack.c.l.b16 %v1185
        %v1848 = vunpack.c.l.b16 %v1186
        %v1849 = vunpack.c.l.b16 %v1187
        %v1850 = vunpack.c.l.b16 %v1188
        %v1851 = vunpack.c.l.b16 %v1189
        %v1852 = vunpack.c.l.b16 %v1190
        %v1853 = vunpack.c.l.b16 %v1191
        %v1854 = vunpack.c.l.b16 %v1192
        %v1855 = vunpack.c.l.b16 %v1193
        %v1856 = vunpack.c.l.b16 %v1194
        %v1857 = vunpack.c.l.b16 %v1195
        %v1858 = vunpack.c.l.b16 %v1196
        %v1859 = vunpack.c.l.b16 %v1197
        %v1860 = vpack.c.b16 %v1845, %v1844
        %v1861 = vpack.c.b16 %v1847, %v1846
        %v1862 = vpack.c.b16 %v1849, %v1848
        %v1863 = vpack.c.b16 %v1851, %v1850
        %v1864 = vpack.c.b16 %v1853, %v1852
        %v1865 = vpack.c.b16 %v1855, %v1854
        %v1866 = vpack.c.b16 %v1857, %v1856
        %v1867 = vpack.c.b16 %v1859, %v1858
        %1876 = vmatpush.bf16.msra.mxu0 %v1867
        %1877 = vmatpush.bf16.msra.mxu0 %v1866
        %1878 = vmatpush.bf16.msra.mxu0 %v1865
        %1879 = vmatpush.bf16.msra.mxu0 %v1864
        %1880 = vmatpush.bf16.msra.mxu0 %v1863
        %1881 = vmatpush.bf16.msra.mxu0 %v1862
        %1882 = vmatpush.bf16.msra.mxu0 %v1861
        %1883 = vmatpush.bf16.msra.mxu0 %v1860
        %1884 = vmatmul.bf16.gmra.mxu0 %v1812
        %v1885 = vpop.f32.mrf.mxu0
        %v1886 = vadd.f32 0.0, %v1885
        %v1887 = vpop.f32.mrf.mxu0
        %v1888 = vadd.f32 0.0, %v1887
        %1889 = vmatmul.bf16.gmra.mxu0 %v1813
        %v1890 = vpop.f32.mrf.mxu0
        %v1891 = vadd.f32 0.0, %v1890
        %v1892 = vpop.f32.mrf.mxu0
        %v1893 = vadd.f32 0.0, %v1892
        %1894 = vmatmul.bf16.gmra.mxu0 %v1814
        %v1895 = vpop.f32.mrf.mxu0
        %v1896 = vadd.f32 0.0, %v1895
        %v1897 = vpop.f32.mrf.mxu0
        %v1898 = vadd.f32 0.0, %v1897
        %1899 = vmatmul.bf16.gmra.mxu0 %v1815
        %v1900 = vpop.f32.mrf.mxu0
        %v1901 = vadd.f32 0.0, %v1900
        %v1902 = vpop.f32.mrf.mxu0
        %v1903 = vadd.f32 0.0, %v1902
        %1904 = vmatmul.bf16.gmra.mxu0 %v1816
        %v1905 = vpop.f32.mrf.mxu0
        %v1906 = vadd.f32 0.0, %v1905
        %v1907 = vpop.f32.mrf.mxu0
        %v1908 = vadd.f32 0.0, %v1907
        %1909 = vmatmul.bf16.gmra.mxu0 %v1817
        %v1910 = vpop.f32.mrf.mxu0
        %v1911 = vadd.f32 0.0, %v1910
        %v1912 = vpop.f32.mrf.mxu0
        %v1913 = vadd.f32 0.0, %v1912
        %1914 = vmatmul.bf16.gmra.mxu0 %v1818
        %v1915 = vpop.f32.mrf.mxu0
        %v1916 = vadd.f32 0.0, %v1915
        %v1917 = vpop.f32.mrf.mxu0
        %v1918 = vadd.f32 0.0, %v1917
        %1919 = vmatmul.bf16.gmra.mxu0 %v1819
        %v1920 = vpop.f32.mrf.mxu0
        %v1921 = vadd.f32 0.0, %v1920
        %v1922 = vpop.f32.mrf.mxu0
        %v1923 = vadd.f32 0.0, %v1922
        %1924 = vdwg.mxu0
        %1925 = vrot.lane.b32.xlu0 %v1234, 96
        %v1926 = vpop.permute.xlu0 %1925
        %1927 = vrot.lane.b32.xlu0 %v1235, 96
        %v1928 = vpop.permute.xlu0 %1927
        %1929 = vrot.lane.b32.xlu0 %v1236, 96
        %v1930 = vpop.permute.xlu0 %1929
        %1931 = vrot.lane.b32.xlu0 %v1237, 96
        %v1932 = vpop.permute.xlu0 %1931
        %1933 = vrot.lane.b32.xlu0 %v1238, 96
        %v1934 = vpop.permute.xlu0 %1933
        %1935 = vrot.lane.b32.xlu0 %v1239, 96
        %v1936 = vpop.permute.xlu0 %1935
        %1937 = vrot.lane.b32.xlu0 %v1240, 96
        %v1938 = vpop.permute.xlu0 %1937
        %1939 = vrot.lane.b32.xlu0 %v1241, 96
        %v1940 = vpop.permute.xlu0 %1939
        %1941 = vrot.lane.b32.xlu0 %v1274, 96
        %v1942 = vpop.permute.xlu0 %1941
        %1943 = vrot.lane.b32.xlu0 %v1275, 96
        %v1944 = vpop.permute.xlu0 %1943
        %1945 = vrot.lane.b32.xlu0 %v1276, 96
        %v1946 = vpop.permute.xlu0 %1945
        %1947 = vrot.lane.b32.xlu0 %v1277, 96
        %v1948 = vpop.permute.xlu0 %1947
        %1949 = vrot.lane.b32.xlu0 %v1278, 96
        %v1950 = vpop.permute.xlu0 %1949
        %1951 = vrot.lane.b32.xlu0 %v1279, 96
        %v1952 = vpop.permute.xlu0 %1951
        %1953 = vrot.lane.b32.xlu0 %v1280, 96
        %v1954 = vpop.permute.xlu0 %1953
        %1955 = vrot.lane.b32.xlu0 %v1281, 96
        %v1956 = vpop.permute.xlu0 %1955
        %v1958 = vsel %vm1282, %v1926, 0
        %v1961 = vsel %vm1282, %v1928, 0
        %v1964 = vsel %vm1282, %v1930, 0
        %v1967 = vsel %vm1282, %v1932, 0
        %v1970 = vsel %vm1282, %v1934, 0
        %v1973 = vsel %vm1282, %v1936, 0
        %v1976 = vsel %vm1282, %v1938, 0
        %v1979 = vsel %vm1282, %v1940, 0
        %v1982 = vsel %vm1282, %v1942, 0
        %v1985 = vsel %vm1282, %v1944, 0
        %v1988 = vsel %vm1282, %v1946, 0
        %v1991 = vsel %vm1282, %v1948, 0
        %v1994 = vsel %vm1282, %v1950, 0
        %v1997 = vsel %vm1282, %v1952, 0
        %v2000 = vsel %vm1282, %v1954, 0
        %v2003 = vsel %vm1282, %v1956, 0
        %2005 = vmatpush.bf16.xpose.msra.mxu0 %v2003
        %2006 = vmatpush.bf16.xpose.msra.mxu0 %v2000
        %2007 = vmatpush.bf16.xpose.msra.mxu0 %v1997
        %2008 = vmatpush.bf16.xpose.msra.mxu0 %v1994
        %2009 = vmatpush.bf16.xpose.msra.mxu0 %v1991
        %2010 = vmatpush.bf16.xpose.msra.mxu0 %v1988
        %2011 = vmatpush.bf16.xpose.msra.mxu0 %v1985
        %2012 = vmatpush.bf16.xpose.msra.mxu0 %v1982
        %2013 = vmatmul.bf16.gmra.mxu0 %v1958
        %v2014 = vpop.f32.mrf.mxu0
        %v2015 = vadd.f32 %v1200, %v2014
        %v2016 = vpop.f32.mrf.mxu0
        %v2017 = vadd.f32 %v1200, %v2016
        %2018 = vmatmul.bf16.gmra.mxu0 %v1961
        %v2019 = vpop.f32.mrf.mxu0
        %v2020 = vadd.f32 %v1200, %v2019
        %v2021 = vpop.f32.mrf.mxu0
        %v2022 = vadd.f32 %v1200, %v2021
        %2023 = vmatmul.bf16.gmra.mxu0 %v1964
        %v2024 = vpop.f32.mrf.mxu0
        %v2025 = vadd.f32 %v1200, %v2024
        %v2026 = vpop.f32.mrf.mxu0
        %v2027 = vadd.f32 %v1200, %v2026
        %2028 = vmatmul.bf16.gmra.mxu0 %v1967
        %v2029 = vpop.f32.mrf.mxu0
        %v2030 = vadd.f32 %v1200, %v2029
        %v2031 = vpop.f32.mrf.mxu0
        %v2032 = vadd.f32 %v1200, %v2031
        %2033 = vmatmul.bf16.gmra.mxu0 %v1970
        %v2034 = vpop.f32.mrf.mxu0
        %v2035 = vadd.f32 %v1200, %v2034
        %v2036 = vpop.f32.mrf.mxu0
        %v2037 = vadd.f32 %v1200, %v2036
        %2038 = vmatmul.bf16.gmra.mxu0 %v1973
        %v2039 = vpop.f32.mrf.mxu0
        %v2040 = vadd.f32 %v1200, %v2039
        %v2041 = vpop.f32.mrf.mxu0
        %v2042 = vadd.f32 %v1200, %v2041
        %2043 = vmatmul.bf16.gmra.mxu0 %v1976
        %v2044 = vpop.f32.mrf.mxu0
        %v2045 = vadd.f32 %v1200, %v2044
        %v2046 = vpop.f32.mrf.mxu0
        %v2047 = vadd.f32 %v1200, %v2046
        %2048 = vmatmul.bf16.gmra.mxu0 %v1979
        %v2049 = vpop.f32.mrf.mxu0
        %v2050 = vadd.f32 %v1200, %v2049
        %v2051 = vpop.f32.mrf.mxu0
        %v2052 = vadd.f32 %v1200, %v2051
        %2053 = vdwg.mxu0
        %2054 = vmax.xlane.f32.xlu0 %v2015
        %v2055 = vpop.xlane.xlu0 %2054
        %2056 = vmax.xlane.f32.xlu0 %v2017
        %v2057 = vpop.xlane.xlu0 %2056
        %2058 = vmax.xlane.f32.xlu0 %v2020
        %v2059 = vpop.xlane.xlu0 %2058
        %2060 = vmax.xlane.f32.xlu0 %v2022
        %v2061 = vpop.xlane.xlu0 %2060
        %2062 = vmax.xlane.f32.xlu0 %v2025
        %v2063 = vpop.xlane.xlu0 %2062
        %2064 = vmax.xlane.f32.xlu0 %v2027
        %v2065 = vpop.xlane.xlu0 %2064
        %2066 = vmax.xlane.f32.xlu0 %v2030
        %v2067 = vpop.xlane.xlu0 %2066
        %2068 = vmax.xlane.f32.xlu0 %v2032
        %v2069 = vpop.xlane.xlu0 %2068
        %2070 = vmax.xlane.f32.xlu0 %v2035
        %v2071 = vpop.xlane.xlu0 %2070
        %2072 = vmax.xlane.f32.xlu0 %v2037
        %v2073 = vpop.xlane.xlu0 %2072
        %2074 = vmax.xlane.f32.xlu0 %v2040
        %v2075 = vpop.xlane.xlu0 %2074
        %2076 = vmax.xlane.f32.xlu0 %v2042
        %v2077 = vpop.xlane.xlu0 %2076
        %2078 = vmax.xlane.f32.xlu0 %v2045
        %v2079 = vpop.xlane.xlu0 %2078
        %2080 = vmax.xlane.f32.xlu0 %v2047
        %v2081 = vpop.xlane.xlu0 %2080
        %2082 = vmax.xlane.f32.xlu0 %v2050
        %v2083 = vpop.xlane.xlu0 %2082
        %2084 = vmax.xlane.f32.xlu0 %v2052
        %v2085 = vpop.xlane.xlu0 %2084
        %v2086 = vsub.f32 %v2015, %v2055
        %v2087 = vsub.f32 %v2017, %v2057
        %v2088 = vsub.f32 %v2020, %v2059
        %v2089 = vsub.f32 %v2022, %v2061
        %v2090 = vsub.f32 %v2025, %v2063
        %v2091 = vsub.f32 %v2027, %v2065
        %v2092 = vsub.f32 %v2030, %v2067
        %v2093 = vsub.f32 %v2032, %v2069
        %v2094 = vsub.f32 %v2035, %v2071
        %v2095 = vsub.f32 %v2037, %v2073
        %v2096 = vsub.f32 %v2040, %v2075
        %v2097 = vsub.f32 %v2042, %v2077
        %v2098 = vsub.f32 %v2045, %v2079
        %v2099 = vsub.f32 %v2047, %v2081
        %v2100 = vsub.f32 %v2050, %v2083
        %v2101 = vsub.f32 %v2052, %v2085
        %v2102 = vmul.f32 %v2086, 1.442695
        %v2103 = vpow.pop %v2102
        %v2104 = vmul.f32 %v2087, 1.442695
        %v2105 = vpow.pop %v2104
        %v2106 = vmul.f32 %v2088, 1.442695
        %v2107 = vpow.pop %v2106
        %v2108 = vmul.f32 %v2089, 1.442695
        %v2109 = vpow.pop %v2108
        %v2110 = vmul.f32 %v2090, 1.442695
        %v2111 = vpow.pop %v2110
        %v2112 = vmul.f32 %v2091, 1.442695
        %v2113 = vpow.pop %v2112
        %v2114 = vmul.f32 %v2092, 1.442695
        %v2115 = vpow.pop %v2114
        %v2116 = vmul.f32 %v2093, 1.442695
        %v2117 = vpow.pop %v2116
        %v2118 = vmul.f32 %v2094, 1.442695
        %v2119 = vpow.pop %v2118
        %v2120 = vmul.f32 %v2095, 1.442695
        %v2121 = vpow.pop %v2120
        %v2122 = vmul.f32 %v2096, 1.442695
        %v2123 = vpow.pop %v2122
        %v2124 = vmul.f32 %v2097, 1.442695
        %v2125 = vpow.pop %v2124
        %v2126 = vmul.f32 %v2098, 1.442695
        %v2127 = vpow.pop %v2126
        %v2128 = vmul.f32 %v2099, 1.442695
        %v2129 = vpow.pop %v2128
        %v2130 = vmul.f32 %v2100, 1.442695
        %v2131 = vpow.pop %v2130
        %v2132 = vmul.f32 %v2101, 1.442695
        %v2133 = vpow.pop %v2132
        %2134 = vadd.xlane.f32.xlu0 %v2103
        %v2135 = vpop.xlane.xlu0 %2134
        %2136 = vadd.xlane.f32.xlu0 %v2105
        %v2137 = vpop.xlane.xlu0 %2136
        %2138 = vadd.xlane.f32.xlu0 %v2107
        %v2139 = vpop.xlane.xlu0 %2138
        %2140 = vadd.xlane.f32.xlu0 %v2109
        %v2141 = vpop.xlane.xlu0 %2140
        %2142 = vadd.xlane.f32.xlu0 %v2111
        %v2143 = vpop.xlane.xlu0 %2142
        %2144 = vadd.xlane.f32.xlu0 %v2113
        %v2145 = vpop.xlane.xlu0 %2144
        %2146 = vadd.xlane.f32.xlu0 %v2115
        %v2147 = vpop.xlane.xlu0 %2146
        %2148 = vadd.xlane.f32.xlu0 %v2117
        %v2149 = vpop.xlane.xlu0 %2148
        %2150 = vadd.xlane.f32.xlu0 %v2119
        %v2151 = vpop.xlane.xlu0 %2150
        %2152 = vadd.xlane.f32.xlu0 %v2121
        %v2153 = vpop.xlane.xlu0 %2152
        %2154 = vadd.xlane.f32.xlu0 %v2123
        %v2155 = vpop.xlane.xlu0 %2154
        %2156 = vadd.xlane.f32.xlu0 %v2125
        %v2157 = vpop.xlane.xlu0 %2156
        %2158 = vadd.xlane.f32.xlu0 %v2127
        %v2159 = vpop.xlane.xlu0 %2158
        %2160 = vadd.xlane.f32.xlu0 %v2129
        %v2161 = vpop.xlane.xlu0 %2160
        %2162 = vadd.xlane.f32.xlu0 %v2131
        %v2163 = vpop.xlane.xlu0 %2162
        %2164 = vadd.xlane.f32.xlu0 %v2133
        %v2165 = vpop.xlane.xlu0 %2164
        %v2166 = vrcp.pop %v2135
        %v2167 = vmul.f32 %v2135, %v2166
        %v2168 = vsub.f32 1.0, %v2167
        %v2169 = vmul.f32 %v2166, %v2168
        %v2170 = vadd.f32 %v2166, %v2169
        %vm2171 = vweird.f32 %v2135
        %vm2172 = vweird.f32 %v2166
        %vm2173 = vmor %vm2171, %vm2172
        %v2174 = vsel %vm2173, %v2166, %v2170
        %v2175 = vand.u32 2147483647, %v2135
        %vm2176 = vcmp.eq.f32.partialorder %v2175, 8.507059e+37
        %v2177 = vand.u32 %v2135, 2147483648
        %v2178 = vor.u32 1.1754944e-38, %v2177
        %v2179 = vsel %vm2176, %v2178, %v2174
        %v2180 = vmul.f32 1.0, %v2179
        %v2181 = vrcp.pop %v2137
        %v2182 = vmul.f32 %v2137, %v2181
        %v2183 = vsub.f32 1.0, %v2182
        %v2184 = vmul.f32 %v2181, %v2183
        %v2185 = vadd.f32 %v2181, %v2184
        %vm2186 = vweird.f32 %v2137
        %vm2187 = vweird.f32 %v2181
        %vm2188 = vmor %vm2186, %vm2187
        %v2189 = vsel %vm2188, %v2181, %v2185
        %v2190 = vand.u32 2147483647, %v2137
        %vm2191 = vcmp.eq.f32.partialorder %v2190, 8.507059e+37
        %v2192 = vand.u32 %v2137, 2147483648
        %v2193 = vor.u32 1.1754944e-38, %v2192
        %v2194 = vsel %vm2191, %v2193, %v2189
        %v2195 = vmul.f32 1.0, %v2194
        %v2196 = vrcp.pop %v2139
        %v2197 = vmul.f32 %v2139, %v2196
        %v2198 = vsub.f32 1.0, %v2197
        %v2199 = vmul.f32 %v2196, %v2198
        %v2200 = vadd.f32 %v2196, %v2199
        %vm2201 = vweird.f32 %v2139
        %vm2202 = vweird.f32 %v2196
        %vm2203 = vmor %vm2201, %vm2202
        %v2204 = vsel %vm2203, %v2196, %v2200
        %v2205 = vand.u32 2147483647, %v2139
        %vm2206 = vcmp.eq.f32.partialorder %v2205, 8.507059e+37
        %v2207 = vand.u32 %v2139, 2147483648
        %v2208 = vor.u32 1.1754944e-38, %v2207
        %v2209 = vsel %vm2206, %v2208, %v2204
        %v2210 = vmul.f32 1.0, %v2209
        %v2211 = vrcp.pop %v2141
        %v2212 = vmul.f32 %v2141, %v2211
        %v2213 = vsub.f32 1.0, %v2212
        %v2214 = vmul.f32 %v2211, %v2213
        %v2215 = vadd.f32 %v2211, %v2214
        %vm2216 = vweird.f32 %v2141
        %vm2217 = vweird.f32 %v2211
        %vm2218 = vmor %vm2216, %vm2217
        %v2219 = vsel %vm2218, %v2211, %v2215
        %v2220 = vand.u32 2147483647, %v2141
        %vm2221 = vcmp.eq.f32.partialorder %v2220, 8.507059e+37
        %v2222 = vand.u32 %v2141, 2147483648
        %v2223 = vor.u32 1.1754944e-38, %v2222
        %v2224 = vsel %vm2221, %v2223, %v2219
        %v2225 = vmul.f32 1.0, %v2224
        %v2226 = vrcp.pop %v2143
        %v2227 = vmul.f32 %v2143, %v2226
        %v2228 = vsub.f32 1.0, %v2227
        %v2229 = vmul.f32 %v2226, %v2228
        %v2230 = vadd.f32 %v2226, %v2229
        %vm2231 = vweird.f32 %v2143
        %vm2232 = vweird.f32 %v2226
        %vm2233 = vmor %vm2231, %vm2232
        %v2234 = vsel %vm2233, %v2226, %v2230
        %v2235 = vand.u32 2147483647, %v2143
        %vm2236 = vcmp.eq.f32.partialorder %v2235, 8.507059e+37
        %v2237 = vand.u32 %v2143, 2147483648
        %v2238 = vor.u32 1.1754944e-38, %v2237
        %v2239 = vsel %vm2236, %v2238, %v2234
        %v2240 = vmul.f32 1.0, %v2239
        %v2241 = vrcp.pop %v2145
        %v2242 = vmul.f32 %v2145, %v2241
        %v2243 = vsub.f32 1.0, %v2242
        %v2244 = vmul.f32 %v2241, %v2243
        %v2245 = vadd.f32 %v2241, %v2244
        %vm2246 = vweird.f32 %v2145
        %vm2247 = vweird.f32 %v2241
        %vm2248 = vmor %vm2246, %vm2247
        %v2249 = vsel %vm2248, %v2241, %v2245
        %v2250 = vand.u32 2147483647, %v2145
        %vm2251 = vcmp.eq.f32.partialorder %v2250, 8.507059e+37
        %v2252 = vand.u32 %v2145, 2147483648
        %v2253 = vor.u32 1.1754944e-38, %v2252
        %v2254 = vsel %vm2251, %v2253, %v2249
        %v2255 = vmul.f32 1.0, %v2254
        %v2256 = vrcp.pop %v2147
        %v2257 = vmul.f32 %v2147, %v2256
        %v2258 = vsub.f32 1.0, %v2257
        %v2259 = vmul.f32 %v2256, %v2258
        %v2260 = vadd.f32 %v2256, %v2259
        %vm2261 = vweird.f32 %v2147
        %vm2262 = vweird.f32 %v2256
        %vm2263 = vmor %vm2261, %vm2262
        %v2264 = vsel %vm2263, %v2256, %v2260
        %v2265 = vand.u32 2147483647, %v2147
        %vm2266 = vcmp.eq.f32.partialorder %v2265, 8.507059e+37
        %v2267 = vand.u32 %v2147, 2147483648
        %v2268 = vor.u32 1.1754944e-38, %v2267
        %v2269 = vsel %vm2266, %v2268, %v2264
        %v2270 = vmul.f32 1.0, %v2269
        %v2271 = vrcp.pop %v2149
        %v2272 = vmul.f32 %v2149, %v2271
        %v2273 = vsub.f32 1.0, %v2272
        %v2274 = vmul.f32 %v2271, %v2273
        %v2275 = vadd.f32 %v2271, %v2274
        %vm2276 = vweird.f32 %v2149
        %vm2277 = vweird.f32 %v2271
        %vm2278 = vmor %vm2276, %vm2277
        %v2279 = vsel %vm2278, %v2271, %v2275
        %v2280 = vand.u32 2147483647, %v2149
        %vm2281 = vcmp.eq.f32.partialorder %v2280, 8.507059e+37
        %v2282 = vand.u32 %v2149, 2147483648
        %v2283 = vor.u32 1.1754944e-38, %v2282
        %v2284 = vsel %vm2281, %v2283, %v2279
        %v2285 = vmul.f32 1.0, %v2284
        %v2286 = vrcp.pop %v2151
        %v2287 = vmul.f32 %v2151, %v2286
        %v2288 = vsub.f32 1.0, %v2287
        %v2289 = vmul.f32 %v2286, %v2288
        %v2290 = vadd.f32 %v2286, %v2289
        %vm2291 = vweird.f32 %v2151
        %vm2292 = vweird.f32 %v2286
        %vm2293 = vmor %vm2291, %vm2292
        %v2294 = vsel %vm2293, %v2286, %v2290
        %v2295 = vand.u32 2147483647, %v2151
        %vm2296 = vcmp.eq.f32.partialorder %v2295, 8.507059e+37
        %v2297 = vand.u32 %v2151, 2147483648
        %v2298 = vor.u32 1.1754944e-38, %v2297
        %v2299 = vsel %vm2296, %v2298, %v2294
        %v2300 = vmul.f32 1.0, %v2299
        %v2301 = vrcp.pop %v2153
        %v2302 = vmul.f32 %v2153, %v2301
        %v2303 = vsub.f32 1.0, %v2302
        %v2304 = vmul.f32 %v2301, %v2303
        %v2305 = vadd.f32 %v2301, %v2304
        %vm2306 = vweird.f32 %v2153
        %vm2307 = vweird.f32 %v2301
        %vm2308 = vmor %vm2306, %vm2307
        %v2309 = vsel %vm2308, %v2301, %v2305
        %v2310 = vand.u32 2147483647, %v2153
        %vm2311 = vcmp.eq.f32.partialorder %v2310, 8.507059e+37
        %v2312 = vand.u32 %v2153, 2147483648
        %v2313 = vor.u32 1.1754944e-38, %v2312
        %v2314 = vsel %vm2311, %v2313, %v2309
        %v2315 = vmul.f32 1.0, %v2314
        %v2316 = vrcp.pop %v2155
        %v2317 = vmul.f32 %v2155, %v2316
        %v2318 = vsub.f32 1.0, %v2317
        %v2319 = vmul.f32 %v2316, %v2318
        %v2320 = vadd.f32 %v2316, %v2319
        %vm2321 = vweird.f32 %v2155
        %vm2322 = vweird.f32 %v2316
        %vm2323 = vmor %vm2321, %vm2322
        %v2324 = vsel %vm2323, %v2316, %v2320
        %v2325 = vand.u32 2147483647, %v2155
        %vm2326 = vcmp.eq.f32.partialorder %v2325, 8.507059e+37
        %v2327 = vand.u32 %v2155, 2147483648
        %v2328 = vor.u32 1.1754944e-38, %v2327
        %v2329 = vsel %vm2326, %v2328, %v2324
        %v2330 = vmul.f32 1.0, %v2329
        %v2331 = vrcp.pop %v2157
        %v2332 = vmul.f32 %v2157, %v2331
        %v2333 = vsub.f32 1.0, %v2332
        %v2334 = vmul.f32 %v2331, %v2333
        %v2335 = vadd.f32 %v2331, %v2334
        %vm2336 = vweird.f32 %v2157
        %vm2337 = vweird.f32 %v2331
        %vm2338 = vmor %vm2336, %vm2337
        %v2339 = vsel %vm2338, %v2331, %v2335
        %v2340 = vand.u32 2147483647, %v2157
        %vm2341 = vcmp.eq.f32.partialorder %v2340, 8.507059e+37
        %v2342 = vand.u32 %v2157, 2147483648
        %v2343 = vor.u32 1.1754944e-38, %v2342
        %v2344 = vsel %vm2341, %v2343, %v2339
        %v2345 = vmul.f32 1.0, %v2344
        %v2346 = vrcp.pop %v2159
        %v2347 = vmul.f32 %v2159, %v2346
        %v2348 = vsub.f32 1.0, %v2347
        %v2349 = vmul.f32 %v2346, %v2348
        %v2350 = vadd.f32 %v2346, %v2349
        %vm2351 = vweird.f32 %v2159
        %vm2352 = vweird.f32 %v2346
        %vm2353 = vmor %vm2351, %vm2352
        %v2354 = vsel %vm2353, %v2346, %v2350
        %v2355 = vand.u32 2147483647, %v2159
        %vm2356 = vcmp.eq.f32.partialorder %v2355, 8.507059e+37
        %v2357 = vand.u32 %v2159, 2147483648
        %v2358 = vor.u32 1.1754944e-38, %v2357
        %v2359 = vsel %vm2356, %v2358, %v2354
        %v2360 = vmul.f32 1.0, %v2359
        %v2361 = vrcp.pop %v2161
        %v2362 = vmul.f32 %v2161, %v2361
        %v2363 = vsub.f32 1.0, %v2362
        %v2364 = vmul.f32 %v2361, %v2363
        %v2365 = vadd.f32 %v2361, %v2364
        %vm2366 = vweird.f32 %v2161
        %vm2367 = vweird.f32 %v2361
        %vm2368 = vmor %vm2366, %vm2367
        %v2369 = vsel %vm2368, %v2361, %v2365
        %v2370 = vand.u32 2147483647, %v2161
        %vm2371 = vcmp.eq.f32.partialorder %v2370, 8.507059e+37
        %v2372 = vand.u32 %v2161, 2147483648
        %v2373 = vor.u32 1.1754944e-38, %v2372
        %v2374 = vsel %vm2371, %v2373, %v2369
        %v2375 = vmul.f32 1.0, %v2374
        %v2376 = vrcp.pop %v2163
        %v2377 = vmul.f32 %v2163, %v2376
        %v2378 = vsub.f32 1.0, %v2377
        %v2379 = vmul.f32 %v2376, %v2378
        %v2380 = vadd.f32 %v2376, %v2379
        %vm2381 = vweird.f32 %v2163
        %vm2382 = vweird.f32 %v2376
        %vm2383 = vmor %vm2381, %vm2382
        %v2384 = vsel %vm2383, %v2376, %v2380
        %v2385 = vand.u32 2147483647, %v2163
        %vm2386 = vcmp.eq.f32.partialorder %v2385, 8.507059e+37
        %v2387 = vand.u32 %v2163, 2147483648
        %v2388 = vor.u32 1.1754944e-38, %v2387
        %v2389 = vsel %vm2386, %v2388, %v2384
        %v2390 = vmul.f32 1.0, %v2389
        %v2391 = vrcp.pop %v2165
        %v2392 = vmul.f32 %v2165, %v2391
        %v2393 = vsub.f32 1.0, %v2392
        %v2394 = vmul.f32 %v2391, %v2393
        %v2395 = vadd.f32 %v2391, %v2394
        %vm2396 = vweird.f32 %v2165
        %vm2397 = vweird.f32 %v2391
        %vm2398 = vmor %vm2396, %vm2397
        %v2399 = vsel %vm2398, %v2391, %v2395
        %v2400 = vand.u32 2147483647, %v2165
        %vm2401 = vcmp.eq.f32.partialorder %v2400, 8.507059e+37
        %v2402 = vand.u32 %v2165, 2147483648
        %v2403 = vor.u32 1.1754944e-38, %v2402
        %v2404 = vsel %vm2401, %v2403, %v2399
        %v2405 = vmul.f32 1.0, %v2404
        %v2406 = vmul.f32 %v2103, %v2180
        %v2407 = vmul.f32 %v2105, %v2195
        %v2408 = vmul.f32 %v2107, %v2210
        %v2409 = vmul.f32 %v2109, %v2225
        %v2410 = vmul.f32 %v2111, %v2240
        %v2411 = vmul.f32 %v2113, %v2255
        %v2412 = vmul.f32 %v2115, %v2270
        %v2413 = vmul.f32 %v2117, %v2285
        %v2414 = vmul.f32 %v2119, %v2300
        %v2415 = vmul.f32 %v2121, %v2315
        %v2416 = vmul.f32 %v2123, %v2330
        %v2417 = vmul.f32 %v2125, %v2345
        %v2418 = vmul.f32 %v2127, %v2360
        %v2419 = vmul.f32 %v2129, %v2375
        %v2420 = vmul.f32 %v2131, %v2390
        %v2421 = vmul.f32 %v2133, %v2405
        %v2422 = vpack.c.bf16 %v2406, %v2406
        %v2423 = vpack.c.bf16 %v2407, %v2407
        %v2424 = vpack.c.bf16 %v2408, %v2408
        %v2425 = vpack.c.bf16 %v2409, %v2409
        %v2426 = vpack.c.bf16 %v2410, %v2410
        %v2427 = vpack.c.bf16 %v2411, %v2411
        %v2428 = vpack.c.bf16 %v2412, %v2412
        %v2429 = vpack.c.bf16 %v2413, %v2413
        %v2430 = vpack.c.bf16 %v2414, %v2414
        %v2431 = vpack.c.bf16 %v2415, %v2415
        %v2432 = vpack.c.bf16 %v2416, %v2416
        %v2433 = vpack.c.bf16 %v2417, %v2417
        %v2434 = vpack.c.bf16 %v2418, %v2418
        %v2435 = vpack.c.bf16 %v2419, %v2419
        %v2436 = vpack.c.bf16 %v2420, %v2420
        %v2437 = vpack.c.bf16 %v2421, %v2421
        %s2438 = scalar_lea.vmem %s570, 64 [#allocation15]
        %2439 = vst [vmem:[%s2438] sm:$0xf] %v2422
        %2440 = vst [vmem:[%s2438 + $0x4] sm:$0xf] %v2423
        %2441 = vst [vmem:[%s2438 + $0x8] sm:$0xf] %v2424
        %2442 = vst [vmem:[%s2438 + $0xc] sm:$0xf] %v2425
        %2443 = vst [vmem:[%s2438 + $0x10] sm:$0xf] %v2426
        %2444 = vst [vmem:[%s2438 + $0x14] sm:$0xf] %v2427
        %2445 = vst [vmem:[%s2438 + $0x18] sm:$0xf] %v2428
        %2446 = vst [vmem:[%s2438 + $0x1c] sm:$0xf] %v2429
        %2447 = vst [vmem:[%s2438 + $0x20] sm:$0xf] %v2430
        %2448 = vst [vmem:[%s2438 + $0x24] sm:$0xf] %v2431
        %2449 = vst [vmem:[%s2438 + $0x28] sm:$0xf] %v2432
        %2450 = vst [vmem:[%s2438 + $0x2c] sm:$0xf] %v2433
        %2451 = vst [vmem:[%s2438 + $0x30] sm:$0xf] %v2434
        %2452 = vst [vmem:[%s2438 + $0x34] sm:$0xf] %v2435
        %2453 = vst [vmem:[%s2438 + $0x38] sm:$0xf] %v2436
        %2454 = vst [vmem:[%s2438 + $0x3c] sm:$0xf] %v2437
        %v2471 = vunpack.c.l.b16 %v2422
        %v2472 = vunpack.c.l.b16 %v2423
        %v2473 = vunpack.c.l.b16 %v2424
        %v2474 = vunpack.c.l.b16 %v2425
        %v2475 = vunpack.c.l.b16 %v2426
        %v2476 = vunpack.c.l.b16 %v2427
        %v2477 = vunpack.c.l.b16 %v2428
        %v2478 = vunpack.c.l.b16 %v2429
        %v2479 = vunpack.c.l.b16 %v2430
        %v2480 = vunpack.c.l.b16 %v2431
        %v2481 = vunpack.c.l.b16 %v2432
        %v2482 = vunpack.c.l.b16 %v2433
        %v2483 = vunpack.c.l.b16 %v2434
        %v2484 = vunpack.c.l.b16 %v2435
        %v2485 = vunpack.c.l.b16 %v2436
        %v2486 = vunpack.c.l.b16 %v2437
        %v2487 = vpack.c.b16 %v2472, %v2471
        %v2488 = vpack.c.b16 %v2474, %v2473
        %v2489 = vpack.c.b16 %v2476, %v2475
        %v2490 = vpack.c.b16 %v2478, %v2477
        %v2491 = vpack.c.b16 %v2480, %v2479
        %v2492 = vpack.c.b16 %v2482, %v2481
        %v2493 = vpack.c.b16 %v2484, %v2483
        %v2494 = vpack.c.b16 %v2486, %v2485
        %2503 = vrot.lane.b32.xlu0 %v1860, 96
        %v2504 = vpop.permute.xlu0 %2503
        %2505 = vrot.lane.b32.xlu0 %v1861, 96
        %v2506 = vpop.permute.xlu0 %2505
        %2507 = vrot.lane.b32.xlu0 %v1862, 96
        %v2508 = vpop.permute.xlu0 %2507
        %2509 = vrot.lane.b32.xlu0 %v1863, 96
        %v2510 = vpop.permute.xlu0 %2509
        %2511 = vrot.lane.b32.xlu0 %v1864, 96
        %v2512 = vpop.permute.xlu0 %2511
        %2513 = vrot.lane.b32.xlu0 %v1865, 96
        %v2514 = vpop.permute.xlu0 %2513
        %2515 = vrot.lane.b32.xlu0 %v1866, 96
        %v2516 = vpop.permute.xlu0 %2515
        %2517 = vrot.lane.b32.xlu0 %v1867, 96
        %v2518 = vpop.permute.xlu0 %2517
        %2527 = vmatpush.bf16.msra.mxu0 %v2518
        %2528 = vmatpush.bf16.msra.mxu0 %v2516
        %2529 = vmatpush.bf16.msra.mxu0 %v2514
        %2530 = vmatpush.bf16.msra.mxu0 %v2512
        %2531 = vmatpush.bf16.msra.mxu0 %v2510
        %2532 = vmatpush.bf16.msra.mxu0 %v2508
        %2533 = vmatpush.bf16.msra.mxu0 %v2506
        %2534 = vmatpush.bf16.msra.mxu0 %v2504
        %2535 = vmatmul.bf16.gmra.mxu0 %v2487
        %v2536 = vpop.f32.mrf.mxu0
        %v2537 = vadd.f32 0.0, %v2536
        %v2538 = vpop.f32.mrf.mxu0
        %v2539 = vadd.f32 0.0, %v2538
        %2540 = vmatmul.bf16.gmra.mxu0 %v2488
        %v2541 = vpop.f32.mrf.mxu0
        %v2542 = vadd.f32 0.0, %v2541
        %v2543 = vpop.f32.mrf.mxu0
        %v2544 = vadd.f32 0.0, %v2543
        %2545 = vmatmul.bf16.gmra.mxu0 %v2489
        %v2546 = vpop.f32.mrf.mxu0
        %v2547 = vadd.f32 0.0, %v2546
        %v2548 = vpop.f32.mrf.mxu0
        %v2549 = vadd.f32 0.0, %v2548
        %2550 = vmatmul.bf16.gmra.mxu0 %v2490
        %v2551 = vpop.f32.mrf.mxu0
        %v2552 = vadd.f32 0.0, %v2551
        %v2553 = vpop.f32.mrf.mxu0
        %v2554 = vadd.f32 0.0, %v2553
        %2555 = vmatmul.bf16.gmra.mxu0 %v2491
        %v2556 = vpop.f32.mrf.mxu0
        %v2557 = vadd.f32 0.0, %v2556
        %v2558 = vpop.f32.mrf.mxu0
        %v2559 = vadd.f32 0.0, %v2558
        %2560 = vmatmul.bf16.gmra.mxu0 %v2492
        %v2561 = vpop.f32.mrf.mxu0
        %v2562 = vadd.f32 0.0, %v2561
        %v2563 = vpop.f32.mrf.mxu0
        %v2564 = vadd.f32 0.0, %v2563
        %2565 = vmatmul.bf16.gmra.mxu0 %v2493
        %v2566 = vpop.f32.mrf.mxu0
        %v2567 = vadd.f32 0.0, %v2566
        %v2568 = vpop.f32.mrf.mxu0
        %v2569 = vadd.f32 0.0, %v2568
        %2570 = vmatmul.bf16.gmra.mxu0 %v2494
        %v2571 = vpop.f32.mrf.mxu0
        %v2572 = vadd.f32 0.0, %v2571
        %v2573 = vpop.f32.mrf.mxu0
        %v2574 = vadd.f32 0.0, %v2573
        %2575 = vdwg.mxu0
        %2576 = vrot.lane.b32.xlu0 %v1234, 64
        %v2577 = vpop.permute.xlu0 %2576
        %2578 = vrot.lane.b32.xlu0 %v1235, 64
        %v2579 = vpop.permute.xlu0 %2578
        %2580 = vrot.lane.b32.xlu0 %v1236, 64
        %v2581 = vpop.permute.xlu0 %2580
        %2582 = vrot.lane.b32.xlu0 %v1237, 64
        %v2583 = vpop.permute.xlu0 %2582
        %2584 = vrot.lane.b32.xlu0 %v1238, 64
        %v2585 = vpop.permute.xlu0 %2584
        %2586 = vrot.lane.b32.xlu0 %v1239, 64
        %v2587 = vpop.permute.xlu0 %2586
        %2588 = vrot.lane.b32.xlu0 %v1240, 64
        %v2589 = vpop.permute.xlu0 %2588
        %2590 = vrot.lane.b32.xlu0 %v1241, 64
        %v2591 = vpop.permute.xlu0 %2590
        %2592 = vrot.lane.b32.xlu0 %v1274, 64
        %v2593 = vpop.permute.xlu0 %2592
        %2594 = vrot.lane.b32.xlu0 %v1275, 64
        %v2595 = vpop.permute.xlu0 %2594
        %2596 = vrot.lane.b32.xlu0 %v1276, 64
        %v2597 = vpop.permute.xlu0 %2596
        %2598 = vrot.lane.b32.xlu0 %v1277, 64
        %v2599 = vpop.permute.xlu0 %2598
        %2600 = vrot.lane.b32.xlu0 %v1278, 64
        %v2601 = vpop.permute.xlu0 %2600
        %2602 = vrot.lane.b32.xlu0 %v1279, 64
        %v2603 = vpop.permute.xlu0 %2602
        %2604 = vrot.lane.b32.xlu0 %v1280, 64
        %v2605 = vpop.permute.xlu0 %2604
        %2606 = vrot.lane.b32.xlu0 %v1281, 64
        %v2607 = vpop.permute.xlu0 %2606
        %v2609 = vsel %vm1282, %v2577, 0
        %v2612 = vsel %vm1282, %v2579, 0
        %v2615 = vsel %vm1282, %v2581, 0
        %v2618 = vsel %vm1282, %v2583, 0
        %v2621 = vsel %vm1282, %v2585, 0
        %v2624 = vsel %vm1282, %v2587, 0
        %v2627 = vsel %vm1282, %v2589, 0
        %v2630 = vsel %vm1282, %v2591, 0
        %v2633 = vsel %vm1282, %v2593, 0
        %v2636 = vsel %vm1282, %v2595, 0
        %v2639 = vsel %vm1282, %v2597, 0
        %v2642 = vsel %vm1282, %v2599, 0
        %v2645 = vsel %vm1282, %v2601, 0
        %v2648 = vsel %vm1282, %v2603, 0
        %v2651 = vsel %vm1282, %v2605, 0
        %v2654 = vsel %vm1282, %v2607, 0
        %2656 = vmatpush.bf16.xpose.msra.mxu0 %v2654
        %2657 = vmatpush.bf16.xpose.msra.mxu0 %v2651
        %2658 = vmatpush.bf16.xpose.msra.mxu0 %v2648
        %2659 = vmatpush.bf16.xpose.msra.mxu0 %v2645
        %2660 = vmatpush.bf16.xpose.msra.mxu0 %v2642
        %2661 = vmatpush.bf16.xpose.msra.mxu0 %v2639
        %2662 = vmatpush.bf16.xpose.msra.mxu0 %v2636
        %2663 = vmatpush.bf16.xpose.msra.mxu0 %v2633
        %2664 = vmatmul.bf16.gmra.mxu0 %v2609
        %v2665 = vpop.f32.mrf.mxu0
        %v2666 = vadd.f32 %v1200, %v2665
        %v2667 = vpop.f32.mrf.mxu0
        %v2668 = vadd.f32 %v1200, %v2667
        %2669 = vmatmul.bf16.gmra.mxu0 %v2612
        %v2670 = vpop.f32.mrf.mxu0
        %v2671 = vadd.f32 %v1200, %v2670
        %v2672 = vpop.f32.mrf.mxu0
        %v2673 = vadd.f32 %v1200, %v2672
        %2674 = vmatmul.bf16.gmra.mxu0 %v2615
        %v2675 = vpop.f32.mrf.mxu0
        %v2676 = vadd.f32 %v1200, %v2675
        %v2677 = vpop.f32.mrf.mxu0
        %v2678 = vadd.f32 %v1200, %v2677
        %2679 = vmatmul.bf16.gmra.mxu0 %v2618
        %v2680 = vpop.f32.mrf.mxu0
        %v2681 = vadd.f32 %v1200, %v2680
        %v2682 = vpop.f32.mrf.mxu0
        %v2683 = vadd.f32 %v1200, %v2682
        %2684 = vmatmul.bf16.gmra.mxu0 %v2621
        %v2685 = vpop.f32.mrf.mxu0
        %v2686 = vadd.f32 %v1200, %v2685
        %v2687 = vpop.f32.mrf.mxu0
        %v2688 = vadd.f32 %v1200, %v2687
        %2689 = vmatmul.bf16.gmra.mxu0 %v2624
        %v2690 = vpop.f32.mrf.mxu0
        %v2691 = vadd.f32 %v1200, %v2690
        %v2692 = vpop.f32.mrf.mxu0
        %v2693 = vadd.f32 %v1200, %v2692
        %2694 = vmatmul.bf16.gmra.mxu0 %v2627
        %v2695 = vpop.f32.mrf.mxu0
        %v2696 = vadd.f32 %v1200, %v2695
        %v2697 = vpop.f32.mrf.mxu0
        %v2698 = vadd.f32 %v1200, %v2697
        %2699 = vmatmul.bf16.gmra.mxu0 %v2630
        %v2700 = vpop.f32.mrf.mxu0
        %v2701 = vadd.f32 %v1200, %v2700
        %v2702 = vpop.f32.mrf.mxu0
        %v2703 = vadd.f32 %v1200, %v2702
        %2704 = vdwg.mxu0
        %2705 = vmax.xlane.f32.xlu0 %v2666
        %v2706 = vpop.xlane.xlu0 %2705
        %2707 = vmax.xlane.f32.xlu0 %v2668
        %v2708 = vpop.xlane.xlu0 %2707
        %2709 = vmax.xlane.f32.xlu0 %v2671
        %v2710 = vpop.xlane.xlu0 %2709
        %2711 = vmax.xlane.f32.xlu0 %v2673
        %v2712 = vpop.xlane.xlu0 %2711
        %2713 = vmax.xlane.f32.xlu0 %v2676
        %v2714 = vpop.xlane.xlu0 %2713
        %2715 = vmax.xlane.f32.xlu0 %v2678
        %v2716 = vpop.xlane.xlu0 %2715
        %2717 = vmax.xlane.f32.xlu0 %v2681
        %v2718 = vpop.xlane.xlu0 %2717
        %2719 = vmax.xlane.f32.xlu0 %v2683
        %v2720 = vpop.xlane.xlu0 %2719
        %2721 = vmax.xlane.f32.xlu0 %v2686
        %v2722 = vpop.xlane.xlu0 %2721
        %2723 = vmax.xlane.f32.xlu0 %v2688
        %v2724 = vpop.xlane.xlu0 %2723
        %2725 = vmax.xlane.f32.xlu0 %v2691
        %v2726 = vpop.xlane.xlu0 %2725
        %2727 = vmax.xlane.f32.xlu0 %v2693
        %v2728 = vpop.xlane.xlu0 %2727
        %2729 = vmax.xlane.f32.xlu0 %v2696
        %v2730 = vpop.xlane.xlu0 %2729
        %2731 = vmax.xlane.f32.xlu0 %v2698
        %v2732 = vpop.xlane.xlu0 %2731
        %2733 = vmax.xlane.f32.xlu0 %v2701
        %v2734 = vpop.xlane.xlu0 %2733
        %2735 = vmax.xlane.f32.xlu0 %v2703
        %v2736 = vpop.xlane.xlu0 %2735
        %v2737 = vsub.f32 %v2666, %v2706
        %v2738 = vsub.f32 %v2668, %v2708
        %v2739 = vsub.f32 %v2671, %v2710
        %v2740 = vsub.f32 %v2673, %v2712
        %v2741 = vsub.f32 %v2676, %v2714
        %v2742 = vsub.f32 %v2678, %v2716
        %v2743 = vsub.f32 %v2681, %v2718
        %v2744 = vsub.f32 %v2683, %v2720
        %v2745 = vsub.f32 %v2686, %v2722
        %v2746 = vsub.f32 %v2688, %v2724
        %v2747 = vsub.f32 %v2691, %v2726
        %v2748 = vsub.f32 %v2693, %v2728
        %v2749 = vsub.f32 %v2696, %v2730
        %v2750 = vsub.f32 %v2698, %v2732
        %v2751 = vsub.f32 %v2701, %v2734
        %v2752 = vsub.f32 %v2703, %v2736
        %v2753 = vmul.f32 %v2737, 1.442695
        %v2754 = vpow.pop %v2753
        %v2755 = vmul.f32 %v2738, 1.442695
        %v2756 = vpow.pop %v2755
        %v2757 = vmul.f32 %v2739, 1.442695
        %v2758 = vpow.pop %v2757
        %v2759 = vmul.f32 %v2740, 1.442695
        %v2760 = vpow.pop %v2759
        %v2761 = vmul.f32 %v2741, 1.442695
        %v2762 = vpow.pop %v2761
        %v2763 = vmul.f32 %v2742, 1.442695
        %v2764 = vpow.pop %v2763
        %v2765 = vmul.f32 %v2743, 1.442695
        %v2766 = vpow.pop %v2765
        %v2767 = vmul.f32 %v2744, 1.442695
        %v2768 = vpow.pop %v2767
        %v2769 = vmul.f32 %v2745, 1.442695
        %v2770 = vpow.pop %v2769
        %v2771 = vmul.f32 %v2746, 1.442695
        %v2772 = vpow.pop %v2771
        %v2773 = vmul.f32 %v2747, 1.442695
        %v2774 = vpow.pop %v2773
        %v2775 = vmul.f32 %v2748, 1.442695
        %v2776 = vpow.pop %v2775
        %v2777 = vmul.f32 %v2749, 1.442695
        %v2778 = vpow.pop %v2777
        %v2779 = vmul.f32 %v2750, 1.442695
        %v2780 = vpow.pop %v2779
        %v2781 = vmul.f32 %v2751, 1.442695
        %v2782 = vpow.pop %v2781
        %v2783 = vmul.f32 %v2752, 1.442695
        %v2784 = vpow.pop %v2783
        %2785 = vadd.xlane.f32.xlu0 %v2754
        %v2786 = vpop.xlane.xlu0 %2785
        %2787 = vadd.xlane.f32.xlu0 %v2756
        %v2788 = vpop.xlane.xlu0 %2787
        %2789 = vadd.xlane.f32.xlu0 %v2758
        %v2790 = vpop.xlane.xlu0 %2789
        %2791 = vadd.xlane.f32.xlu0 %v2760
        %v2792 = vpop.xlane.xlu0 %2791
        %2793 = vadd.xlane.f32.xlu0 %v2762
        %v2794 = vpop.xlane.xlu0 %2793
        %2795 = vadd.xlane.f32.xlu0 %v2764
        %v2796 = vpop.xlane.xlu0 %2795
        %2797 = vadd.xlane.f32.xlu0 %v2766
        %v2798 = vpop.xlane.xlu0 %2797
        %2799 = vadd.xlane.f32.xlu0 %v2768
        %v2800 = vpop.xlane.xlu0 %2799
        %2801 = vadd.xlane.f32.xlu0 %v2770
        %v2802 = vpop.xlane.xlu0 %2801
        %2803 = vadd.xlane.f32.xlu0 %v2772
        %v2804 = vpop.xlane.xlu0 %2803
        %2805 = vadd.xlane.f32.xlu0 %v2774
        %v2806 = vpop.xlane.xlu0 %2805
        %2807 = vadd.xlane.f32.xlu0 %v2776
        %v2808 = vpop.xlane.xlu0 %2807
        %2809 = vadd.xlane.f32.xlu0 %v2778
        %v2810 = vpop.xlane.xlu0 %2809
        %2811 = vadd.xlane.f32.xlu0 %v2780
        %v2812 = vpop.xlane.xlu0 %2811
        %2813 = vadd.xlane.f32.xlu0 %v2782
        %v2814 = vpop.xlane.xlu0 %2813
        %2815 = vadd.xlane.f32.xlu0 %v2784
        %v2816 = vpop.xlane.xlu0 %2815
        %v2817 = vrcp.pop %v2786
        %v2818 = vmul.f32 %v2786, %v2817
        %v2819 = vsub.f32 1.0, %v2818
        %v2820 = vmul.f32 %v2817, %v2819
        %v2821 = vadd.f32 %v2817, %v2820
        %vm2822 = vweird.f32 %v2786
        %vm2823 = vweird.f32 %v2817
        %vm2824 = vmor %vm2822, %vm2823
        %v2825 = vsel %vm2824, %v2817, %v2821
        %v2826 = vand.u32 2147483647, %v2786
        %vm2827 = vcmp.eq.f32.partialorder %v2826, 8.507059e+37
        %v2828 = vand.u32 %v2786, 2147483648
        %v2829 = vor.u32 1.1754944e-38, %v2828
        %v2830 = vsel %vm2827, %v2829, %v2825
        %v2831 = vmul.f32 1.0, %v2830
        %v2832 = vrcp.pop %v2788
        %v2833 = vmul.f32 %v2788, %v2832
        %v2834 = vsub.f32 1.0, %v2833
        %v2835 = vmul.f32 %v2832, %v2834
        %v2836 = vadd.f32 %v2832, %v2835
        %vm2837 = vweird.f32 %v2788
        %vm2838 = vweird.f32 %v2832
        %vm2839 = vmor %vm2837, %vm2838
        %v2840 = vsel %vm2839, %v2832, %v2836
        %v2841 = vand.u32 2147483647, %v2788
        %vm2842 = vcmp.eq.f32.partialorder %v2841, 8.507059e+37
        %v2843 = vand.u32 %v2788, 2147483648
        %v2844 = vor.u32 1.1754944e-38, %v2843
        %v2845 = vsel %vm2842, %v2844, %v2840
        %v2846 = vmul.f32 1.0, %v2845
        %v2847 = vrcp.pop %v2790
        %v2848 = vmul.f32 %v2790, %v2847
        %v2849 = vsub.f32 1.0, %v2848
        %v2850 = vmul.f32 %v2847, %v2849
        %v2851 = vadd.f32 %v2847, %v2850
        %vm2852 = vweird.f32 %v2790
        %vm2853 = vweird.f32 %v2847
        %vm2854 = vmor %vm2852, %vm2853
        %v2855 = vsel %vm2854, %v2847, %v2851
        %v2856 = vand.u32 2147483647, %v2790
        %vm2857 = vcmp.eq.f32.partialorder %v2856, 8.507059e+37
        %v2858 = vand.u32 %v2790, 2147483648
        %v2859 = vor.u32 1.1754944e-38, %v2858
        %v2860 = vsel %vm2857, %v2859, %v2855
        %v2861 = vmul.f32 1.0, %v2860
        %v2862 = vrcp.pop %v2792
        %v2863 = vmul.f32 %v2792, %v2862
        %v2864 = vsub.f32 1.0, %v2863
        %v2865 = vmul.f32 %v2862, %v2864
        %v2866 = vadd.f32 %v2862, %v2865
        %vm2867 = vweird.f32 %v2792
        %vm2868 = vweird.f32 %v2862
        %vm2869 = vmor %vm2867, %vm2868
        %v2870 = vsel %vm2869, %v2862, %v2866
        %v2871 = vand.u32 2147483647, %v2792
        %vm2872 = vcmp.eq.f32.partialorder %v2871, 8.507059e+37
        %v2873 = vand.u32 %v2792, 2147483648
        %v2874 = vor.u32 1.1754944e-38, %v2873
        %v2875 = vsel %vm2872, %v2874, %v2870
        %v2876 = vmul.f32 1.0, %v2875
        %v2877 = vrcp.pop %v2794
        %v2878 = vmul.f32 %v2794, %v2877
        %v2879 = vsub.f32 1.0, %v2878
        %v2880 = vmul.f32 %v2877, %v2879
        %v2881 = vadd.f32 %v2877, %v2880
        %vm2882 = vweird.f32 %v2794
        %vm2883 = vweird.f32 %v2877
        %vm2884 = vmor %vm2882, %vm2883
        %v2885 = vsel %vm2884, %v2877, %v2881
        %v2886 = vand.u32 2147483647, %v2794
        %vm2887 = vcmp.eq.f32.partialorder %v2886, 8.507059e+37
        %v2888 = vand.u32 %v2794, 2147483648
        %v2889 = vor.u32 1.1754944e-38, %v2888
        %v2890 = vsel %vm2887, %v2889, %v2885
        %v2891 = vmul.f32 1.0, %v2890
        %v2892 = vrcp.pop %v2796
        %v2893 = vmul.f32 %v2796, %v2892
        %v2894 = vsub.f32 1.0, %v2893
        %v2895 = vmul.f32 %v2892, %v2894
        %v2896 = vadd.f32 %v2892, %v2895
        %vm2897 = vweird.f32 %v2796
        %vm2898 = vweird.f32 %v2892
        %vm2899 = vmor %vm2897, %vm2898
        %v2900 = vsel %vm2899, %v2892, %v2896
        %v2901 = vand.u32 2147483647, %v2796
        %vm2902 = vcmp.eq.f32.partialorder %v2901, 8.507059e+37
        %v2903 = vand.u32 %v2796, 2147483648
        %v2904 = vor.u32 1.1754944e-38, %v2903
        %v2905 = vsel %vm2902, %v2904, %v2900
        %v2906 = vmul.f32 1.0, %v2905
        %v2907 = vrcp.pop %v2798
        %v2908 = vmul.f32 %v2798, %v2907
        %v2909 = vsub.f32 1.0, %v2908
        %v2910 = vmul.f32 %v2907, %v2909
        %v2911 = vadd.f32 %v2907, %v2910
        %vm2912 = vweird.f32 %v2798
        %vm2913 = vweird.f32 %v2907
        %vm2914 = vmor %vm2912, %vm2913
        %v2915 = vsel %vm2914, %v2907, %v2911
        %v2916 = vand.u32 2147483647, %v2798
        %vm2917 = vcmp.eq.f32.partialorder %v2916, 8.507059e+37
        %v2918 = vand.u32 %v2798, 2147483648
        %v2919 = vor.u32 1.1754944e-38, %v2918
        %v2920 = vsel %vm2917, %v2919, %v2915
        %v2921 = vmul.f32 1.0, %v2920
        %v2922 = vrcp.pop %v2800
        %v2923 = vmul.f32 %v2800, %v2922
        %v2924 = vsub.f32 1.0, %v2923
        %v2925 = vmul.f32 %v2922, %v2924
        %v2926 = vadd.f32 %v2922, %v2925
        %vm2927 = vweird.f32 %v2800
        %vm2928 = vweird.f32 %v2922
        %vm2929 = vmor %vm2927, %vm2928
        %v2930 = vsel %vm2929, %v2922, %v2926
        %v2931 = vand.u32 2147483647, %v2800
        %vm2932 = vcmp.eq.f32.partialorder %v2931, 8.507059e+37
        %v2933 = vand.u32 %v2800, 2147483648
        %v2934 = vor.u32 1.1754944e-38, %v2933
        %v2935 = vsel %vm2932, %v2934, %v2930
        %v2936 = vmul.f32 1.0, %v2935
        %v2937 = vrcp.pop %v2802
        %v2938 = vmul.f32 %v2802, %v2937
        %v2939 = vsub.f32 1.0, %v2938
        %v2940 = vmul.f32 %v2937, %v2939
        %v2941 = vadd.f32 %v2937, %v2940
        %vm2942 = vweird.f32 %v2802
        %vm2943 = vweird.f32 %v2937
        %vm2944 = vmor %vm2942, %vm2943
        %v2945 = vsel %vm2944, %v2937, %v2941
        %v2946 = vand.u32 2147483647, %v2802
        %vm2947 = vcmp.eq.f32.partialorder %v2946, 8.507059e+37
        %v2948 = vand.u32 %v2802, 2147483648
        %v2949 = vor.u32 1.1754944e-38, %v2948
        %v2950 = vsel %vm2947, %v2949, %v2945
        %v2951 = vmul.f32 1.0, %v2950
        %v2952 = vrcp.pop %v2804
        %v2953 = vmul.f32 %v2804, %v2952
        %v2954 = vsub.f32 1.0, %v2953
        %v2955 = vmul.f32 %v2952, %v2954
        %v2956 = vadd.f32 %v2952, %v2955
        %vm2957 = vweird.f32 %v2804
        %vm2958 = vweird.f32 %v2952
        %vm2959 = vmor %vm2957, %vm2958
        %v2960 = vsel %vm2959, %v2952, %v2956
        %v2961 = vand.u32 2147483647, %v2804
        %vm2962 = vcmp.eq.f32.partialorder %v2961, 8.507059e+37
        %v2963 = vand.u32 %v2804, 2147483648
        %v2964 = vor.u32 1.1754944e-38, %v2963
        %v2965 = vsel %vm2962, %v2964, %v2960
        %v2966 = vmul.f32 1.0, %v2965
        %v2967 = vrcp.pop %v2806
        %v2968 = vmul.f32 %v2806, %v2967
        %v2969 = vsub.f32 1.0, %v2968
        %v2970 = vmul.f32 %v2967, %v2969
        %v2971 = vadd.f32 %v2967, %v2970
        %vm2972 = vweird.f32 %v2806
        %vm2973 = vweird.f32 %v2967
        %vm2974 = vmor %vm2972, %vm2973
        %v2975 = vsel %vm2974, %v2967, %v2971
        %v2976 = vand.u32 2147483647, %v2806
        %vm2977 = vcmp.eq.f32.partialorder %v2976, 8.507059e+37
        %v2978 = vand.u32 %v2806, 2147483648
        %v2979 = vor.u32 1.1754944e-38, %v2978
        %v2980 = vsel %vm2977, %v2979, %v2975
        %v2981 = vmul.f32 1.0, %v2980
        %v2982 = vrcp.pop %v2808
        %v2983 = vmul.f32 %v2808, %v2982
        %v2984 = vsub.f32 1.0, %v2983
        %v2985 = vmul.f32 %v2982, %v2984
        %v2986 = vadd.f32 %v2982, %v2985
        %vm2987 = vweird.f32 %v2808
        %vm2988 = vweird.f32 %v2982
        %vm2989 = vmor %vm2987, %vm2988
        %v2990 = vsel %vm2989, %v2982, %v2986
        %v2991 = vand.u32 2147483647, %v2808
        %vm2992 = vcmp.eq.f32.partialorder %v2991, 8.507059e+37
        %v2993 = vand.u32 %v2808, 2147483648
        %v2994 = vor.u32 1.1754944e-38, %v2993
        %v2995 = vsel %vm2992, %v2994, %v2990
        %v2996 = vmul.f32 1.0, %v2995
        %v2997 = vrcp.pop %v2810
        %v2998 = vmul.f32 %v2810, %v2997
        %v2999 = vsub.f32 1.0, %v2998
        %v3000 = vmul.f32 %v2997, %v2999
        %v3001 = vadd.f32 %v2997, %v3000
        %vm3002 = vweird.f32 %v2810
        %vm3003 = vweird.f32 %v2997
        %vm3004 = vmor %vm3002, %vm3003
        %v3005 = vsel %vm3004, %v2997, %v3001
        %v3006 = vand.u32 2147483647, %v2810
        %vm3007 = vcmp.eq.f32.partialorder %v3006, 8.507059e+37
        %v3008 = vand.u32 %v2810, 2147483648
        %v3009 = vor.u32 1.1754944e-38, %v3008
        %v3010 = vsel %vm3007, %v3009, %v3005
        %v3011 = vmul.f32 1.0, %v3010
        %v3012 = vrcp.pop %v2812
        %v3013 = vmul.f32 %v2812, %v3012
        %v3014 = vsub.f32 1.0, %v3013
        %v3015 = vmul.f32 %v3012, %v3014
        %v3016 = vadd.f32 %v3012, %v3015
        %vm3017 = vweird.f32 %v2812
        %vm3018 = vweird.f32 %v3012
        %vm3019 = vmor %vm3017, %vm3018
        %v3020 = vsel %vm3019, %v3012, %v3016
        %v3021 = vand.u32 2147483647, %v2812
        %vm3022 = vcmp.eq.f32.partialorder %v3021, 8.507059e+37
        %v3023 = vand.u32 %v2812, 2147483648
        %v3024 = vor.u32 1.1754944e-38, %v3023
        %v3025 = vsel %vm3022, %v3024, %v3020
        %v3026 = vmul.f32 1.0, %v3025
        %v3027 = vrcp.pop %v2814
        %v3028 = vmul.f32 %v2814, %v3027
        %v3029 = vsub.f32 1.0, %v3028
        %v3030 = vmul.f32 %v3027, %v3029
        %v3031 = vadd.f32 %v3027, %v3030
        %vm3032 = vweird.f32 %v2814
        %vm3033 = vweird.f32 %v3027
        %vm3034 = vmor %vm3032, %vm3033
        %v3035 = vsel %vm3034, %v3027, %v3031
        %v3036 = vand.u32 2147483647, %v2814
        %vm3037 = vcmp.eq.f32.partialorder %v3036, 8.507059e+37
        %v3038 = vand.u32 %v2814, 2147483648
        %v3039 = vor.u32 1.1754944e-38, %v3038
        %v3040 = vsel %vm3037, %v3039, %v3035
        %v3041 = vmul.f32 1.0, %v3040
        %v3042 = vrcp.pop %v2816
        %v3043 = vmul.f32 %v2816, %v3042
        %v3044 = vsub.f32 1.0, %v3043
        %v3045 = vmul.f32 %v3042, %v3044
        %v3046 = vadd.f32 %v3042, %v3045
        %vm3047 = vweird.f32 %v2816
        %vm3048 = vweird.f32 %v3042
        %vm3049 = vmor %vm3047, %vm3048
        %v3050 = vsel %vm3049, %v3042, %v3046
        %v3051 = vand.u32 2147483647, %v2816
        %vm3052 = vcmp.eq.f32.partialorder %v3051, 8.507059e+37
        %v3053 = vand.u32 %v2816, 2147483648
        %v3054 = vor.u32 1.1754944e-38, %v3053
        %v3055 = vsel %vm3052, %v3054, %v3050
        %v3056 = vmul.f32 1.0, %v3055
        %v3057 = vmul.f32 %v2754, %v2831
        %v3058 = vmul.f32 %v2756, %v2846
        %v3059 = vmul.f32 %v2758, %v2861
        %v3060 = vmul.f32 %v2760, %v2876
        %v3061 = vmul.f32 %v2762, %v2891
        %v3062 = vmul.f32 %v2764, %v2906
        %v3063 = vmul.f32 %v2766, %v2921
        %v3064 = vmul.f32 %v2768, %v2936
        %v3065 = vmul.f32 %v2770, %v2951
        %v3066 = vmul.f32 %v2772, %v2966
        %v3067 = vmul.f32 %v2774, %v2981
        %v3068 = vmul.f32 %v2776, %v2996
        %v3069 = vmul.f32 %v2778, %v3011
        %v3070 = vmul.f32 %v2780, %v3026
        %v3071 = vmul.f32 %v2782, %v3041
        %v3072 = vmul.f32 %v2784, %v3056
        %v3073 = vpack.c.bf16 %v3057, %v3057
        %v3074 = vpack.c.bf16 %v3058, %v3058
        %v3075 = vpack.c.bf16 %v3059, %v3059
        %v3076 = vpack.c.bf16 %v3060, %v3060
        %v3077 = vpack.c.bf16 %v3061, %v3061
        %v3078 = vpack.c.bf16 %v3062, %v3062
        %v3079 = vpack.c.bf16 %v3063, %v3063
        %v3080 = vpack.c.bf16 %v3064, %v3064
        %v3081 = vpack.c.bf16 %v3065, %v3065
        %v3082 = vpack.c.bf16 %v3066, %v3066
        %v3083 = vpack.c.bf16 %v3067, %v3067
        %v3084 = vpack.c.bf16 %v3068, %v3068
        %v3085 = vpack.c.bf16 %v3069, %v3069
        %v3086 = vpack.c.bf16 %v3070, %v3070
        %v3087 = vpack.c.bf16 %v3071, %v3071
        %v3088 = vpack.c.bf16 %v3072, %v3072
        %s3089 = scalar_lea.vmem %s570, 128 [#allocation15]
        %3090 = vst [vmem:[%s3089] sm:$0xf] %v3073
        %3091 = vst [vmem:[%s3089 + $0x4] sm:$0xf] %v3074
        %3092 = vst [vmem:[%s3089 + $0x8] sm:$0xf] %v3075
        %3093 = vst [vmem:[%s3089 + $0xc] sm:$0xf] %v3076
        %3094 = vst [vmem:[%s3089 + $0x10] sm:$0xf] %v3077
        %3095 = vst [vmem:[%s3089 + $0x14] sm:$0xf] %v3078
        %3096 = vst [vmem:[%s3089 + $0x18] sm:$0xf] %v3079
        %3097 = vst [vmem:[%s3089 + $0x1c] sm:$0xf] %v3080
        %3098 = vst [vmem:[%s3089 + $0x20] sm:$0xf] %v3081
        %3099 = vst [vmem:[%s3089 + $0x24] sm:$0xf] %v3082
        %3100 = vst [vmem:[%s3089 + $0x28] sm:$0xf] %v3083
        %3101 = vst [vmem:[%s3089 + $0x2c] sm:$0xf] %v3084
        %3102 = vst [vmem:[%s3089 + $0x30] sm:$0xf] %v3085
        %3103 = vst [vmem:[%s3089 + $0x34] sm:$0xf] %v3086
        %3104 = vst [vmem:[%s3089 + $0x38] sm:$0xf] %v3087
        %3105 = vst [vmem:[%s3089 + $0x3c] sm:$0xf] %v3088
        %v3122 = vunpack.c.l.b16 %v3073
        %v3123 = vunpack.c.l.b16 %v3074
        %v3124 = vunpack.c.l.b16 %v3075
        %v3125 = vunpack.c.l.b16 %v3076
        %v3126 = vunpack.c.l.b16 %v3077
        %v3127 = vunpack.c.l.b16 %v3078
        %v3128 = vunpack.c.l.b16 %v3079
        %v3129 = vunpack.c.l.b16 %v3080
        %v3130 = vunpack.c.l.b16 %v3081
        %v3131 = vunpack.c.l.b16 %v3082
        %v3132 = vunpack.c.l.b16 %v3083
        %v3133 = vunpack.c.l.b16 %v3084
        %v3134 = vunpack.c.l.b16 %v3085
        %v3135 = vunpack.c.l.b16 %v3086
        %v3136 = vunpack.c.l.b16 %v3087
        %v3137 = vunpack.c.l.b16 %v3088
        %v3138 = vpack.c.b16 %v3123, %v3122
        %v3139 = vpack.c.b16 %v3125, %v3124
        %v3140 = vpack.c.b16 %v3127, %v3126
        %v3141 = vpack.c.b16 %v3129, %v3128
        %v3142 = vpack.c.b16 %v3131, %v3130
        %v3143 = vpack.c.b16 %v3133, %v3132
        %v3144 = vpack.c.b16 %v3135, %v3134
        %v3145 = vpack.c.b16 %v3137, %v3136
        %3154 = vrot.lane.b32.xlu0 %v1860, 64
        %v3155 = vpop.permute.xlu0 %3154
        %3156 = vrot.lane.b32.xlu0 %v1861, 64
        %v3157 = vpop.permute.xlu0 %3156
        %3158 = vrot.lane.b32.xlu0 %v1862, 64
        %v3159 = vpop.permute.xlu0 %3158
        %3160 = vrot.lane.b32.xlu0 %v1863, 64
        %v3161 = vpop.permute.xlu0 %3160
        %3162 = vrot.lane.b32.xlu0 %v1864, 64
        %v3163 = vpop.permute.xlu0 %3162
        %3164 = vrot.lane.b32.xlu0 %v1865, 64
        %v3165 = vpop.permute.xlu0 %3164
        %3166 = vrot.lane.b32.xlu0 %v1866, 64
        %v3167 = vpop.permute.xlu0 %3166
        %3168 = vrot.lane.b32.xlu0 %v1867, 64
        %v3169 = vpop.permute.xlu0 %3168
        %3178 = vmatpush.bf16.msra.mxu0 %v3169
        %3179 = vmatpush.bf16.msra.mxu0 %v3167
        %3180 = vmatpush.bf16.msra.mxu0 %v3165
        %3181 = vmatpush.bf16.msra.mxu0 %v3163
        %3182 = vmatpush.bf16.msra.mxu0 %v3161
        %3183 = vmatpush.bf16.msra.mxu0 %v3159
        %3184 = vmatpush.bf16.msra.mxu0 %v3157
        %3185 = vmatpush.bf16.msra.mxu0 %v3155
        %3186 = vmatmul.bf16.gmra.mxu0 %v3138
        %v3187 = vpop.f32.mrf.mxu0
        %v3188 = vadd.f32 0.0, %v3187
        %v3189 = vpop.f32.mrf.mxu0
        %v3190 = vadd.f32 0.0, %v3189
        %3191 = vmatmul.bf16.gmra.mxu0 %v3139
        %v3192 = vpop.f32.mrf.mxu0
        %v3193 = vadd.f32 0.0, %v3192
        %v3194 = vpop.f32.mrf.mxu0
        %v3195 = vadd.f32 0.0, %v3194
        %3196 = vmatmul.bf16.gmra.mxu0 %v3140
        %v3197 = vpop.f32.mrf.mxu0
        %v3198 = vadd.f32 0.0, %v3197
        %v3199 = vpop.f32.mrf.mxu0
        %v3200 = vadd.f32 0.0, %v3199
        %3201 = vmatmul.bf16.gmra.mxu0 %v3141
        %v3202 = vpop.f32.mrf.mxu0
        %v3203 = vadd.f32 0.0, %v3202
        %v3204 = vpop.f32.mrf.mxu0
        %v3205 = vadd.f32 0.0, %v3204
        %3206 = vmatmul.bf16.gmra.mxu0 %v3142
        %v3207 = vpop.f32.mrf.mxu0
        %v3208 = vadd.f32 0.0, %v3207
        %v3209 = vpop.f32.mrf.mxu0
        %v3210 = vadd.f32 0.0, %v3209
        %3211 = vmatmul.bf16.gmra.mxu0 %v3143
        %v3212 = vpop.f32.mrf.mxu0
        %v3213 = vadd.f32 0.0, %v3212
        %v3214 = vpop.f32.mrf.mxu0
        %v3215 = vadd.f32 0.0, %v3214
        %3216 = vmatmul.bf16.gmra.mxu0 %v3144
        %v3217 = vpop.f32.mrf.mxu0
        %v3218 = vadd.f32 0.0, %v3217
        %v3219 = vpop.f32.mrf.mxu0
        %v3220 = vadd.f32 0.0, %v3219
        %3221 = vmatmul.bf16.gmra.mxu0 %v3145
        %v3222 = vpop.f32.mrf.mxu0
        %v3223 = vadd.f32 0.0, %v3222
        %v3224 = vpop.f32.mrf.mxu0
        %v3225 = vadd.f32 0.0, %v3224
        %3226 = vdwg.mxu0
        %3227 = vrot.lane.b32.xlu0 %v1234, 32
        %v3228 = vpop.permute.xlu0 %3227
        %3229 = vrot.lane.b32.xlu0 %v1235, 32
        %v3230 = vpop.permute.xlu0 %3229
        %3231 = vrot.lane.b32.xlu0 %v1236, 32
        %v3232 = vpop.permute.xlu0 %3231
        %3233 = vrot.lane.b32.xlu0 %v1237, 32
        %v3234 = vpop.permute.xlu0 %3233
        %3235 = vrot.lane.b32.xlu0 %v1238, 32
        %v3236 = vpop.permute.xlu0 %3235
        %3237 = vrot.lane.b32.xlu0 %v1239, 32
        %v3238 = vpop.permute.xlu0 %3237
        %3239 = vrot.lane.b32.xlu0 %v1240, 32
        %v3240 = vpop.permute.xlu0 %3239
        %3241 = vrot.lane.b32.xlu0 %v1241, 32
        %v3242 = vpop.permute.xlu0 %3241
        %3243 = vrot.lane.b32.xlu0 %v1274, 32
        %v3244 = vpop.permute.xlu0 %3243
        %3245 = vrot.lane.b32.xlu0 %v1275, 32
        %v3246 = vpop.permute.xlu0 %3245
        %3247 = vrot.lane.b32.xlu0 %v1276, 32
        %v3248 = vpop.permute.xlu0 %3247
        %3249 = vrot.lane.b32.xlu0 %v1277, 32
        %v3250 = vpop.permute.xlu0 %3249
        %3251 = vrot.lane.b32.xlu0 %v1278, 32
        %v3252 = vpop.permute.xlu0 %3251
        %3253 = vrot.lane.b32.xlu0 %v1279, 32
        %v3254 = vpop.permute.xlu0 %3253
        %3255 = vrot.lane.b32.xlu0 %v1280, 32
        %v3256 = vpop.permute.xlu0 %3255
        %3257 = vrot.lane.b32.xlu0 %v1281, 32
        %v3258 = vpop.permute.xlu0 %3257
        %v3260 = vsel %vm1282, %v3228, 0
        %v3263 = vsel %vm1282, %v3230, 0
        %v3266 = vsel %vm1282, %v3232, 0
        %v3269 = vsel %vm1282, %v3234, 0
        %v3272 = vsel %vm1282, %v3236, 0
        %v3275 = vsel %vm1282, %v3238, 0
        %v3278 = vsel %vm1282, %v3240, 0
        %v3281 = vsel %vm1282, %v3242, 0
        %v3284 = vsel %vm1282, %v3244, 0
        %v3287 = vsel %vm1282, %v3246, 0
        %v3290 = vsel %vm1282, %v3248, 0
        %v3293 = vsel %vm1282, %v3250, 0
        %v3296 = vsel %vm1282, %v3252, 0
        %v3299 = vsel %vm1282, %v3254, 0
        %v3302 = vsel %vm1282, %v3256, 0
        %v3305 = vsel %vm1282, %v3258, 0
        %3307 = vmatpush.bf16.xpose.msra.mxu0 %v3305
        %3308 = vmatpush.bf16.xpose.msra.mxu0 %v3302
        %3309 = vmatpush.bf16.xpose.msra.mxu0 %v3299
        %3310 = vmatpush.bf16.xpose.msra.mxu0 %v3296
        %3311 = vmatpush.bf16.xpose.msra.mxu0 %v3293
        %3312 = vmatpush.bf16.xpose.msra.mxu0 %v3290
        %3313 = vmatpush.bf16.xpose.msra.mxu0 %v3287
        %3314 = vmatpush.bf16.xpose.msra.mxu0 %v3284
        %3315 = vmatmul.bf16.gmra.mxu0 %v3260
        %v3316 = vpop.f32.mrf.mxu0
        %v3317 = vadd.f32 %v1200, %v3316
        %v3318 = vpop.f32.mrf.mxu0
        %v3319 = vadd.f32 %v1200, %v3318
        %3320 = vmatmul.bf16.gmra.mxu0 %v3263
        %v3321 = vpop.f32.mrf.mxu0
        %v3322 = vadd.f32 %v1200, %v3321
        %v3323 = vpop.f32.mrf.mxu0
        %v3324 = vadd.f32 %v1200, %v3323
        %3325 = vmatmul.bf16.gmra.mxu0 %v3266
        %v3326 = vpop.f32.mrf.mxu0
        %v3327 = vadd.f32 %v1200, %v3326
        %v3328 = vpop.f32.mrf.mxu0
        %v3329 = vadd.f32 %v1200, %v3328
        %3330 = vmatmul.bf16.gmra.mxu0 %v3269
        %v3331 = vpop.f32.mrf.mxu0
        %v3332 = vadd.f32 %v1200, %v3331
        %v3333 = vpop.f32.mrf.mxu0
        %v3334 = vadd.f32 %v1200, %v3333
        %3335 = vmatmul.bf16.gmra.mxu0 %v3272
        %v3336 = vpop.f32.mrf.mxu0
        %v3337 = vadd.f32 %v1200, %v3336
        %v3338 = vpop.f32.mrf.mxu0
        %v3339 = vadd.f32 %v1200, %v3338
        %3340 = vmatmul.bf16.gmra.mxu0 %v3275
        %v3341 = vpop.f32.mrf.mxu0
        %v3342 = vadd.f32 %v1200, %v3341
        %v3343 = vpop.f32.mrf.mxu0
        %v3344 = vadd.f32 %v1200, %v3343
        %3345 = vmatmul.bf16.gmra.mxu0 %v3278
        %v3346 = vpop.f32.mrf.mxu0
        %v3347 = vadd.f32 %v1200, %v3346
        %v3348 = vpop.f32.mrf.mxu0
        %v3349 = vadd.f32 %v1200, %v3348
        %3350 = vmatmul.bf16.gmra.mxu0 %v3281
        %v3351 = vpop.f32.mrf.mxu0
        %v3352 = vadd.f32 %v1200, %v3351
        %v3353 = vpop.f32.mrf.mxu0
        %v3354 = vadd.f32 %v1200, %v3353
        %3355 = vdwg.mxu0
        %3356 = vmax.xlane.f32.xlu0 %v3317
        %v3357 = vpop.xlane.xlu0 %3356
        %3358 = vmax.xlane.f32.xlu0 %v3319
        %v3359 = vpop.xlane.xlu0 %3358
        %3360 = vmax.xlane.f32.xlu0 %v3322
        %v3361 = vpop.xlane.xlu0 %3360
        %3362 = vmax.xlane.f32.xlu0 %v3324
        %v3363 = vpop.xlane.xlu0 %3362
        %3364 = vmax.xlane.f32.xlu0 %v3327
        %v3365 = vpop.xlane.xlu0 %3364
        %3366 = vmax.xlane.f32.xlu0 %v3329
        %v3367 = vpop.xlane.xlu0 %3366
        %3368 = vmax.xlane.f32.xlu0 %v3332
        %v3369 = vpop.xlane.xlu0 %3368
        %3370 = vmax.xlane.f32.xlu0 %v3334
        %v3371 = vpop.xlane.xlu0 %3370
        %3372 = vmax.xlane.f32.xlu0 %v3337
        %v3373 = vpop.xlane.xlu0 %3372
        %3374 = vmax.xlane.f32.xlu0 %v3339
        %v3375 = vpop.xlane.xlu0 %3374
        %3376 = vmax.xlane.f32.xlu0 %v3342
        %v3377 = vpop.xlane.xlu0 %3376
        %3378 = vmax.xlane.f32.xlu0 %v3344
        %v3379 = vpop.xlane.xlu0 %3378
        %3380 = vmax.xlane.f32.xlu0 %v3347
        %v3381 = vpop.xlane.xlu0 %3380
        %3382 = vmax.xlane.f32.xlu0 %v3349
        %v3383 = vpop.xlane.xlu0 %3382
        %3384 = vmax.xlane.f32.xlu0 %v3352
        %v3385 = vpop.xlane.xlu0 %3384
        %3386 = vmax.xlane.f32.xlu0 %v3354
        %v3387 = vpop.xlane.xlu0 %3386
        %v3388 = vsub.f32 %v3317, %v3357
        %v3389 = vsub.f32 %v3319, %v3359
        %v3390 = vsub.f32 %v3322, %v3361
        %v3391 = vsub.f32 %v3324, %v3363
        %v3392 = vsub.f32 %v3327, %v3365
        %v3393 = vsub.f32 %v3329, %v3367
        %v3394 = vsub.f32 %v3332, %v3369
        %v3395 = vsub.f32 %v3334, %v3371
        %v3396 = vsub.f32 %v3337, %v3373
        %v3397 = vsub.f32 %v3339, %v3375
        %v3398 = vsub.f32 %v3342, %v3377
        %v3399 = vsub.f32 %v3344, %v3379
        %v3400 = vsub.f32 %v3347, %v3381
        %v3401 = vsub.f32 %v3349, %v3383
        %v3402 = vsub.f32 %v3352, %v3385
        %v3403 = vsub.f32 %v3354, %v3387
        %v3404 = vmul.f32 %v3388, 1.442695
        %v3405 = vpow.pop %v3404
        %v3406 = vmul.f32 %v3389, 1.442695
        %v3407 = vpow.pop %v3406
        %v3408 = vmul.f32 %v3390, 1.442695
        %v3409 = vpow.pop %v3408
        %v3410 = vmul.f32 %v3391, 1.442695
        %v3411 = vpow.pop %v3410
        %v3412 = vmul.f32 %v3392, 1.442695
        %v3413 = vpow.pop %v3412
        %v3414 = vmul.f32 %v3393, 1.442695
        %v3415 = vpow.pop %v3414
        %v3416 = vmul.f32 %v3394, 1.442695
        %v3417 = vpow.pop %v3416
        %v3418 = vmul.f32 %v3395, 1.442695
        %v3419 = vpow.pop %v3418
        %v3420 = vmul.f32 %v3396, 1.442695
        %v3421 = vpow.pop %v3420
        %v3422 = vmul.f32 %v3397, 1.442695
        %v3423 = vpow.pop %v3422
        %v3424 = vmul.f32 %v3398, 1.442695
        %v3425 = vpow.pop %v3424
        %v3426 = vmul.f32 %v3399, 1.442695
        %v3427 = vpow.pop %v3426
        %v3428 = vmul.f32 %v3400, 1.442695
        %v3429 = vpow.pop %v3428
        %v3430 = vmul.f32 %v3401, 1.442695
        %v3431 = vpow.pop %v3430
        %v3432 = vmul.f32 %v3402, 1.442695
        %v3433 = vpow.pop %v3432
        %v3434 = vmul.f32 %v3403, 1.442695
        %v3435 = vpow.pop %v3434
        %3436 = vadd.xlane.f32.xlu0 %v3405
        %v3437 = vpop.xlane.xlu0 %3436
        %3438 = vadd.xlane.f32.xlu0 %v3407
        %v3439 = vpop.xlane.xlu0 %3438
        %3440 = vadd.xlane.f32.xlu0 %v3409
        %v3441 = vpop.xlane.xlu0 %3440
        %3442 = vadd.xlane.f32.xlu0 %v3411
        %v3443 = vpop.xlane.xlu0 %3442
        %3444 = vadd.xlane.f32.xlu0 %v3413
        %v3445 = vpop.xlane.xlu0 %3444
        %3446 = vadd.xlane.f32.xlu0 %v3415
        %v3447 = vpop.xlane.xlu0 %3446
        %3448 = vadd.xlane.f32.xlu0 %v3417
        %v3449 = vpop.xlane.xlu0 %3448
        %3450 = vadd.xlane.f32.xlu0 %v3419
        %v3451 = vpop.xlane.xlu0 %3450
        %3452 = vadd.xlane.f32.xlu0 %v3421
        %v3453 = vpop.xlane.xlu0 %3452
        %3454 = vadd.xlane.f32.xlu0 %v3423
        %v3455 = vpop.xlane.xlu0 %3454
        %3456 = vadd.xlane.f32.xlu0 %v3425
        %v3457 = vpop.xlane.xlu0 %3456
        %3458 = vadd.xlane.f32.xlu0 %v3427
        %v3459 = vpop.xlane.xlu0 %3458
        %3460 = vadd.xlane.f32.xlu0 %v3429
        %v3461 = vpop.xlane.xlu0 %3460
        %3462 = vadd.xlane.f32.xlu0 %v3431
        %v3463 = vpop.xlane.xlu0 %3462
        %3464 = vadd.xlane.f32.xlu0 %v3433
        %v3465 = vpop.xlane.xlu0 %3464
        %3466 = vadd.xlane.f32.xlu0 %v3435
        %v3467 = vpop.xlane.xlu0 %3466
        %v3468 = vrcp.pop %v3437
        %v3469 = vmul.f32 %v3437, %v3468
        %v3470 = vsub.f32 1.0, %v3469
        %v3471 = vmul.f32 %v3468, %v3470
        %v3472 = vadd.f32 %v3468, %v3471
        %vm3473 = vweird.f32 %v3437
        %vm3474 = vweird.f32 %v3468
        %vm3475 = vmor %vm3473, %vm3474
        %v3476 = vsel %vm3475, %v3468, %v3472
        %v3477 = vand.u32 2147483647, %v3437
        %vm3478 = vcmp.eq.f32.partialorder %v3477, 8.507059e+37
        %v3479 = vand.u32 %v3437, 2147483648
        %v3480 = vor.u32 1.1754944e-38, %v3479
        %v3481 = vsel %vm3478, %v3480, %v3476
        %v3482 = vmul.f32 1.0, %v3481
        %v3483 = vrcp.pop %v3439
        %v3484 = vmul.f32 %v3439, %v3483
        %v3485 = vsub.f32 1.0, %v3484
        %v3486 = vmul.f32 %v3483, %v3485
        %v3487 = vadd.f32 %v3483, %v3486
        %vm3488 = vweird.f32 %v3439
        %vm3489 = vweird.f32 %v3483
        %vm3490 = vmor %vm3488, %vm3489
        %v3491 = vsel %vm3490, %v3483, %v3487
        %v3492 = vand.u32 2147483647, %v3439
        %vm3493 = vcmp.eq.f32.partialorder %v3492, 8.507059e+37
        %v3494 = vand.u32 %v3439, 2147483648
        %v3495 = vor.u32 1.1754944e-38, %v3494
        %v3496 = vsel %vm3493, %v3495, %v3491
        %v3497 = vmul.f32 1.0, %v3496
        %v3498 = vrcp.pop %v3441
        %v3499 = vmul.f32 %v3441, %v3498
        %v3500 = vsub.f32 1.0, %v3499
        %v3501 = vmul.f32 %v3498, %v3500
        %v3502 = vadd.f32 %v3498, %v3501
        %vm3503 = vweird.f32 %v3441
        %vm3504 = vweird.f32 %v3498
        %vm3505 = vmor %vm3503, %vm3504
        %v3506 = vsel %vm3505, %v3498, %v3502
        %v3507 = vand.u32 2147483647, %v3441
        %vm3508 = vcmp.eq.f32.partialorder %v3507, 8.507059e+37
        %v3509 = vand.u32 %v3441, 2147483648
        %v3510 = vor.u32 1.1754944e-38, %v3509
        %v3511 = vsel %vm3508, %v3510, %v3506
        %v3512 = vmul.f32 1.0, %v3511
        %v3513 = vrcp.pop %v3443
        %v3514 = vmul.f32 %v3443, %v3513
        %v3515 = vsub.f32 1.0, %v3514
        %v3516 = vmul.f32 %v3513, %v3515
        %v3517 = vadd.f32 %v3513, %v3516
        %vm3518 = vweird.f32 %v3443
        %vm3519 = vweird.f32 %v3513
        %vm3520 = vmor %vm3518, %vm3519
        %v3521 = vsel %vm3520, %v3513, %v3517
        %v3522 = vand.u32 2147483647, %v3443
        %vm3523 = vcmp.eq.f32.partialorder %v3522, 8.507059e+37
        %v3524 = vand.u32 %v3443, 2147483648
        %v3525 = vor.u32 1.1754944e-38, %v3524
        %v3526 = vsel %vm3523, %v3525, %v3521
        %v3527 = vmul.f32 1.0, %v3526
        %v3528 = vrcp.pop %v3445
        %v3529 = vmul.f32 %v3445, %v3528
        %v3530 = vsub.f32 1.0, %v3529
        %v3531 = vmul.f32 %v3528, %v3530
        %v3532 = vadd.f32 %v3528, %v3531
        %vm3533 = vweird.f32 %v3445
        %vm3534 = vweird.f32 %v3528
        %vm3535 = vmor %vm3533, %vm3534
        %v3536 = vsel %vm3535, %v3528, %v3532
        %v3537 = vand.u32 2147483647, %v3445
        %vm3538 = vcmp.eq.f32.partialorder %v3537, 8.507059e+37
        %v3539 = vand.u32 %v3445, 2147483648
        %v3540 = vor.u32 1.1754944e-38, %v3539
        %v3541 = vsel %vm3538, %v3540, %v3536
        %v3542 = vmul.f32 1.0, %v3541
        %v3543 = vrcp.pop %v3447
        %v3544 = vmul.f32 %v3447, %v3543
        %v3545 = vsub.f32 1.0, %v3544
        %v3546 = vmul.f32 %v3543, %v3545
        %v3547 = vadd.f32 %v3543, %v3546
        %vm3548 = vweird.f32 %v3447
        %vm3549 = vweird.f32 %v3543
        %vm3550 = vmor %vm3548, %vm3549
        %v3551 = vsel %vm3550, %v3543, %v3547
        %v3552 = vand.u32 2147483647, %v3447
        %vm3553 = vcmp.eq.f32.partialorder %v3552, 8.507059e+37
        %v3554 = vand.u32 %v3447, 2147483648
        %v3555 = vor.u32 1.1754944e-38, %v3554
        %v3556 = vsel %vm3553, %v3555, %v3551
        %v3557 = vmul.f32 1.0, %v3556
        %v3558 = vrcp.pop %v3449
        %v3559 = vmul.f32 %v3449, %v3558
        %v3560 = vsub.f32 1.0, %v3559
        %v3561 = vmul.f32 %v3558, %v3560
        %v3562 = vadd.f32 %v3558, %v3561
        %vm3563 = vweird.f32 %v3449
        %vm3564 = vweird.f32 %v3558
        %vm3565 = vmor %vm3563, %vm3564
        %v3566 = vsel %vm3565, %v3558, %v3562
        %v3567 = vand.u32 2147483647, %v3449
        %vm3568 = vcmp.eq.f32.partialorder %v3567, 8.507059e+37
        %v3569 = vand.u32 %v3449, 2147483648
        %v3570 = vor.u32 1.1754944e-38, %v3569
        %v3571 = vsel %vm3568, %v3570, %v3566
        %v3572 = vmul.f32 1.0, %v3571
        %v3573 = vrcp.pop %v3451
        %v3574 = vmul.f32 %v3451, %v3573
        %v3575 = vsub.f32 1.0, %v3574
        %v3576 = vmul.f32 %v3573, %v3575
        %v3577 = vadd.f32 %v3573, %v3576
        %vm3578 = vweird.f32 %v3451
        %vm3579 = vweird.f32 %v3573
        %vm3580 = vmor %vm3578, %vm3579
        %v3581 = vsel %vm3580, %v3573, %v3577
        %v3582 = vand.u32 2147483647, %v3451
        %vm3583 = vcmp.eq.f32.partialorder %v3582, 8.507059e+37
        %v3584 = vand.u32 %v3451, 2147483648
        %v3585 = vor.u32 1.1754944e-38, %v3584
        %v3586 = vsel %vm3583, %v3585, %v3581
        %v3587 = vmul.f32 1.0, %v3586
        %v3588 = vrcp.pop %v3453
        %v3589 = vmul.f32 %v3453, %v3588
        %v3590 = vsub.f32 1.0, %v3589
        %v3591 = vmul.f32 %v3588, %v3590
        %v3592 = vadd.f32 %v3588, %v3591
        %vm3593 = vweird.f32 %v3453
        %vm3594 = vweird.f32 %v3588
        %vm3595 = vmor %vm3593, %vm3594
        %v3596 = vsel %vm3595, %v3588, %v3592
        %v3597 = vand.u32 2147483647, %v3453
        %vm3598 = vcmp.eq.f32.partialorder %v3597, 8.507059e+37
        %v3599 = vand.u32 %v3453, 2147483648
        %v3600 = vor.u32 1.1754944e-38, %v3599
        %v3601 = vsel %vm3598, %v3600, %v3596
        %v3602 = vmul.f32 1.0, %v3601
        %v3603 = vrcp.pop %v3455
        %v3604 = vmul.f32 %v3455, %v3603
        %v3605 = vsub.f32 1.0, %v3604
        %v3606 = vmul.f32 %v3603, %v3605
        %v3607 = vadd.f32 %v3603, %v3606
        %vm3608 = vweird.f32 %v3455
        %vm3609 = vweird.f32 %v3603
        %vm3610 = vmor %vm3608, %vm3609
        %v3611 = vsel %vm3610, %v3603, %v3607
        %v3612 = vand.u32 2147483647, %v3455
        %vm3613 = vcmp.eq.f32.partialorder %v3612, 8.507059e+37
        %v3614 = vand.u32 %v3455, 2147483648
        %v3615 = vor.u32 1.1754944e-38, %v3614
        %v3616 = vsel %vm3613, %v3615, %v3611
        %v3617 = vmul.f32 1.0, %v3616
        %v3618 = vrcp.pop %v3457
        %v3619 = vmul.f32 %v3457, %v3618
        %v3620 = vsub.f32 1.0, %v3619
        %v3621 = vmul.f32 %v3618, %v3620
        %v3622 = vadd.f32 %v3618, %v3621
        %vm3623 = vweird.f32 %v3457
        %vm3624 = vweird.f32 %v3618
        %vm3625 = vmor %vm3623, %vm3624
        %v3626 = vsel %vm3625, %v3618, %v3622
        %v3627 = vand.u32 2147483647, %v3457
        %vm3628 = vcmp.eq.f32.partialorder %v3627, 8.507059e+37
        %v3629 = vand.u32 %v3457, 2147483648
        %v3630 = vor.u32 1.1754944e-38, %v3629
        %v3631 = vsel %vm3628, %v3630, %v3626
        %v3632 = vmul.f32 1.0, %v3631
        %v3633 = vrcp.pop %v3459
        %v3634 = vmul.f32 %v3459, %v3633
        %v3635 = vsub.f32 1.0, %v3634
        %v3636 = vmul.f32 %v3633, %v3635
        %v3637 = vadd.f32 %v3633, %v3636
        %vm3638 = vweird.f32 %v3459
        %vm3639 = vweird.f32 %v3633
        %vm3640 = vmor %vm3638, %vm3639
        %v3641 = vsel %vm3640, %v3633, %v3637
        %v3642 = vand.u32 2147483647, %v3459
        %vm3643 = vcmp.eq.f32.partialorder %v3642, 8.507059e+37
        %v3644 = vand.u32 %v3459, 2147483648
        %v3645 = vor.u32 1.1754944e-38, %v3644
        %v3646 = vsel %vm3643, %v3645, %v3641
        %v3647 = vmul.f32 1.0, %v3646
        %v3648 = vrcp.pop %v3461
        %v3649 = vmul.f32 %v3461, %v3648
        %v3650 = vsub.f32 1.0, %v3649
        %v3651 = vmul.f32 %v3648, %v3650
        %v3652 = vadd.f32 %v3648, %v3651
        %vm3653 = vweird.f32 %v3461
        %vm3654 = vweird.f32 %v3648
        %vm3655 = vmor %vm3653, %vm3654
        %v3656 = vsel %vm3655, %v3648, %v3652
        %v3657 = vand.u32 2147483647, %v3461
        %vm3658 = vcmp.eq.f32.partialorder %v3657, 8.507059e+37
        %v3659 = vand.u32 %v3461, 2147483648
        %v3660 = vor.u32 1.1754944e-38, %v3659
        %v3661 = vsel %vm3658, %v3660, %v3656
        %v3662 = vmul.f32 1.0, %v3661
        %v3663 = vrcp.pop %v3463
        %v3664 = vmul.f32 %v3463, %v3663
        %v3665 = vsub.f32 1.0, %v3664
        %v3666 = vmul.f32 %v3663, %v3665
        %v3667 = vadd.f32 %v3663, %v3666
        %vm3668 = vweird.f32 %v3463
        %vm3669 = vweird.f32 %v3663
        %vm3670 = vmor %vm3668, %vm3669
        %v3671 = vsel %vm3670, %v3663, %v3667
        %v3672 = vand.u32 2147483647, %v3463
        %vm3673 = vcmp.eq.f32.partialorder %v3672, 8.507059e+37
        %v3674 = vand.u32 %v3463, 2147483648
        %v3675 = vor.u32 1.1754944e-38, %v3674
        %v3676 = vsel %vm3673, %v3675, %v3671
        %v3677 = vmul.f32 1.0, %v3676
        %v3678 = vrcp.pop %v3465
        %v3679 = vmul.f32 %v3465, %v3678
        %v3680 = vsub.f32 1.0, %v3679
        %v3681 = vmul.f32 %v3678, %v3680
        %v3682 = vadd.f32 %v3678, %v3681
        %vm3683 = vweird.f32 %v3465
        %vm3684 = vweird.f32 %v3678
        %vm3685 = vmor %vm3683, %vm3684
        %v3686 = vsel %vm3685, %v3678, %v3682
        %v3687 = vand.u32 2147483647, %v3465
        %vm3688 = vcmp.eq.f32.partialorder %v3687, 8.507059e+37
        %v3689 = vand.u32 %v3465, 2147483648
        %v3690 = vor.u32 1.1754944e-38, %v3689
        %v3691 = vsel %vm3688, %v3690, %v3686
        %v3692 = vmul.f32 1.0, %v3691
        %v3693 = vrcp.pop %v3467
        %v3694 = vmul.f32 %v3467, %v3693
        %v3695 = vsub.f32 1.0, %v3694
        %v3696 = vmul.f32 %v3693, %v3695
        %v3697 = vadd.f32 %v3693, %v3696
        %vm3698 = vweird.f32 %v3467
        %vm3699 = vweird.f32 %v3693
        %vm3700 = vmor %vm3698, %vm3699
        %v3701 = vsel %vm3700, %v3693, %v3697
        %v3702 = vand.u32 2147483647, %v3467
        %vm3703 = vcmp.eq.f32.partialorder %v3702, 8.507059e+37
        %v3704 = vand.u32 %v3467, 2147483648
        %v3705 = vor.u32 1.1754944e-38, %v3704
        %v3706 = vsel %vm3703, %v3705, %v3701
        %v3707 = vmul.f32 1.0, %v3706
        %v3708 = vmul.f32 %v3405, %v3482
        %v3709 = vmul.f32 %v3407, %v3497
        %v3710 = vmul.f32 %v3409, %v3512
        %v3711 = vmul.f32 %v3411, %v3527
        %v3712 = vmul.f32 %v3413, %v3542
        %v3713 = vmul.f32 %v3415, %v3557
        %v3714 = vmul.f32 %v3417, %v3572
        %v3715 = vmul.f32 %v3419, %v3587
        %v3716 = vmul.f32 %v3421, %v3602
        %v3717 = vmul.f32 %v3423, %v3617
        %v3718 = vmul.f32 %v3425, %v3632
        %v3719 = vmul.f32 %v3427, %v3647
        %v3720 = vmul.f32 %v3429, %v3662
        %v3721 = vmul.f32 %v3431, %v3677
        %v3722 = vmul.f32 %v3433, %v3692
        %v3723 = vmul.f32 %v3435, %v3707
        %v3724 = vpack.c.bf16 %v3708, %v3708
        %v3725 = vpack.c.bf16 %v3709, %v3709
        %v3726 = vpack.c.bf16 %v3710, %v3710
        %v3727 = vpack.c.bf16 %v3711, %v3711
        %v3728 = vpack.c.bf16 %v3712, %v3712
        %v3729 = vpack.c.bf16 %v3713, %v3713
        %v3730 = vpack.c.bf16 %v3714, %v3714
        %v3731 = vpack.c.bf16 %v3715, %v3715
        %v3732 = vpack.c.bf16 %v3716, %v3716
        %v3733 = vpack.c.bf16 %v3717, %v3717
        %v3734 = vpack.c.bf16 %v3718, %v3718
        %v3735 = vpack.c.bf16 %v3719, %v3719
        %v3736 = vpack.c.bf16 %v3720, %v3720
        %v3737 = vpack.c.bf16 %v3721, %v3721
        %v3738 = vpack.c.bf16 %v3722, %v3722
        %v3739 = vpack.c.bf16 %v3723, %v3723
        %s3740 = scalar_lea.vmem %s570, 192 [#allocation15]
        %3741 = vst [vmem:[%s3740] sm:$0xf] %v3724
        %3742 = vst [vmem:[%s3740 + $0x4] sm:$0xf] %v3725
        %3743 = vst [vmem:[%s3740 + $0x8] sm:$0xf] %v3726
        %3744 = vst [vmem:[%s3740 + $0xc] sm:$0xf] %v3727
        %3745 = vst [vmem:[%s3740 + $0x10] sm:$0xf] %v3728
        %3746 = vst [vmem:[%s3740 + $0x14] sm:$0xf] %v3729
        %3747 = vst [vmem:[%s3740 + $0x18] sm:$0xf] %v3730
        %3748 = vst [vmem:[%s3740 + $0x1c] sm:$0xf] %v3731
        %3749 = vst [vmem:[%s3740 + $0x20] sm:$0xf] %v3732
        %3750 = vst [vmem:[%s3740 + $0x24] sm:$0xf] %v3733
        %3751 = vst [vmem:[%s3740 + $0x28] sm:$0xf] %v3734
        %3752 = vst [vmem:[%s3740 + $0x2c] sm:$0xf] %v3735
        %3753 = vst [vmem:[%s3740 + $0x30] sm:$0xf] %v3736
        %3754 = vst [vmem:[%s3740 + $0x34] sm:$0xf] %v3737
        %3755 = vst [vmem:[%s3740 + $0x38] sm:$0xf] %v3738
        %3756 = vst [vmem:[%s3740 + $0x3c] sm:$0xf] %v3739
        %v3773 = vunpack.c.l.b16 %v3724
        %v3774 = vunpack.c.l.b16 %v3725
        %v3775 = vunpack.c.l.b16 %v3726
        %v3776 = vunpack.c.l.b16 %v3727
        %v3777 = vunpack.c.l.b16 %v3728
        %v3778 = vunpack.c.l.b16 %v3729
        %v3779 = vunpack.c.l.b16 %v3730
        %v3780 = vunpack.c.l.b16 %v3731
        %v3781 = vunpack.c.l.b16 %v3732
        %v3782 = vunpack.c.l.b16 %v3733
        %v3783 = vunpack.c.l.b16 %v3734
        %v3784 = vunpack.c.l.b16 %v3735
        %v3785 = vunpack.c.l.b16 %v3736
        %v3786 = vunpack.c.l.b16 %v3737
        %v3787 = vunpack.c.l.b16 %v3738
        %v3788 = vunpack.c.l.b16 %v3739
        %v3789 = vpack.c.b16 %v3774, %v3773
        %v3790 = vpack.c.b16 %v3776, %v3775
        %v3791 = vpack.c.b16 %v3778, %v3777
        %v3792 = vpack.c.b16 %v3780, %v3779
        %v3793 = vpack.c.b16 %v3782, %v3781
        %v3794 = vpack.c.b16 %v3784, %v3783
        %v3795 = vpack.c.b16 %v3786, %v3785
        %v3796 = vpack.c.b16 %v3788, %v3787
        %3805 = vrot.lane.b32.xlu0 %v1860, 32
        %v3806 = vpop.permute.xlu0 %3805
        %3807 = vrot.lane.b32.xlu0 %v1861, 32
        %v3808 = vpop.permute.xlu0 %3807
        %3809 = vrot.lane.b32.xlu0 %v1862, 32
        %v3810 = vpop.permute.xlu0 %3809
        %3811 = vrot.lane.b32.xlu0 %v1863, 32
        %v3812 = vpop.permute.xlu0 %3811
        %3813 = vrot.lane.b32.xlu0 %v1864, 32
        %v3814 = vpop.permute.xlu0 %3813
        %3815 = vrot.lane.b32.xlu0 %v1865, 32
        %v3816 = vpop.permute.xlu0 %3815
        %3817 = vrot.lane.b32.xlu0 %v1866, 32
        %v3818 = vpop.permute.xlu0 %3817
        %3819 = vrot.lane.b32.xlu0 %v1867, 32
        %v3820 = vpop.permute.xlu0 %3819
        %3829 = vmatpush.bf16.msra.mxu0 %v3820
        %3830 = vmatpush.bf16.msra.mxu0 %v3818
        %3831 = vmatpush.bf16.msra.mxu0 %v3816
        %3832 = vmatpush.bf16.msra.mxu0 %v3814
        %3833 = vmatpush.bf16.msra.mxu0 %v3812
        %3834 = vmatpush.bf16.msra.mxu0 %v3810
        %3835 = vmatpush.bf16.msra.mxu0 %v3808
        %3836 = vmatpush.bf16.msra.mxu0 %v3806
        %3837 = vmatmul.bf16.gmra.mxu0 %v3789
        %v3838 = vpop.f32.mrf.mxu0
        %v3839 = vadd.f32 0.0, %v3838
        %v3840 = vpop.f32.mrf.mxu0
        %v3841 = vadd.f32 0.0, %v3840
        %3842 = vmatmul.bf16.gmra.mxu0 %v3790
        %v3843 = vpop.f32.mrf.mxu0
        %v3844 = vadd.f32 0.0, %v3843
        %v3845 = vpop.f32.mrf.mxu0
        %v3846 = vadd.f32 0.0, %v3845
        %3847 = vmatmul.bf16.gmra.mxu0 %v3791
        %v3848 = vpop.f32.mrf.mxu0
        %v3849 = vadd.f32 0.0, %v3848
        %v3850 = vpop.f32.mrf.mxu0
        %v3851 = vadd.f32 0.0, %v3850
        %3852 = vmatmul.bf16.gmra.mxu0 %v3792
        %v3853 = vpop.f32.mrf.mxu0
        %v3854 = vadd.f32 0.0, %v3853
        %v3855 = vpop.f32.mrf.mxu0
        %v3856 = vadd.f32 0.0, %v3855
        %3857 = vmatmul.bf16.gmra.mxu0 %v3793
        %v3858 = vpop.f32.mrf.mxu0
        %v3859 = vadd.f32 0.0, %v3858
        %v3860 = vpop.f32.mrf.mxu0
        %v3861 = vadd.f32 0.0, %v3860
        %3862 = vmatmul.bf16.gmra.mxu0 %v3794
        %v3863 = vpop.f32.mrf.mxu0
        %v3864 = vadd.f32 0.0, %v3863
        %v3865 = vpop.f32.mrf.mxu0
        %v3866 = vadd.f32 0.0, %v3865
        %3867 = vmatmul.bf16.gmra.mxu0 %v3795
        %v3868 = vpop.f32.mrf.mxu0
        %v3869 = vadd.f32 0.0, %v3868
        %v3870 = vpop.f32.mrf.mxu0
        %v3871 = vadd.f32 0.0, %v3870
        %3872 = vmatmul.bf16.gmra.mxu0 %v3796
        %v3873 = vpop.f32.mrf.mxu0
        %v3874 = vadd.f32 0.0, %v3873
        %v3875 = vpop.f32.mrf.mxu0
        %v3876 = vadd.f32 0.0, %v3875
        %3877 = vdwg.mxu0
        %3894 = vrot.lane.b32.xlu0 %v2537, 32
        %v3895 = vpop.permute.xlu0 %3894
        %3896 = vrot.lane.b32.xlu0 %v2539, 32
        %v3897 = vpop.permute.xlu0 %3896
        %3898 = vrot.lane.b32.xlu0 %v2542, 32
        %v3899 = vpop.permute.xlu0 %3898
        %3900 = vrot.lane.b32.xlu0 %v2544, 32
        %v3901 = vpop.permute.xlu0 %3900
        %3902 = vrot.lane.b32.xlu0 %v2547, 32
        %v3903 = vpop.permute.xlu0 %3902
        %3904 = vrot.lane.b32.xlu0 %v2549, 32
        %v3905 = vpop.permute.xlu0 %3904
        %3906 = vrot.lane.b32.xlu0 %v2552, 32
        %v3907 = vpop.permute.xlu0 %3906
        %3908 = vrot.lane.b32.xlu0 %v2554, 32
        %v3909 = vpop.permute.xlu0 %3908
        %3910 = vrot.lane.b32.xlu0 %v2557, 32
        %v3911 = vpop.permute.xlu0 %3910
        %3912 = vrot.lane.b32.xlu0 %v2559, 32
        %v3913 = vpop.permute.xlu0 %3912
        %3914 = vrot.lane.b32.xlu0 %v2562, 32
        %v3915 = vpop.permute.xlu0 %3914
        %3916 = vrot.lane.b32.xlu0 %v2564, 32
        %v3917 = vpop.permute.xlu0 %3916
        %3918 = vrot.lane.b32.xlu0 %v2567, 32
        %v3919 = vpop.permute.xlu0 %3918
        %3920 = vrot.lane.b32.xlu0 %v2569, 32
        %v3921 = vpop.permute.xlu0 %3920
        %3922 = vrot.lane.b32.xlu0 %v2572, 32
        %v3923 = vpop.permute.xlu0 %3922
        %3924 = vrot.lane.b32.xlu0 %v2574, 32
        %v3925 = vpop.permute.xlu0 %3924
        %3958 = vrot.lane.b32.xlu0 %v3188, 64
        %v3959 = vpop.permute.xlu0 %3958
        %3960 = vrot.lane.b32.xlu0 %v3190, 64
        %v3961 = vpop.permute.xlu0 %3960
        %3962 = vrot.lane.b32.xlu0 %v3193, 64
        %v3963 = vpop.permute.xlu0 %3962
        %3964 = vrot.lane.b32.xlu0 %v3195, 64
        %v3965 = vpop.permute.xlu0 %3964
        %3966 = vrot.lane.b32.xlu0 %v3198, 64
        %v3967 = vpop.permute.xlu0 %3966
        %3968 = vrot.lane.b32.xlu0 %v3200, 64
        %v3969 = vpop.permute.xlu0 %3968
        %3970 = vrot.lane.b32.xlu0 %v3203, 64
        %v3971 = vpop.permute.xlu0 %3970
        %3972 = vrot.lane.b32.xlu0 %v3205, 64
        %v3973 = vpop.permute.xlu0 %3972
        %3974 = vrot.lane.b32.xlu0 %v3208, 64
        %v3975 = vpop.permute.xlu0 %3974
        %3976 = vrot.lane.b32.xlu0 %v3210, 64
        %v3977 = vpop.permute.xlu0 %3976
        %3978 = vrot.lane.b32.xlu0 %v3213, 64
        %v3979 = vpop.permute.xlu0 %3978
        %3980 = vrot.lane.b32.xlu0 %v3215, 64
        %v3981 = vpop.permute.xlu0 %3980
        %3982 = vrot.lane.b32.xlu0 %v3218, 64
        %v3983 = vpop.permute.xlu0 %3982
        %3984 = vrot.lane.b32.xlu0 %v3220, 64
        %v3985 = vpop.permute.xlu0 %3984
        %3986 = vrot.lane.b32.xlu0 %v3223, 64
        %v3987 = vpop.permute.xlu0 %3986
        %3988 = vrot.lane.b32.xlu0 %v3225, 64
        %v3989 = vpop.permute.xlu0 %3988
        %4022 = vrot.lane.b32.xlu0 %v3839, 96
        %v4023 = vpop.permute.xlu0 %4022
        %4024 = vrot.lane.b32.xlu0 %v3841, 96
        %v4025 = vpop.permute.xlu0 %4024
        %4026 = vrot.lane.b32.xlu0 %v3844, 96
        %v4027 = vpop.permute.xlu0 %4026
        %4028 = vrot.lane.b32.xlu0 %v3846, 96
        %v4029 = vpop.permute.xlu0 %4028
        %4030 = vrot.lane.b32.xlu0 %v3849, 96
        %v4031 = vpop.permute.xlu0 %4030
        %4032 = vrot.lane.b32.xlu0 %v3851, 96
        %v4033 = vpop.permute.xlu0 %4032
        %4034 = vrot.lane.b32.xlu0 %v3854, 96
        %v4035 = vpop.permute.xlu0 %4034
        %4036 = vrot.lane.b32.xlu0 %v3856, 96
        %v4037 = vpop.permute.xlu0 %4036
        %4038 = vrot.lane.b32.xlu0 %v3859, 96
        %v4039 = vpop.permute.xlu0 %4038
        %4040 = vrot.lane.b32.xlu0 %v3861, 96
        %v4041 = vpop.permute.xlu0 %4040
        %4042 = vrot.lane.b32.xlu0 %v3864, 96
        %v4043 = vpop.permute.xlu0 %4042
        %4044 = vrot.lane.b32.xlu0 %v3866, 96
        %v4045 = vpop.permute.xlu0 %4044
        %4046 = vrot.lane.b32.xlu0 %v3869, 96
        %v4047 = vpop.permute.xlu0 %4046
        %4048 = vrot.lane.b32.xlu0 %v3871, 96
        %v4049 = vpop.permute.xlu0 %4048
        %4050 = vrot.lane.b32.xlu0 %v3874, 96
        %v4051 = vpop.permute.xlu0 %4050
        %4052 = vrot.lane.b32.xlu0 %v3876, 96
        %v4053 = vpop.permute.xlu0 %4052
        %v4070 = vsel %vm1282, %v1886, %v3895
        %v4071 = vsel %vm1282, %v1888, %v3897
        %v4072 = vsel %vm1282, %v1891, %v3899
        %v4073 = vsel %vm1282, %v1893, %v3901
        %v4074 = vsel %vm1282, %v1896, %v3903
        %v4075 = vsel %vm1282, %v1898, %v3905
        %v4076 = vsel %vm1282, %v1901, %v3907
        %v4077 = vsel %vm1282, %v1903, %v3909
        %v4078 = vsel %vm1282, %v1906, %v3911
        %v4079 = vsel %vm1282, %v1908, %v3913
        %v4080 = vsel %vm1282, %v1911, %v3915
        %v4081 = vsel %vm1282, %v1913, %v3917
        %v4082 = vsel %vm1282, %v1916, %v3919
        %v4083 = vsel %vm1282, %v1918, %v3921
        %v4084 = vsel %vm1282, %v1921, %v3923
        %v4085 = vsel %vm1282, %v1923, %v3925
        %vm4086 = vcmask 523264
        %v4087 = vsel %vm4086, %v4070, %v3959
        %v4088 = vsel %vm4086, %v4071, %v3961
        %v4089 = vsel %vm4086, %v4072, %v3963
        %v4090 = vsel %vm4086, %v4073, %v3965
        %v4091 = vsel %vm4086, %v4074, %v3967
        %v4092 = vsel %vm4086, %v4075, %v3969
        %v4093 = vsel %vm4086, %v4076, %v3971
        %v4094 = vsel %vm4086, %v4077, %v3973
        %v4095 = vsel %vm4086, %v4078, %v3975
        %v4096 = vsel %vm4086, %v4079, %v3977
        %v4097 = vsel %vm4086, %v4080, %v3979
        %v4098 = vsel %vm4086, %v4081, %v3981
        %v4099 = vsel %vm4086, %v4082, %v3983
        %v4100 = vsel %vm4086, %v4083, %v3985
        %v4101 = vsel %vm4086, %v4084, %v3987
        %v4102 = vsel %vm4086, %v4085, %v3989
        %vm4103 = vcmask 785408
        %v4104 = vsel %vm4103, %v4087, %v4023
        %v4105 = vsel %vm4103, %v4088, %v4025
        %v4106 = vsel %vm4103, %v4089, %v4027
        %v4107 = vsel %vm4103, %v4090, %v4029
        %v4108 = vsel %vm4103, %v4091, %v4031
        %v4109 = vsel %vm4103, %v4092, %v4033
        %v4110 = vsel %vm4103, %v4093, %v4035
        %v4111 = vsel %vm4103, %v4094, %v4037
        %v4112 = vsel %vm4103, %v4095, %v4039
        %v4113 = vsel %vm4103, %v4096, %v4041
        %v4114 = vsel %vm4103, %v4097, %v4043
        %v4115 = vsel %vm4103, %v4098, %v4045
        %v4116 = vsel %vm4103, %v4099, %v4047
        %v4117 = vsel %vm4103, %v4100, %v4049
        %v4118 = vsel %vm4103, %v4101, %v4051
        %v4119 = vsel %vm4103, %v4102, %v4053
        %v4120 = vpack.c.bf16 %v4105, %v4104
        %v4121 = vpack.c.bf16 %v4107, %v4106
        %v4122 = vpack.c.bf16 %v4109, %v4108
        %v4123 = vpack.c.bf16 %v4111, %v4110
        %v4124 = vpack.c.bf16 %v4113, %v4112
        %v4125 = vpack.c.bf16 %v4115, %v4114
        %v4126 = vpack.c.bf16 %v4117, %v4116
        %v4127 = vpack.c.bf16 %v4119, %v4118
        %v4128 = vld [vmem:[#allocation2] sm:$0xff]
        %v4129 = vld [vmem:[#allocation2 + $0x8] sm:$0xff]
        %v4130 = vld [vmem:[#allocation2 + $0x10] sm:$0xff]
        %v4131 = vld [vmem:[#allocation2 + $0x18] sm:$0xff]
        %v4132 = vld [vmem:[#allocation2 + $0x20] sm:$0xff]
        %v4133 = vld [vmem:[#allocation2 + $0x28] sm:$0xff]
        %v4134 = vld [vmem:[#allocation2 + $0x30] sm:$0xff]
        %v4135 = vld [vmem:[#allocation2 + $0x38] sm:$0xff]
        %v4136 = vld [vmem:[#allocation2 + $0x40] sm:$0xff]
        %v4137 = vld [vmem:[#allocation2 + $0x48] sm:$0xff]
        %v4138 = vld [vmem:[#allocation2 + $0x50] sm:$0xff]
        %v4139 = vld [vmem:[#allocation2 + $0x58] sm:$0xff]
        %v4140 = vld [vmem:[#allocation2 + $0x60] sm:$0xff]
        %v4141 = vld [vmem:[#allocation2 + $0x68] sm:$0xff]
        %v4142 = vld [vmem:[#allocation2 + $0x70] sm:$0xff]
        %v4143 = vld [vmem:[#allocation2 + $0x78] sm:$0xff]
        %v4144 = vld [vmem:[#allocation12] sm:$0xf]
        %v4145 = vld [vmem:[#allocation12 + $0x4] sm:$0xf]
        %v4146 = vld [vmem:[#allocation12 + $0x8] sm:$0xf]
        %v4147 = vld [vmem:[#allocation12 + $0xc] sm:$0xf]
        %v4148 = vld [vmem:[#allocation12 + $0x10] sm:$0xf]
        %v4149 = vld [vmem:[#allocation12 + $0x14] sm:$0xf]
        %v4150 = vld [vmem:[#allocation12 + $0x18] sm:$0xf]
        %v4151 = vld [vmem:[#allocation12 + $0x1c] sm:$0xf]
        %v4152 = vld [vmem:[#allocation12 + $0x20] sm:$0xf]
        %v4153 = vld [vmem:[#allocation12 + $0x24] sm:$0xf]
        %v4154 = vld [vmem:[#allocation12 + $0x28] sm:$0xf]
        %v4155 = vld [vmem:[#allocation12 + $0x2c] sm:$0xf]
        %v4156 = vld [vmem:[#allocation12 + $0x30] sm:$0xf]
        %v4157 = vld [vmem:[#allocation12 + $0x34] sm:$0xf]
        %v4158 = vld [vmem:[#allocation12 + $0x38] sm:$0xf]
        %v4159 = vld [vmem:[#allocation12 + $0x3c] sm:$0xf]
        %v4176 = vunpack.c.l.b16 %v4144
        %v4177 = vunpack.c.l.b16 %v4145
        %v4178 = vunpack.c.l.b16 %v4146
        %v4179 = vunpack.c.l.b16 %v4147
        %v4180 = vunpack.c.l.b16 %v4148
        %v4181 = vunpack.c.l.b16 %v4149
        %v4182 = vunpack.c.l.b16 %v4150
        %v4183 = vunpack.c.l.b16 %v4151
        %v4184 = vunpack.c.l.b16 %v4152
        %v4185 = vunpack.c.l.b16 %v4153
        %v4186 = vunpack.c.l.b16 %v4154
        %v4187 = vunpack.c.l.b16 %v4155
        %v4188 = vunpack.c.l.b16 %v4156
        %v4189 = vunpack.c.l.b16 %v4157
        %v4190 = vunpack.c.l.b16 %v4158
        %v4191 = vunpack.c.l.b16 %v4159
        %v4192 = vpack.c.b16 %v4177, %v4176
        %v4193 = vpack.c.b16 %v4179, %v4178
        %v4194 = vpack.c.b16 %v4181, %v4180
        %v4195 = vpack.c.b16 %v4183, %v4182
        %v4196 = vpack.c.b16 %v4185, %v4184
        %v4197 = vpack.c.b16 %v4187, %v4186
        %v4198 = vpack.c.b16 %v4189, %v4188
        %v4199 = vpack.c.b16 %v4191, %v4190
        %4208 = vmatpush.bf16.msra.mxu0 %v4199
        %4209 = vmatpush.bf16.msra.mxu0 %v4198
        %4210 = vmatpush.bf16.msra.mxu0 %v4197
        %4211 = vmatpush.bf16.msra.mxu0 %v4196
        %4212 = vmatpush.bf16.msra.mxu0 %v4195
        %4213 = vmatpush.bf16.msra.mxu0 %v4194
        %4214 = vmatpush.bf16.msra.mxu0 %v4193
        %4215 = vmatpush.bf16.msra.mxu0 %v4192
        %4216 = vmatmul.bf16.gmra.mxu0 %v4120
        %v4217 = vpop.f32.mrf.mxu0
        %v4218 = vadd.f32 0.0, %v4217
        %v4219 = vpop.f32.mrf.mxu0
        %v4220 = vadd.f32 0.0, %v4219
        %4221 = vmatmul.bf16.gmra.mxu0 %v4121
        %v4222 = vpop.f32.mrf.mxu0
        %v4223 = vadd.f32 0.0, %v4222
        %v4224 = vpop.f32.mrf.mxu0
        %v4225 = vadd.f32 0.0, %v4224
        %4226 = vmatmul.bf16.gmra.mxu0 %v4122
        %v4227 = vpop.f32.mrf.mxu0
        %v4228 = vadd.f32 0.0, %v4227
        %v4229 = vpop.f32.mrf.mxu0
        %v4230 = vadd.f32 0.0, %v4229
        %4231 = vmatmul.bf16.gmra.mxu0 %v4123
        %v4232 = vpop.f32.mrf.mxu0
        %v4233 = vadd.f32 0.0, %v4232
        %v4234 = vpop.f32.mrf.mxu0
        %v4235 = vadd.f32 0.0, %v4234
        %4236 = vmatmul.bf16.gmra.mxu0 %v4124
        %v4237 = vpop.f32.mrf.mxu0
        %v4238 = vadd.f32 0.0, %v4237
        %v4239 = vpop.f32.mrf.mxu0
        %v4240 = vadd.f32 0.0, %v4239
        %4241 = vmatmul.bf16.gmra.mxu0 %v4125
        %v4242 = vpop.f32.mrf.mxu0
        %v4243 = vadd.f32 0.0, %v4242
        %v4244 = vpop.f32.mrf.mxu0
        %v4245 = vadd.f32 0.0, %v4244
        %4246 = vmatmul.bf16.gmra.mxu0 %v4126
        %v4247 = vpop.f32.mrf.mxu0
        %v4248 = vadd.f32 0.0, %v4247
        %v4249 = vpop.f32.mrf.mxu0
        %v4250 = vadd.f32 0.0, %v4249
        %4251 = vmatmul.bf16.gmra.mxu0 %v4127
        %v4252 = vpop.f32.mrf.mxu0
        %v4253 = vadd.f32 0.0, %v4252
        %v4254 = vpop.f32.mrf.mxu0
        %v4255 = vadd.f32 0.0, %v4254
        %4256 = vdwg.mxu0
        %v4257 = vadd.f32 %v4128, %v4218
        %v4258 = vadd.f32 %v4129, %v4220
        %v4259 = vadd.f32 %v4130, %v4223
        %v4260 = vadd.f32 %v4131, %v4225
        %v4261 = vadd.f32 %v4132, %v4228
        %v4262 = vadd.f32 %v4133, %v4230
        %v4263 = vadd.f32 %v4134, %v4233
        %v4264 = vadd.f32 %v4135, %v4235
        %v4265 = vadd.f32 %v4136, %v4238
        %v4266 = vadd.f32 %v4137, %v4240
        %v4267 = vadd.f32 %v4138, %v4243
        %v4268 = vadd.f32 %v4139, %v4245
        %v4269 = vadd.f32 %v4140, %v4248
        %v4270 = vadd.f32 %v4141, %v4250
        %v4271 = vadd.f32 %v4142, %v4253
        %v4272 = vadd.f32 %v4143, %v4255
        %4273 = vst [vmem:[#allocation2] sm:$0xff] %v4257
        %4274 = vst [vmem:[#allocation2 + $0x8] sm:$0xff] %v4258
        %4275 = vst [vmem:[#allocation2 + $0x10] sm:$0xff] %v4259
        %4276 = vst [vmem:[#allocation2 + $0x18] sm:$0xff] %v4260
        %4277 = vst [vmem:[#allocation2 + $0x20] sm:$0xff] %v4261
        %4278 = vst [vmem:[#allocation2 + $0x28] sm:$0xff] %v4262
        %4279 = vst [vmem:[#allocation2 + $0x30] sm:$0xff] %v4263
        %4280 = vst [vmem:[#allocation2 + $0x38] sm:$0xff] %v4264
        %4281 = vst [vmem:[#allocation2 + $0x40] sm:$0xff] %v4265
        %4282 = vst [vmem:[#allocation2 + $0x48] sm:$0xff] %v4266
        %4283 = vst [vmem:[#allocation2 + $0x50] sm:$0xff] %v4267
        %4284 = vst [vmem:[#allocation2 + $0x58] sm:$0xff] %v4268
        %4285 = vst [vmem:[#allocation2 + $0x60] sm:$0xff] %v4269
        %4286 = vst [vmem:[#allocation2 + $0x68] sm:$0xff] %v4270
        %4287 = vst [vmem:[#allocation2 + $0x70] sm:$0xff] %v4271
        %4288 = vst [vmem:[#allocation2 + $0x78] sm:$0xff] %v4272
        // Predicated region
        $region81: #{tpu_custom_call.1} parent=51 // pred_check
          %p4289 = pneg %p579
        $region82: #{tpu_custom_call.1} parent=51 // pred_check_branch
          %4291 = sbr.rel (%p4289) target = $region84
        $region83: #{tpu_custom_call.1} parent=51 // pred_region
          %v4292 = vld [vmem:[#allocation2] sm:$0xff]
          %v4293 = vld [vmem:[#allocation2 + $0x8] sm:$0xff]
          %v4294 = vld [vmem:[#allocation2 + $0x10] sm:$0xff]
          %v4295 = vld [vmem:[#allocation2 + $0x18] sm:$0xff]
          %v4296 = vld [vmem:[#allocation2 + $0x20] sm:$0xff]
          %v4297 = vld [vmem:[#allocation2 + $0x28] sm:$0xff]
          %v4298 = vld [vmem:[#allocation2 + $0x30] sm:$0xff]
          %v4299 = vld [vmem:[#allocation2 + $0x38] sm:$0xff]
          %v4300 = vld [vmem:[#allocation2 + $0x40] sm:$0xff]
          %v4301 = vld [vmem:[#allocation2 + $0x48] sm:$0xff]
          %v4302 = vld [vmem:[#allocation2 + $0x50] sm:$0xff]
          %v4303 = vld [vmem:[#allocation2 + $0x58] sm:$0xff]
          %v4304 = vld [vmem:[#allocation2 + $0x60] sm:$0xff]
          %v4305 = vld [vmem:[#allocation2 + $0x68] sm:$0xff]
          %v4306 = vld [vmem:[#allocation2 + $0x70] sm:$0xff]
          %v4307 = vld [vmem:[#allocation2 + $0x78] sm:$0xff]
          %4308 = vst [vmem:[%s563] sm:$0xff] %v4292
          %4309 = vst [vmem:[%s563 + $0x8] sm:$0xff] %v4293
          %4310 = vst [vmem:[%s563 + $0x10] sm:$0xff] %v4294
          %4311 = vst [vmem:[%s563 + $0x18] sm:$0xff] %v4295
          %4312 = vst [vmem:[%s563 + $0x20] sm:$0xff] %v4296
          %4313 = vst [vmem:[%s563 + $0x28] sm:$0xff] %v4297
          %4314 = vst [vmem:[%s563 + $0x30] sm:$0xff] %v4298
          %4315 = vst [vmem:[%s563 + $0x38] sm:$0xff] %v4299
          %4316 = vst [vmem:[%s563 + $0x40] sm:$0xff] %v4300
          %4317 = vst [vmem:[%s563 + $0x48] sm:$0xff] %v4301
          %4318 = vst [vmem:[%s563 + $0x50] sm:$0xff] %v4302
          %4319 = vst [vmem:[%s563 + $0x58] sm:$0xff] %v4303
          %4320 = vst [vmem:[%s563 + $0x60] sm:$0xff] %v4304
          %4321 = vst [vmem:[%s563 + $0x68] sm:$0xff] %v4305
          %4322 = vst [vmem:[%s563 + $0x70] sm:$0xff] %v4306
          %4323 = vst [vmem:[%s563 + $0x78] sm:$0xff] %v4307
        $region84: #{tpu_custom_call.1} parent=51 // pred_fallthru
          _
        %s4324 = sand.u32 %s271, 1
        %s4325 = scalar_lea.sflag [#allocation5], %s4324
        %s4326 = sand.u32 %s271, 1
        %s4327 = smul.addr %s4326, 128
        %s4328 = scalar_lea.vmem [#allocation14], %s4327
        %s4329 = sand.u32 %s301, 1
        %s4330 = scalar_lea.sflag [#allocation16], %s4329
        %s4331 = sand.u32 %s301, 1
        %s4332 = smul.addr %s4331, 256
        %s4333 = scalar_lea.vmem [#allocation15], %s4332
        // Predicated region
        $region85: #{tpu_custom_call.1} parent=51 // pred_check
          %p4334 = pneg %p281
        $region86: #{tpu_custom_call.1} parent=51 // pred_check_branch
          %4336 = sbr.rel (%p4334) target = $region88
        $region87: #{tpu_custom_call.1} parent=51 // pred_region
          %s4337 = smul.u32 16, %s43
          %4339 = vsyncadd %s4325, 0
          %s4340 = smul.addr %s42, 16
          %s4341 = sadd.s32 %s4337, %s4340
          %s4342 = smul.addr %s4341, 8
          %s4343 = scalar_lea.hbm %s8, %s4342
          %s4344 = sshll.u32 %s4328, 4
          %s4345 = int_to_ptr.vmem [resolvable:$true] %s4344
          %s4346 = sshll.u32 %s4343, 4
          %s4347 = int_to_ptr.hbm [resolvable:$true] %s4346
          %4352 = dma.vmem_to_hbm [thread:$0]  %s4345, 2048, %s4347, %s4325, 128, 128, 8
        $region88: #{tpu_custom_call.1} parent=51 // pred_fallthru
          _
        // Predicated region
        $region89: #{tpu_custom_call.1} parent=51 // pred_check
          %p4353 = pneg %p311
        $region90: #{tpu_custom_call.1} parent=51 // pred_check_branch
          %4355 = sbr.rel (%p4353) target = $region92
        $region91: #{tpu_custom_call.1} parent=51 // pred_region
          %s4356 = smul.u32 4, %s44
          %s4357 = smul.u32 16, %s43
          %4359 = vsyncadd %s4330, 0
          %s4360 = smul.addr %s4356, 16
          %s4361 = sadd.s32 %s4357, %s4360
          %s4362 = smul.addr %s42, 64
          %s4363 = sadd.s32 %s4361, %s4362
          %s4364 = smul.addr %s4363, 4
          %s4365 = scalar_lea.hbm %s9, %s4364
          %s4366 = sshll.u32 %s4333, 4
          %s4367 = int_to_ptr.vmem [resolvable:$true] %s4366
          %s4368 = sshll.u32 %s4365, 4
          %s4369 = int_to_ptr.hbm [resolvable:$true] %s4368
          %4374 = dma.vmem_to_hbm [thread:$0]  %s4367, 4096, %s4369, %s4330, 64, 64, 4
        $region92: #{tpu_custom_call.1} parent=51 // pred_fallthru
          _
      $region52: #{tpu_custom_call.1} parent=5 // pred_fallthru
        _
      %p4375 = scmp.le.s32.totalorder 2, %s32
      // Predicated region
      $region93: #{tpu_custom_call.1} parent=5 // pred_check
        %p4376 = pneg %p4375
      $region94: #{tpu_custom_call.1} parent=5 // pred_check_branch
        %4378 = sbr.rel (%p4376) target = $region96
      $region95: #{tpu_custom_call.1} parent=5 // pred_region
        %s4379 = ssub.s32 %s32, 2
        // Predicated region
        $region97: #{tpu_custom_call.1} parent=95 // pred_check
          %p4380 = pneg %p287
        $region98: #{tpu_custom_call.1} parent=95 // pred_check_branch
          %4382 = sbr.rel (%p4380) target = $region100
        $region99: #{tpu_custom_call.1} parent=95 // pred_region
          %s4383 = sand.u32 %s272, 1
          %s4384 = scalar_lea.sflag [#allocation5], %s4383
          %s4385 = sand.u32 %s272, 1
          %s4386 = smul.addr %s4385, 128
          %s4387 = scalar_lea.vmem [#allocation14], %s4386
          %4389 = dma.done %s4384, 2048
        $region100: #{tpu_custom_call.1} parent=95 // pred_fallthru
          _
        // Predicated region
        $region101: #{tpu_custom_call.1} parent=95 // pred_check
          %p4390 = pneg %p317
        $region102: #{tpu_custom_call.1} parent=95 // pred_check_branch
          %4392 = sbr.rel (%p4390) target = $region104
        $region103: #{tpu_custom_call.1} parent=95 // pred_region
          %s4393 = sand.u32 %s302, 1
          %s4394 = scalar_lea.sflag [#allocation16], %s4393
          %s4395 = sand.u32 %s302, 1
          %s4396 = smul.addr %s4395, 256
          %s4397 = scalar_lea.vmem [#allocation15], %s4396
          %4399 = dma.done %s4394, 4096
        $region104: #{tpu_custom_call.1} parent=95 // pred_fallthru
          _
      $region96: #{tpu_custom_call.1} parent=5 // pred_fallthru
        _
    $region6: #{tpu_custom_call.1} parent=1 // loop_footer
      %s36 = sadd.s32 1, %s32
    $region7: #{tpu_custom_call.1} parent=1 // loop_footer_branch
      %31 = sbr.rel target = $region3
    $region8: #{tpu_custom_call.1} parent=1 // loop_exit
      _
    %4400 = vsyncpa [#allocation4], 1
    %s4401 = scalar_lea.sflag [#allocation4], 1
    %4402 = vsyncpa %s4401, 1
    %4403 = vsyncpa [#allocation7], 1
    %s4404 = scalar_lea.sflag [#allocation7], 1
    %4405 = vsyncpa %s4404, 1
    %4406 = vsyncpa [#allocation10], 1
    %s4407 = scalar_lea.sflag [#allocation10], 1
    %4408 = vsyncpa %s4407, 1
    %4409 = vsyncpa [#allocation13], 1
    %4410 = vsyncpa [#allocation5], 1
    %s4411 = scalar_lea.sflag [#allocation5], 1
    %4412 = vsyncpa %s4411, 1
    %4413 = vsyncpa [#allocation16], 1
    %s4414 = scalar_lea.sflag [#allocation16], 1
    %4415 = vsyncpa %s4414, 1

</llo_original>
